<compile_context>
chip_gen: v7x
topology: tpu7x:2x2x1
jax: 0.10.0
libtpu: 0.0.40
codegen_flags: <defaults>
</compile_context>

<pallas_src>
import jax
import jax.numpy as jnp
from jax.experimental import pallas as pl
from jax.experimental.pallas import tpu as pltpu


# ------------------------------ GRU step ------------------------------
def _gru_step(gi, h, whh_bf16, bhn):
    """One GRU step.  gi already contains b_ih + (b_hr, b_hz, 0) folded in.

    PyTorch nn.GRU gate order (r, z, n):
        r = sigmoid(gi_r + gh_r)
        z = sigmoid(gi_z + gh_z)
        n = tanh(gi_n + r * (gh_n + b_hn))
        h' = (1 - z) * n + z * h
    """
    H = whh_bf16.shape[0]
    gh = jnp.dot(h.astype(jnp.bfloat16), whh_bf16,
                 preferred_element_type=jnp.float32)              # (B, 3H) f32
    r = jax.nn.sigmoid(gi[:, :H] + gh[:, :H])
    z = jax.nn.sigmoid(gi[:, H:2 * H] + gh[:, H:2 * H])
    n = jnp.tanh(gi[:, 2 * H:] + r * (gh[:, 2 * H:] + bhn))
    return (1.0 - z) * n + z * h


def _fold_bias(bih_ref, bhh_ref, H):
    """b_ih + (b_hr, b_hz, 0): only b_hn must stay inside the n-gate term."""
    return bih_ref[...] + jnp.concatenate(
        [bhh_ref[:, :2 * H], jnp.zeros((1, H), jnp.float32)], axis=1)


# ----------------------- fused encoder+decoder kernel -----------------------
def seq2seq_kernel(enc_x_ref, dec_x_ref,
                   enc_wih_ref, enc_whh_ref, enc_bih_ref, enc_bhh_ref,
                   dec_wihx_ref, dec_wihc_ref, dec_whh_ref, dec_bih_ref,
                   dec_bhh_ref, wout_ref, bout_ref,
                   logits_ref, hfin_ref,
                   gi_scr, hs_scr):
    S, B, E = enc_x_ref.shape
    H = enc_whh_ref.shape[0]
    V = wout_ref.shape[1]

    # ============================ encoder ============================
    # Hoisted, time-batched input projection: one (S*B, E) @ (E, 3H) bf16 matmul
    # with the r/z half of b_hh folded in.
    enc_bias = _fold_bias(enc_bih_ref, enc_bhh_ref, H)            # (1, 3H)
    enc_bhn = enc_bhh_ref[:, 2 * H:]                              # (1, H)
    gi_all = jnp.dot(enc_x_ref[...].reshape(S * B, E), enc_wih_ref[...],
                     preferred_element_type=jnp.float32) + enc_bias
    gi_scr[...] = gi_all.reshape(S, B, 3 * H)

    enc_whh = enc_whh_ref[...]                                    # bf16, hoisted load

    def enc_step(t, h):
        return _gru_step(gi_scr[t], h, enc_whh, enc_bhn)          # h stays in vregs

    h0 = jnp.zeros((B, H), jnp.float32)
    dec_state = jax.lax.fori_loop(0, S, enc_step, h0, unroll=True)  # (B, H) f32

    # ============================ decoder ============================
    # dec_state is both the initial hidden and the (constant-over-time) context;
    # the context rows of W_ih are applied ONCE, outside the recurrence.
    dec_bias = _fold_bias(dec_bih_ref, dec_bhh_ref, H)            # (1, 3H)
    dec_bhn = dec_bhh_ref[:, 2 * H:]                              # (1, H)
    gi_x = jnp.dot(dec_x_ref[...].reshape(S * B, E), dec_wihx_ref[...],
                   preferred_element_type=jnp.float32)            # (S*B, 3H)
    gi_c = jnp.dot(dec_state.astype(jnp.bfloat16), dec_wihc_ref[...],
                   preferred_element_type=jnp.float32)            # (B, 3H)
    gi_scr[...] = gi_x.reshape(S, B, 3 * H) + gi_c[None, :, :] + dec_bias

    dec_whh = dec_whh_ref[...]                                    # bf16, hoisted load

    def dec_step(t, h):
        h_new = _gru_step(gi_scr[t], h, dec_whh, dec_bhn)
        hs_scr[t] = h_new            # one aligned (B, H) tile store per step
        return h_new

    hT = jax.lax.fori_loop(0, S, dec_step, dec_state, unroll=True)
    hfin_ref[...] = hT               # final state written once, after the loop

    # Epilogue: transpose the H-wide hidden states once (S,B,H)->(B,S,H), then a
    # single (B*S, H) @ (H, V) matmul and ONE bulk lane-dense store in (B,S,V).
    hs_bsh = jnp.swapaxes(hs_scr[...], 0, 1)                      # (B, S, H)
    logits = jnp.dot(hs_bsh.reshape(B * S, H).astype(jnp.bfloat16), wout_ref[...],
                     preferred_element_type=jnp.float32) + bout_ref[...]
    logits_ref[...] = logits.reshape(B, S, V)


def run_seq2seq(enc_emb, dec_emb, enc_wih, enc_whh, enc_bih, enc_bhh,
                dec_wih_x, dec_wih_ctx, dec_whh, dec_bih, dec_bhh, wout, bout):
    S, B, _ = enc_emb.shape
    H = enc_whh.shape[0]
    V = wout.shape[1]
    return pl.pallas_call(
        seq2seq_kernel,
        out_shape=(jax.ShapeDtypeStruct((B, S, V), jnp.float32),
                   jax.ShapeDtypeStruct((B, H), jnp.float32)),
        scratch_shapes=[pltpu.VMEM((S, B, 3 * H), jnp.float32),   # shared gi scratch
                        pltpu.VMEM((S, B, H), jnp.float32)],      # decoder hidden states
    )(enc_emb, dec_emb, enc_wih, enc_whh, enc_bih, enc_bhh,
      dec_wih_x, dec_wih_ctx, dec_whh, dec_bih, dec_bhh, wout, bout)


# ----------------------------- EncoderDecoder forward -----------------------------
def encoder_decoder_forward(enc_X, dec_X, params):
    bf16 = jnp.bfloat16
    # Embed in time-major order directly (no big transpose); bf16 for the MXU.
    enc_emb = jnp.take(params["enc_emb"], enc_X.T, axis=0).astype(bf16)  # (S, B, E)
    dec_emb = jnp.take(params["dec_emb"], dec_X.T, axis=0).astype(bf16)  # (S, B, E)

    output, new_state = run_seq2seq(
        enc_emb, dec_emb,
        params["enc_wih"].astype(bf16), params["enc_whh"].astype(bf16),
        params["enc_bih"], params["enc_bhh"],
        params["dec_wih_x"].astype(bf16), params["dec_wih_ctx"].astype(bf16),
        params["dec_whh"].astype(bf16),
        params["dec_bih"], params["dec_bhh"],
        params["out_w"].astype(bf16), params["out_b"])
    return output, new_state                                      # (B, S, V), (B, H)


# ----------------------------- parameter init -----------------------------
def make_params(key, vocab, embed, hidden):
    ks = jax.random.split(key, 13)
    s = 0.1
    return {
        "enc_emb": s * jax.random.normal(ks[0], (vocab, embed), jnp.float32),
        "enc_wih": s * jax.random.normal(ks[1], (embed, 3 * hidden), jnp.float32),
        "enc_whh": s * jax.random.normal(ks[2], (hidden, 3 * hidden), jnp.float32),
        "enc_bih": s * jax.random.normal(ks[3], (1, 3 * hidden), jnp.float32),
        "enc_bhh": s * jax.random.normal(ks[4], (1, 3 * hidden), jnp.float32),
        "dec_emb": s * jax.random.normal(ks[5], (vocab, embed), jnp.float32),
        # decoder W_ih split into embedding rows and context rows
        "dec_wih_x": s * jax.random.normal(ks[6], (embed, 3 * hidden), jnp.float32),
        "dec_wih_ctx": s * jax.random.normal(ks[7], (hidden, 3 * hidden), jnp.float32),
        "dec_whh": s * jax.random.normal(ks[8], (hidden, 3 * hidden), jnp.float32),
        "dec_bih": s * jax.random.normal(ks[9], (1, 3 * hidden), jnp.float32),
        "dec_bhh": s * jax.random.normal(ks[10], (1, 3 * hidden), jnp.float32),
        "out_w": s * jax.random.normal(ks[11], (hidden, vocab), jnp.float32),
        "out_b": s * jax.random.normal(ks[12], (1, vocab), jnp.float32),
    }


if __name__ == "__main__":
    # Lane-dense small dims: E = H = V = 128 (multiples of 128), B = 8 (sublane).
    VOCAB, EMBED, HIDDEN = 128, 128, 128
    BATCH, SEQ = 8, 8

    key = jax.random.PRNGKey(0)
    k_p, k_e, k_d = jax.random.split(key, 3)
    params = make_params(k_p, VOCAB, EMBED, HIDDEN)

    enc_X = jax.random.randint(k_e, (BATCH, SEQ), 0, VOCAB, dtype=jnp.int32)
    dec_X = jax.random.randint(k_d, (BATCH, SEQ), 0, VOCAB, dtype=jnp.int32)

    output, dec_state = jax.jit(encoder_decoder_forward)(enc_X, dec_X, params)
    jax.block_until_ready((output, dec_state))

    assert output.shape == (BATCH, SEQ, VOCAB)
    assert dec_state.shape == (BATCH, HIDDEN)
    print("KERNEL_OK")
</pallas_src>

<mosaic_0001>
module attributes {stable_mosaic.version = 11 : i64} {
  func.func @seq2seq_kernel(%arg0: memref<8x8x128xbf16, #tpu.memory_space<vmem>>, %arg1: memref<8x8x128xbf16, #tpu.memory_space<vmem>>, %arg2: memref<128x384xbf16, #tpu.memory_space<vmem>>, %arg3: memref<128x384xbf16, #tpu.memory_space<vmem>>, %arg4: memref<1x384xf32, #tpu.memory_space<vmem>>, %arg5: memref<1x384xf32, #tpu.memory_space<vmem>>, %arg6: memref<128x384xbf16, #tpu.memory_space<vmem>>, %arg7: memref<128x384xbf16, #tpu.memory_space<vmem>>, %arg8: memref<128x384xbf16, #tpu.memory_space<vmem>>, %arg9: memref<1x384xf32, #tpu.memory_space<vmem>>, %arg10: memref<1x384xf32, #tpu.memory_space<vmem>>, %arg11: memref<128x128xbf16, #tpu.memory_space<vmem>>, %arg12: memref<1x128xf32, #tpu.memory_space<vmem>>, %arg13: memref<8x8x128xf32, #tpu.memory_space<vmem>>, %arg14: memref<8x128xf32, #tpu.memory_space<vmem>>, %arg15: memref<8x8x384xf32, #tpu.memory_space<vmem>>, %arg16: memref<8x8x128xf32, #tpu.memory_space<vmem>>) attributes {dimension_semantics = [], scalar_prefetch = 0 : i64, scratch_operands = 2 : i64, tpu.core_type = #tpu.core_type<tc>} {
    %c0 = arith.constant 0 : index
    %c0_0 = arith.constant 0 : index
    %0 = vector.load %arg4[%c0, %c0_0] : memref<1x384xf32, #tpu.memory_space<vmem>>, vector<1x384xf32>
    %c0_1 = arith.constant 0 : index
    %c0_2 = arith.constant 0 : index
    %1 = vector.load %arg5[%c0_1, %c0_2] : memref<1x384xf32, #tpu.memory_space<vmem>>, vector<1x256xf32>
    %cst = arith.constant 0.000000e+00 : f32
    %2 = vector.broadcast %cst : f32 to vector<1x128xf32>
    %3 = tpu.concatenate %1, %2 in 1 : vector<1x256xf32>, vector<1x128xf32> -> vector<1x384xf32>
    %4 = arith.addf %0, %3 : vector<1x384xf32>
    %c0_3 = arith.constant 0 : index
    %c256 = arith.constant 256 : index
    %5 = vector.load %arg5[%c0_3, %c256] : memref<1x384xf32, #tpu.memory_space<vmem>>, vector<1x128xf32>
    %c0_4 = arith.constant 0 : index
    %c0_5 = arith.constant 0 : index
    %c0_6 = arith.constant 0 : index
    %6 = vector.load %arg0[%c0_4, %c0_5, %c0_6] : memref<8x8x128xbf16, #tpu.memory_space<vmem>>, vector<8x8x128xbf16>
    %7 = vector.shape_cast %6 : vector<8x8x128xbf16> to vector<64x128xbf16>
    %c0_7 = arith.constant 0 : index
    %c0_8 = arith.constant 0 : index
    %8 = vector.load %arg2[%c0_7, %c0_8] : memref<128x384xbf16, #tpu.memory_space<vmem>>, vector<128x384xbf16>
    %cst_9 = arith.constant dense<0.000000e+00> : vector<64x384xf32>
    %9 = tpu.matmul %7, %8, %cst_9 {dimension_numbers = #tpu.dot_dimension_numbers<[1], [0], [0], [1], [0, 0, 1, 1], [], []>} : vector<64x128xbf16>, vector<128x384xbf16>, vector<64x384xf32> -> vector<64x384xf32>
    %10 = vector.broadcast %4 : vector<1x384xf32> to vector<64x384xf32>
    %11 = arith.addf %9, %10 : vector<64x384xf32>
    %12 = vector.shape_cast %11 : vector<64x384xf32> to vector<8x8x384xf32>
    %c0_10 = arith.constant 0 : index
    %c0_11 = arith.constant 0 : index
    %c0_12 = arith.constant 0 : index
    %13 = vector.load %arg15[%c0_10, %c0_11, %c0_12] : memref<8x8x384xf32, #tpu.memory_space<vmem>>, vector<8x8x384xf32>
    tpu.vector_store %arg15[%c0_10, %c0_11, %c0_12], %12 {strides = array<i32>} : memref<8x8x384xf32, #tpu.memory_space<vmem>>, vector<8x8x384xf32>,
    %c0_13 = arith.constant 0 : index
    %c0_14 = arith.constant 0 : index
    %14 = vector.load %arg3[%c0_13, %c0_14] : memref<128x384xbf16, #tpu.memory_space<vmem>>, vector<128x384xbf16>
    %cst_15 = arith.constant 0.000000e+00 : f32
    %15 = vector.broadcast %cst_15 : f32 to vector<8x128xf32>
    %c0_i32 = arith.constant 0 : i32
    %16 = arith.index_cast %c0_i32 : i32 to index
    %c0_16 = arith.constant 0 : index
    %c0_17 = arith.constant 0 : index
    %17 = vector.load %arg15[%16, %c0_16, %c0_17] : memref<8x8x384xf32, #tpu.memory_space<vmem>>, vector<1x8x384xf32>
    %18 = vector.shape_cast %17 : vector<1x8x384xf32> to vector<8x384xf32>
    %19 = arith.truncf %15 : vector<8x128xf32> to vector<8x128xbf16>
    %cst_18 = arith.constant dense<0.000000e+00> : vector<8x384xf32>
    %20 = tpu.matmul %19, %14, %cst_18 {dimension_numbers = #tpu.dot_dimension_numbers<[1], [0], [0], [1], [0, 0, 1, 1], [], []>} : vector<8x128xbf16>, vector<128x384xbf16>, vector<8x384xf32> -> vector<8x384xf32>
    %21 = vector.extract_strided_slice %18 {offsets = [0, 0], sizes = [8, 128], strides = [1, 1]} : vector<8x384xf32> to vector<8x128xf32>
    %22 = vector.extract_strided_slice %20 {offsets = [0, 0], sizes = [8, 128], strides = [1, 1]} : vector<8x384xf32> to vector<8x128xf32>
    %23 = arith.addf %21, %22 : vector<8x128xf32>
    %24 = arith.negf %23 : vector<8x128xf32>
    %25 = math.exp %24 : vector<8x128xf32>
    %cst_19 = arith.constant 1.000000e+00 : f32
    %26 = vector.broadcast %cst_19 : f32 to vector<8x128xf32>
    %27 = arith.addf %26, %25 : vector<8x128xf32>
    %28 = arith.divf %26, %27 : vector<8x128xf32>
    %29 = vector.extract_strided_slice %18 {offsets = [0, 128], sizes = [8, 128], strides = [1, 1]} : vector<8x384xf32> to vector<8x128xf32>
    %30 = vector.extract_strided_slice %20 {offsets = [0, 128], sizes = [8, 128], strides = [1, 1]} : vector<8x384xf32> to vector<8x128xf32>
    %31 = arith.addf %29, %30 : vector<8x128xf32>
    %32 = arith.negf %31 : vector<8x128xf32>
    %33 = math.exp %32 : vector<8x128xf32>
    %cst_20 = arith.constant 1.000000e+00 : f32
    %34 = vector.broadcast %cst_20 : f32 to vector<8x128xf32>
    %35 = arith.addf %34, %33 : vector<8x128xf32>
    %36 = arith.divf %34, %35 : vector<8x128xf32>
    %37 = vector.extract_strided_slice %18 {offsets = [0, 256], sizes = [8, 128], strides = [1, 1]} : vector<8x384xf32> to vector<8x128xf32>
    %38 = vector.extract_strided_slice %20 {offsets = [0, 256], sizes = [8, 128], strides = [1, 1]} : vector<8x384xf32> to vector<8x128xf32>
    %39 = vector.broadcast %5 : vector<1x128xf32> to vector<8x128xf32>
    %40 = arith.addf %38, %39 : vector<8x128xf32>
    %41 = arith.mulf %28, %40 : vector<8x128xf32>
    %42 = arith.addf %37, %41 : vector<8x128xf32>
    %43 = math.tanh %42 : vector<8x128xf32>
    %cst_21 = arith.constant 1.000000e+00 : f32
    %44 = vector.broadcast %cst_21 : f32 to vector<8x128xf32>
    %45 = arith.subf %44, %36 : vector<8x128xf32>
    %46 = arith.mulf %45, %43 : vector<8x128xf32>
    %47 = arith.mulf %36, %15 : vector<8x128xf32>
    %48 = arith.addf %46, %47 : vector<8x128xf32>
    %c1_i32 = arith.constant 1 : i32
    %49 = arith.index_cast %c1_i32 : i32 to index
    %c0_22 = arith.constant 0 : index
    %c0_23 = arith.constant 0 : index
    %50 = vector.load %arg15[%49, %c0_22, %c0_23] : memref<8x8x384xf32, #tpu.memory_space<vmem>>, vector<1x8x384xf32>
    %51 = vector.shape_cast %50 : vector<1x8x384xf32> to vector<8x384xf32>
    %52 = arith.truncf %48 : vector<8x128xf32> to vector<8x128xbf16>
    %cst_24 = arith.constant dense<0.000000e+00> : vector<8x384xf32>
    %53 = tpu.matmul %52, %14, %cst_24 {dimension_numbers = #tpu.dot_dimension_numbers<[1], [0], [0], [1], [0, 0, 1, 1], [], []>} : vector<8x128xbf16>, vector<128x384xbf16>, vector<8x384xf32> -> vector<8x384xf32>
    %54 = vector.extract_strided_slice %51 {offsets = [0, 0], sizes = [8, 128], strides = [1, 1]} : vector<8x384xf32> to vector<8x128xf32>
    %55 = vector.extract_strided_slice %53 {offsets = [0, 0], sizes = [8, 128], strides = [1, 1]} : vector<8x384xf32> to vector<8x128xf32>
    %56 = arith.addf %54, %55 : vector<8x128xf32>
    %57 = arith.negf %56 : vector<8x128xf32>
    %58 = math.exp %57 : vector<8x128xf32>
    %cst_25 = arith.constant 1.000000e+00 : f32
    %59 = vector.broadcast %cst_25 : f32 to vector<8x128xf32>
    %60 = arith.addf %59, %58 : vector<8x128xf32>
    %61 = arith.divf %59, %60 : vector<8x128xf32>
    %62 = vector.extract_strided_slice %51 {offsets = [0, 128], sizes = [8, 128], strides = [1, 1]} : vector<8x384xf32> to vector<8x128xf32>
    %63 = vector.extract_strided_slice %53 {offsets = [0, 128], sizes = [8, 128], strides = [1, 1]} : vector<8x384xf32> to vector<8x128xf32>
    %64 = arith.addf %62, %63 : vector<8x128xf32>
    %65 = arith.negf %64 : vector<8x128xf32>
    %66 = math.exp %65 : vector<8x128xf32>
    %cst_26 = arith.constant 1.000000e+00 : f32
    %67 = vector.broadcast %cst_26 : f32 to vector<8x128xf32>
    %68 = arith.addf %67, %66 : vector<8x128xf32>
    %69 = arith.divf %67, %68 : vector<8x128xf32>
    %70 = vector.extract_strided_slice %51 {offsets = [0, 256], sizes = [8, 128], strides = [1, 1]} : vector<8x384xf32> to vector<8x128xf32>
    %71 = vector.extract_strided_slice %53 {offsets = [0, 256], sizes = [8, 128], strides = [1, 1]} : vector<8x384xf32> to vector<8x128xf32>
    %72 = vector.broadcast %5 : vector<1x128xf32> to vector<8x128xf32>
    %73 = arith.addf %71, %72 : vector<8x128xf32>
    %74 = arith.mulf %61, %73 : vector<8x128xf32>
    %75 = arith.addf %70, %74 : vector<8x128xf32>
    %76 = math.tanh %75 : vector<8x128xf32>
    %cst_27 = arith.constant 1.000000e+00 : f32
    %77 = vector.broadcast %cst_27 : f32 to vector<8x128xf32>
    %78 = arith.subf %77, %69 : vector<8x128xf32>
    %79 = arith.mulf %78, %76 : vector<8x128xf32>
    %80 = arith.mulf %69, %48 : vector<8x128xf32>
    %81 = arith.addf %79, %80 : vector<8x128xf32>
    %c2_i32 = arith.constant 2 : i32
    %82 = arith.index_cast %c2_i32 : i32 to index
    %c0_28 = arith.constant 0 : index
    %c0_29 = arith.constant 0 : index
    %83 = vector.load %arg15[%82, %c0_28, %c0_29] : memref<8x8x384xf32, #tpu.memory_space<vmem>>, vector<1x8x384xf32>
    %84 = vector.shape_cast %83 : vector<1x8x384xf32> to vector<8x384xf32>
    %85 = arith.truncf %81 : vector<8x128xf32> to vector<8x128xbf16>
    %cst_30 = arith.constant dense<0.000000e+00> : vector<8x384xf32>
    %86 = tpu.matmul %85, %14, %cst_30 {dimension_numbers = #tpu.dot_dimension_numbers<[1], [0], [0], [1], [0, 0, 1, 1], [], []>} : vector<8x128xbf16>, vector<128x384xbf16>, vector<8x384xf32> -> vector<8x384xf32>
    %87 = vector.extract_strided_slice %84 {offsets = [0, 0], sizes = [8, 128], strides = [1, 1]} : vector<8x384xf32> to vector<8x128xf32>
    %88 = vector.extract_strided_slice %86 {offsets = [0, 0], sizes = [8, 128], strides = [1, 1]} : vector<8x384xf32> to vector<8x128xf32>
    %89 = arith.addf %87, %88 : vector<8x128xf32>
    %90 = arith.negf %89 : vector<8x128xf32>
    %91 = math.exp %90 : vector<8x128xf32>
    %cst_31 = arith.constant 1.000000e+00 : f32
    %92 = vector.broadcast %cst_31 : f32 to vector<8x128xf32>
    %93 = arith.addf %92, %91 : vector<8x128xf32>
    %94 = arith.divf %92, %93 : vector<8x128xf32>
    %95 = vector.extract_strided_slice %84 {offsets = [0, 128], sizes = [8, 128], strides = [1, 1]} : vector<8x384xf32> to vector<8x128xf32>
    %96 = vector.extract_strided_slice %86 {offsets = [0, 128], sizes = [8, 128], strides = [1, 1]} : vector<8x384xf32> to vector<8x128xf32>
    %97 = arith.addf %95, %96 : vector<8x128xf32>
    %98 = arith.negf %97 : vector<8x128xf32>
    %99 = math.exp %98 : vector<8x128xf32>
    %cst_32 = arith.constant 1.000000e+00 : f32
    %100 = vector.broadcast %cst_32 : f32 to vector<8x128xf32>
    %101 = arith.addf %100, %99 : vector<8x128xf32>
    %102 = arith.divf %100, %101 : vector<8x128xf32>
    %103 = vector.extract_strided_slice %84 {offsets = [0, 256], sizes = [8, 128], strides = [1, 1]} : vector<8x384xf32> to vector<8x128xf32>
    %104 = vector.extract_strided_slice %86 {offsets = [0, 256], sizes = [8, 128], strides = [1, 1]} : vector<8x384xf32> to vector<8x128xf32>
    %105 = vector.broadcast %5 : vector<1x128xf32> to vector<8x128xf32>
    %106 = arith.addf %104, %105 : vector<8x128xf32>
    %107 = arith.mulf %94, %106 : vector<8x128xf32>
    %108 = arith.addf %103, %107 : vector<8x128xf32>
    %109 = math.tanh %108 : vector<8x128xf32>
    %cst_33 = arith.constant 1.000000e+00 : f32
    %110 = vector.broadcast %cst_33 : f32 to vector<8x128xf32>
    %111 = arith.subf %110, %102 : vector<8x128xf32>
    %112 = arith.mulf %111, %109 : vector<8x128xf32>
    %113 = arith.mulf %102, %81 : vector<8x128xf32>
    %114 = arith.addf %112, %113 : vector<8x128xf32>
    %c3_i32 = arith.constant 3 : i32
    %115 = arith.index_cast %c3_i32 : i32 to index
    %c0_34 = arith.constant 0 : index
    %c0_35 = arith.constant 0 : index
    %116 = vector.load %arg15[%115, %c0_34, %c0_35] : memref<8x8x384xf32, #tpu.memory_space<vmem>>, vector<1x8x384xf32>
    %117 = vector.shape_cast %116 : vector<1x8x384xf32> to vector<8x384xf32>
    %118 = arith.truncf %114 : vector<8x128xf32> to vector<8x128xbf16>
    %cst_36 = arith.constant dense<0.000000e+00> : vector<8x384xf32>
    %119 = tpu.matmul %118, %14, %cst_36 {dimension_numbers = #tpu.dot_dimension_numbers<[1], [0], [0], [1], [0, 0, 1, 1], [], []>} : vector<8x128xbf16>, vector<128x384xbf16>, vector<8x384xf32> -> vector<8x384xf32>
    %120 = vector.extract_strided_slice %117 {offsets = [0, 0], sizes = [8, 128], strides = [1, 1]} : vector<8x384xf32> to vector<8x128xf32>
    %121 = vector.extract_strided_slice %119 {offsets = [0, 0], sizes = [8, 128], strides = [1, 1]} : vector<8x384xf32> to vector<8x128xf32>
    %122 = arith.addf %120, %121 : vector<8x128xf32>
    %123 = arith.negf %122 : vector<8x128xf32>
    %124 = math.exp %123 : vector<8x128xf32>
    %cst_37 = arith.constant 1.000000e+00 : f32
    %125 = vector.broadcast %cst_37 : f32 to vector<8x128xf32>
    %126 = arith.addf %125, %124 : vector<8x128xf32>
    %127 = arith.divf %125, %126 : vector<8x128xf32>
    %128 = vector.extract_strided_slice %117 {offsets = [0, 128], sizes = [8, 128], strides = [1, 1]} : vector<8x384xf32> to vector<8x128xf32>
    %129 = vector.extract_strided_slice %119 {offsets = [0, 128], sizes = [8, 128], strides = [1, 1]} : vector<8x384xf32> to vector<8x128xf32>
    %130 = arith.addf %128, %129 : vector<8x128xf32>
    %131 = arith.negf %130 : vector<8x128xf32>
    %132 = math.exp %131 : vector<8x128xf32>
    %cst_38 = arith.constant 1.000000e+00 : f32
    %133 = vector.broadcast %cst_38 : f32 to vector<8x128xf32>
    %134 = arith.addf %133, %132 : vector<8x128xf32>
    %135 = arith.divf %133, %134 : vector<8x128xf32>
    %136 = vector.extract_strided_slice %117 {offsets = [0, 256], sizes = [8, 128], strides = [1, 1]} : vector<8x384xf32> to vector<8x128xf32>
    %137 = vector.extract_strided_slice %119 {offsets = [0, 256], sizes = [8, 128], strides = [1, 1]} : vector<8x384xf32> to vector<8x128xf32>
    %138 = vector.broadcast %5 : vector<1x128xf32> to vector<8x128xf32>
    %139 = arith.addf %137, %138 : vector<8x128xf32>
    %140 = arith.mulf %127, %139 : vector<8x128xf32>
    %141 = arith.addf %136, %140 : vector<8x128xf32>
    %142 = math.tanh %141 : vector<8x128xf32>
    %cst_39 = arith.constant 1.000000e+00 : f32
    %143 = vector.broadcast %cst_39 : f32 to vector<8x128xf32>
    %144 = arith.subf %143, %135 : vector<8x128xf32>
    %145 = arith.mulf %144, %142 : vector<8x128xf32>
    %146 = arith.mulf %135, %114 : vector<8x128xf32>
    %147 = arith.addf %145, %146 : vector<8x128xf32>
    %c4_i32 = arith.constant 4 : i32
    %148 = arith.index_cast %c4_i32 : i32 to index
    %c0_40 = arith.constant 0 : index
    %c0_41 = arith.constant 0 : index
    %149 = vector.load %arg15[%148, %c0_40, %c0_41] : memref<8x8x384xf32, #tpu.memory_space<vmem>>, vector<1x8x384xf32>
    %150 = vector.shape_cast %149 : vector<1x8x384xf32> to vector<8x384xf32>
    %151 = arith.truncf %147 : vector<8x128xf32> to vector<8x128xbf16>
    %cst_42 = arith.constant dense<0.000000e+00> : vector<8x384xf32>
    %152 = tpu.matmul %151, %14, %cst_42 {dimension_numbers = #tpu.dot_dimension_numbers<[1], [0], [0], [1], [0, 0, 1, 1], [], []>} : vector<8x128xbf16>, vector<128x384xbf16>, vector<8x384xf32> -> vector<8x384xf32>
    %153 = vector.extract_strided_slice %150 {offsets = [0, 0], sizes = [8, 128], strides = [1, 1]} : vector<8x384xf32> to vector<8x128xf32>
    %154 = vector.extract_strided_slice %152 {offsets = [0, 0], sizes = [8, 128], strides = [1, 1]} : vector<8x384xf32> to vector<8x128xf32>
    %155 = arith.addf %153, %154 : vector<8x128xf32>
    %156 = arith.negf %155 : vector<8x128xf32>
    %157 = math.exp %156 : vector<8x128xf32>
    %cst_43 = arith.constant 1.000000e+00 : f32
    %158 = vector.broadcast %cst_43 : f32 to vector<8x128xf32>
    %159 = arith.addf %158, %157 : vector<8x128xf32>
    %160 = arith.divf %158, %159 : vector<8x128xf32>
    %161 = vector.extract_strided_slice %150 {offsets = [0, 128], sizes = [8, 128], strides = [1, 1]} : vector<8x384xf32> to vector<8x128xf32>
    %162 = vector.extract_strided_slice %152 {offsets = [0, 128], sizes = [8, 128], strides = [1, 1]} : vector<8x384xf32> to vector<8x128xf32>
    %163 = arith.addf %161, %162 : vector<8x128xf32>
    %164 = arith.negf %163 : vector<8x128xf32>
    %165 = math.exp %164 : vector<8x128xf32>
    %cst_44 = arith.constant 1.000000e+00 : f32
    %166 = vector.broadcast %cst_44 : f32 to vector<8x128xf32>
    %167 = arith.addf %166, %165 : vector<8x128xf32>
    %168 = arith.divf %166, %167 : vector<8x128xf32>
    %169 = vector.extract_strided_slice %150 {offsets = [0, 256], sizes = [8, 128], strides = [1, 1]} : vector<8x384xf32> to vector<8x128xf32>
    %170 = vector.extract_strided_slice %152 {offsets = [0, 256], sizes = [8, 128], strides = [1, 1]} : vector<8x384xf32> to vector<8x128xf32>
    %171 = vector.broadcast %5 : vector<1x128xf32> to vector<8x128xf32>
    %172 = arith.addf %170, %171 : vector<8x128xf32>
    %173 = arith.mulf %160, %172 : vector<8x128xf32>
    %174 = arith.addf %169, %173 : vector<8x128xf32>
    %175 = math.tanh %174 : vector<8x128xf32>
    %cst_45 = arith.constant 1.000000e+00 : f32
    %176 = vector.broadcast %cst_45 : f32 to vector<8x128xf32>
    %177 = arith.subf %176, %168 : vector<8x128xf32>
    %178 = arith.mulf %177, %175 : vector<8x128xf32>
    %179 = arith.mulf %168, %147 : vector<8x128xf32>
    %180 = arith.addf %178, %179 : vector<8x128xf32>
    %c5_i32 = arith.constant 5 : i32
    %181 = arith.index_cast %c5_i32 : i32 to index
    %c0_46 = arith.constant 0 : index
    %c0_47 = arith.constant 0 : index
    %182 = vector.load %arg15[%181, %c0_46, %c0_47] : memref<8x8x384xf32, #tpu.memory_space<vmem>>, vector<1x8x384xf32>
    %183 = vector.shape_cast %182 : vector<1x8x384xf32> to vector<8x384xf32>
    %184 = arith.truncf %180 : vector<8x128xf32> to vector<8x128xbf16>
    %cst_48 = arith.constant dense<0.000000e+00> : vector<8x384xf32>
    %185 = tpu.matmul %184, %14, %cst_48 {dimension_numbers = #tpu.dot_dimension_numbers<[1], [0], [0], [1], [0, 0, 1, 1], [], []>} : vector<8x128xbf16>, vector<128x384xbf16>, vector<8x384xf32> -> vector<8x384xf32>
    %186 = vector.extract_strided_slice %183 {offsets = [0, 0], sizes = [8, 128], strides = [1, 1]} : vector<8x384xf32> to vector<8x128xf32>
    %187 = vector.extract_strided_slice %185 {offsets = [0, 0], sizes = [8, 128], strides = [1, 1]} : vector<8x384xf32> to vector<8x128xf32>
    %188 = arith.addf %186, %187 : vector<8x128xf32>
    %189 = arith.negf %188 : vector<8x128xf32>
    %190 = math.exp %189 : vector<8x128xf32>
    %cst_49 = arith.constant 1.000000e+00 : f32
    %191 = vector.broadcast %cst_49 : f32 to vector<8x128xf32>
    %192 = arith.addf %191, %190 : vector<8x128xf32>
    %193 = arith.divf %191, %192 : vector<8x128xf32>
    %194 = vector.extract_strided_slice %183 {offsets = [0, 128], sizes = [8, 128], strides = [1, 1]} : vector<8x384xf32> to vector<8x128xf32>
    %195 = vector.extract_strided_slice %185 {offsets = [0, 128], sizes = [8, 128], strides = [1, 1]} : vector<8x384xf32> to vector<8x128xf32>
    %196 = arith.addf %194, %195 : vector<8x128xf32>
    %197 = arith.negf %196 : vector<8x128xf32>
    %198 = math.exp %197 : vector<8x128xf32>
    %cst_50 = arith.constant 1.000000e+00 : f32
    %199 = vector.broadcast %cst_50 : f32 to vector<8x128xf32>
    %200 = arith.addf %199, %198 : vector<8x128xf32>
    %201 = arith.divf %199, %200 : vector<8x128xf32>
    %202 = vector.extract_strided_slice %183 {offsets = [0, 256], sizes = [8, 128], strides = [1, 1]} : vector<8x384xf32> to vector<8x128xf32>
    %203 = vector.extract_strided_slice %185 {offsets = [0, 256], sizes = [8, 128], strides = [1, 1]} : vector<8x384xf32> to vector<8x128xf32>
    %204 = vector.broadcast %5 : vector<1x128xf32> to vector<8x128xf32>
    %205 = arith.addf %203, %204 : vector<8x128xf32>
    %206 = arith.mulf %193, %205 : vector<8x128xf32>
    %207 = arith.addf %202, %206 : vector<8x128xf32>
    %208 = math.tanh %207 : vector<8x128xf32>
    %cst_51 = arith.constant 1.000000e+00 : f32
    %209 = vector.broadcast %cst_51 : f32 to vector<8x128xf32>
    %210 = arith.subf %209, %201 : vector<8x128xf32>
    %211 = arith.mulf %210, %208 : vector<8x128xf32>
    %212 = arith.mulf %201, %180 : vector<8x128xf32>
    %213 = arith.addf %211, %212 : vector<8x128xf32>
    %c6_i32 = arith.constant 6 : i32
    %214 = arith.index_cast %c6_i32 : i32 to index
    %c0_52 = arith.constant 0 : index
    %c0_53 = arith.constant 0 : index
    %215 = vector.load %arg15[%214, %c0_52, %c0_53] : memref<8x8x384xf32, #tpu.memory_space<vmem>>, vector<1x8x384xf32>
    %216 = vector.shape_cast %215 : vector<1x8x384xf32> to vector<8x384xf32>
    %217 = arith.truncf %213 : vector<8x128xf32> to vector<8x128xbf16>
    %cst_54 = arith.constant dense<0.000000e+00> : vector<8x384xf32>
    %218 = tpu.matmul %217, %14, %cst_54 {dimension_numbers = #tpu.dot_dimension_numbers<[1], [0], [0], [1], [0, 0, 1, 1], [], []>} : vector<8x128xbf16>, vector<128x384xbf16>, vector<8x384xf32> -> vector<8x384xf32>
    %219 = vector.extract_strided_slice %216 {offsets = [0, 0], sizes = [8, 128], strides = [1, 1]} : vector<8x384xf32> to vector<8x128xf32>
    %220 = vector.extract_strided_slice %218 {offsets = [0, 0], sizes = [8, 128], strides = [1, 1]} : vector<8x384xf32> to vector<8x128xf32>
    %221 = arith.addf %219, %220 : vector<8x128xf32>
    %222 = arith.negf %221 : vector<8x128xf32>
    %223 = math.exp %222 : vector<8x128xf32>
    %cst_55 = arith.constant 1.000000e+00 : f32
    %224 = vector.broadcast %cst_55 : f32 to vector<8x128xf32>
    %225 = arith.addf %224, %223 : vector<8x128xf32>
    %226 = arith.divf %224, %225 : vector<8x128xf32>
    %227 = vector.extract_strided_slice %216 {offsets = [0, 128], sizes = [8, 128], strides = [1, 1]} : vector<8x384xf32> to vector<8x128xf32>
    %228 = vector.extract_strided_slice %218 {offsets = [0, 128], sizes = [8, 128], strides = [1, 1]} : vector<8x384xf32> to vector<8x128xf32>
    %229 = arith.addf %227, %228 : vector<8x128xf32>
    %230 = arith.negf %229 : vector<8x128xf32>
    %231 = math.exp %230 : vector<8x128xf32>
    %cst_56 = arith.constant 1.000000e+00 : f32
    %232 = vector.broadcast %cst_56 : f32 to vector<8x128xf32>
    %233 = arith.addf %232, %231 : vector<8x128xf32>
    %234 = arith.divf %232, %233 : vector<8x128xf32>
    %235 = vector.extract_strided_slice %216 {offsets = [0, 256], sizes = [8, 128], strides = [1, 1]} : vector<8x384xf32> to vector<8x128xf32>
    %236 = vector.extract_strided_slice %218 {offsets = [0, 256], sizes = [8, 128], strides = [1, 1]} : vector<8x384xf32> to vector<8x128xf32>
    %237 = vector.broadcast %5 : vector<1x128xf32> to vector<8x128xf32>
    %238 = arith.addf %236, %237 : vector<8x128xf32>
    %239 = arith.mulf %226, %238 : vector<8x128xf32>
    %240 = arith.addf %235, %239 : vector<8x128xf32>
    %241 = math.tanh %240 : vector<8x128xf32>
    %cst_57 = arith.constant 1.000000e+00 : f32
    %242 = vector.broadcast %cst_57 : f32 to vector<8x128xf32>
    %243 = arith.subf %242, %234 : vector<8x128xf32>
    %244 = arith.mulf %243, %241 : vector<8x128xf32>
    %245 = arith.mulf %234, %213 : vector<8x128xf32>
    %246 = arith.addf %244, %245 : vector<8x128xf32>
    %c7_i32 = arith.constant 7 : i32
    %247 = arith.index_cast %c7_i32 : i32 to index
    %c0_58 = arith.constant 0 : index
    %c0_59 = arith.constant 0 : index
    %248 = vector.load %arg15[%247, %c0_58, %c0_59] : memref<8x8x384xf32, #tpu.memory_space<vmem>>, vector<1x8x384xf32>
    %249 = vector.shape_cast %248 : vector<1x8x384xf32> to vector<8x384xf32>
    %250 = arith.truncf %246 : vector<8x128xf32> to vector<8x128xbf16>
    %cst_60 = arith.constant dense<0.000000e+00> : vector<8x384xf32>
    %251 = tpu.matmul %250, %14, %cst_60 {dimension_numbers = #tpu.dot_dimension_numbers<[1], [0], [0], [1], [0, 0, 1, 1], [], []>} : vector<8x128xbf16>, vector<128x384xbf16>, vector<8x384xf32> -> vector<8x384xf32>
    %252 = vector.extract_strided_slice %249 {offsets = [0, 0], sizes = [8, 128], strides = [1, 1]} : vector<8x384xf32> to vector<8x128xf32>
    %253 = vector.extract_strided_slice %251 {offsets = [0, 0], sizes = [8, 128], strides = [1, 1]} : vector<8x384xf32> to vector<8x128xf32>
    %254 = arith.addf %252, %253 : vector<8x128xf32>
    %255 = arith.negf %254 : vector<8x128xf32>
    %256 = math.exp %255 : vector<8x128xf32>
    %cst_61 = arith.constant 1.000000e+00 : f32
    %257 = vector.broadcast %cst_61 : f32 to vector<8x128xf32>
    %258 = arith.addf %257, %256 : vector<8x128xf32>
    %259 = arith.divf %257, %258 : vector<8x128xf32>
    %260 = vector.extract_strided_slice %249 {offsets = [0, 128], sizes = [8, 128], strides = [1, 1]} : vector<8x384xf32> to vector<8x128xf32>
    %261 = vector.extract_strided_slice %251 {offsets = [0, 128], sizes = [8, 128], strides = [1, 1]} : vector<8x384xf32> to vector<8x128xf32>
    %262 = arith.addf %260, %261 : vector<8x128xf32>
    %263 = arith.negf %262 : vector<8x128xf32>
    %264 = math.exp %263 : vector<8x128xf32>
    %cst_62 = arith.constant 1.000000e+00 : f32
    %265 = vector.broadcast %cst_62 : f32 to vector<8x128xf32>
    %266 = arith.addf %265, %264 : vector<8x128xf32>
    %267 = arith.divf %265, %266 : vector<8x128xf32>
    %268 = vector.extract_strided_slice %249 {offsets = [0, 256], sizes = [8, 128], strides = [1, 1]} : vector<8x384xf32> to vector<8x128xf32>
    %269 = vector.extract_strided_slice %251 {offsets = [0, 256], sizes = [8, 128], strides = [1, 1]} : vector<8x384xf32> to vector<8x128xf32>
    %270 = vector.broadcast %5 : vector<1x128xf32> to vector<8x128xf32>
    %271 = arith.addf %269, %270 : vector<8x128xf32>
    %272 = arith.mulf %259, %271 : vector<8x128xf32>
    %273 = arith.addf %268, %272 : vector<8x128xf32>
    %274 = math.tanh %273 : vector<8x128xf32>
    %cst_63 = arith.constant 1.000000e+00 : f32
    %275 = vector.broadcast %cst_63 : f32 to vector<8x128xf32>
    %276 = arith.subf %275, %267 : vector<8x128xf32>
    %277 = arith.mulf %276, %274 : vector<8x128xf32>
    %278 = arith.mulf %267, %246 : vector<8x128xf32>
    %279 = arith.addf %277, %278 : vector<8x128xf32>
    %c8_i32 = arith.constant 8 : i32
    %c0_64 = arith.constant 0 : index
    %c0_65 = arith.constant 0 : index
    %280 = vector.load %arg9[%c0_64, %c0_65] : memref<1x384xf32, #tpu.memory_space<vmem>>, vector<1x384xf32>
    %c0_66 = arith.constant 0 : index
    %c0_67 = arith.constant 0 : index
    %281 = vector.load %arg10[%c0_66, %c0_67] : memref<1x384xf32, #tpu.memory_space<vmem>>, vector<1x256xf32>
    %cst_68 = arith.constant 0.000000e+00 : f32
    %282 = vector.broadcast %cst_68 : f32 to vector<1x128xf32>
    %283 = tpu.concatenate %281, %282 in 1 : vector<1x256xf32>, vector<1x128xf32> -> vector<1x384xf32>
    %284 = arith.addf %280, %283 : vector<1x384xf32>
    %c0_69 = arith.constant 0 : index
    %c256_70 = arith.constant 256 : index
    %285 = vector.load %arg10[%c0_69, %c256_70] : memref<1x384xf32, #tpu.memory_space<vmem>>, vector<1x128xf32>
    %c0_71 = arith.constant 0 : index
    %c0_72 = arith.constant 0 : index
    %c0_73 = arith.constant 0 : index
    %286 = vector.load %arg1[%c0_71, %c0_72, %c0_73] : memref<8x8x128xbf16, #tpu.memory_space<vmem>>, vector<8x8x128xbf16>
    %287 = vector.shape_cast %286 : vector<8x8x128xbf16> to vector<64x128xbf16>
    %c0_74 = arith.constant 0 : index
    %c0_75 = arith.constant 0 : index
    %288 = vector.load %arg6[%c0_74, %c0_75] : memref<128x384xbf16, #tpu.memory_space<vmem>>, vector<128x384xbf16>
    %cst_76 = arith.constant dense<0.000000e+00> : vector<64x384xf32>
    %289 = tpu.matmul %287, %288, %cst_76 {dimension_numbers = #tpu.dot_dimension_numbers<[1], [0], [0], [1], [0, 0, 1, 1], [], []>} : vector<64x128xbf16>, vector<128x384xbf16>, vector<64x384xf32> -> vector<64x384xf32>
    %290 = arith.truncf %279 : vector<8x128xf32> to vector<8x128xbf16>
    %c0_77 = arith.constant 0 : index
    %c0_78 = arith.constant 0 : index
    %291 = vector.load %arg7[%c0_77, %c0_78] : memref<128x384xbf16, #tpu.memory_space<vmem>>, vector<128x384xbf16>
    %cst_79 = arith.constant dense<0.000000e+00> : vector<8x384xf32>
    %292 = tpu.matmul %290, %291, %cst_79 {dimension_numbers = #tpu.dot_dimension_numbers<[1], [0], [0], [1], [0, 0, 1, 1], [], []>} : vector<8x128xbf16>, vector<128x384xbf16>, vector<8x384xf32> -> vector<8x384xf32>
    %293 = vector.shape_cast %289 : vector<64x384xf32> to vector<8x8x384xf32>
    %294 = vector.shape_cast %292 : vector<8x384xf32> to vector<1x8x384xf32>
    %295 = vector.broadcast %294 : vector<1x8x384xf32> to vector<8x8x384xf32>
    %296 = arith.addf %293, %295 : vector<8x8x384xf32>
    %297 = vector.shape_cast %284 : vector<1x384xf32> to vector<1x1x384xf32>
    %298 = vector.broadcast %297 : vector<1x1x384xf32> to vector<8x8x384xf32>
    %299 = arith.addf %296, %298 : vector<8x8x384xf32>
    %c0_80 = arith.constant 0 : index
    %c0_81 = arith.constant 0 : index
    %c0_82 = arith.constant 0 : index
    %300 = vector.load %arg15[%c0_80, %c0_81, %c0_82] : memref<8x8x384xf32, #tpu.memory_space<vmem>>, vector<8x8x384xf32>
    tpu.vector_store %arg15[%c0_80, %c0_81, %c0_82], %299 {strides = array<i32>} : memref<8x8x384xf32, #tpu.memory_space<vmem>>, vector<8x8x384xf32>,
    %c0_83 = arith.constant 0 : index
    %c0_84 = arith.constant 0 : index
    %301 = vector.load %arg8[%c0_83, %c0_84] : memref<128x384xbf16, #tpu.memory_space<vmem>>, vector<128x384xbf16>
    %c0_i32_85 = arith.constant 0 : i32
    %302 = arith.index_cast %c0_i32_85 : i32 to index
    %c0_86 = arith.constant 0 : index
    %c0_87 = arith.constant 0 : index
    %303 = vector.load %arg15[%302, %c0_86, %c0_87] : memref<8x8x384xf32, #tpu.memory_space<vmem>>, vector<1x8x384xf32>
    %304 = vector.shape_cast %303 : vector<1x8x384xf32> to vector<8x384xf32>
    %305 = arith.truncf %279 : vector<8x128xf32> to vector<8x128xbf16>
    %cst_88 = arith.constant dense<0.000000e+00> : vector<8x384xf32>
    %306 = tpu.matmul %305, %301, %cst_88 {dimension_numbers = #tpu.dot_dimension_numbers<[1], [0], [0], [1], [0, 0, 1, 1], [], []>} : vector<8x128xbf16>, vector<128x384xbf16>, vector<8x384xf32> -> vector<8x384xf32>
    %307 = vector.extract_strided_slice %304 {offsets = [0, 0], sizes = [8, 128], strides = [1, 1]} : vector<8x384xf32> to vector<8x128xf32>
    %308 = vector.extract_strided_slice %306 {offsets = [0, 0], sizes = [8, 128], strides = [1, 1]} : vector<8x384xf32> to vector<8x128xf32>
    %309 = arith.addf %307, %308 : vector<8x128xf32>
    %310 = arith.negf %309 : vector<8x128xf32>
    %311 = math.exp %310 : vector<8x128xf32>
    %cst_89 = arith.constant 1.000000e+00 : f32
    %312 = vector.broadcast %cst_89 : f32 to vector<8x128xf32>
    %313 = arith.addf %312, %311 : vector<8x128xf32>
    %314 = arith.divf %312, %313 : vector<8x128xf32>
    %315 = vector.extract_strided_slice %304 {offsets = [0, 128], sizes = [8, 128], strides = [1, 1]} : vector<8x384xf32> to vector<8x128xf32>
    %316 = vector.extract_strided_slice %306 {offsets = [0, 128], sizes = [8, 128], strides = [1, 1]} : vector<8x384xf32> to vector<8x128xf32>
    %317 = arith.addf %315, %316 : vector<8x128xf32>
    %318 = arith.negf %317 : vector<8x128xf32>
    %319 = math.exp %318 : vector<8x128xf32>
    %cst_90 = arith.constant 1.000000e+00 : f32
    %320 = vector.broadcast %cst_90 : f32 to vector<8x128xf32>
    %321 = arith.addf %320, %319 : vector<8x128xf32>
    %322 = arith.divf %320, %321 : vector<8x128xf32>
    %323 = vector.extract_strided_slice %304 {offsets = [0, 256], sizes = [8, 128], strides = [1, 1]} : vector<8x384xf32> to vector<8x128xf32>
    %324 = vector.extract_strided_slice %306 {offsets = [0, 256], sizes = [8, 128], strides = [1, 1]} : vector<8x384xf32> to vector<8x128xf32>
    %325 = vector.broadcast %285 : vector<1x128xf32> to vector<8x128xf32>
    %326 = arith.addf %324, %325 : vector<8x128xf32>
    %327 = arith.mulf %314, %326 : vector<8x128xf32>
    %328 = arith.addf %323, %327 : vector<8x128xf32>
    %329 = math.tanh %328 : vector<8x128xf32>
    %cst_91 = arith.constant 1.000000e+00 : f32
    %330 = vector.broadcast %cst_91 : f32 to vector<8x128xf32>
    %331 = arith.subf %330, %322 : vector<8x128xf32>
    %332 = arith.mulf %331, %329 : vector<8x128xf32>
    %333 = arith.mulf %322, %279 : vector<8x128xf32>
    %334 = arith.addf %332, %333 : vector<8x128xf32>
    %335 = arith.index_cast %c0_i32_85 : i32 to index
    %c0_92 = arith.constant 0 : index
    %c0_93 = arith.constant 0 : index
    %336 = vector.load %arg16[%335, %c0_92, %c0_93] : memref<8x8x128xf32, #tpu.memory_space<vmem>>, vector<1x8x128xf32>
    %337 = vector.shape_cast %336 : vector<1x8x128xf32> to vector<8x128xf32>
    %338 = vector.shape_cast %334 : vector<8x128xf32> to vector<1x8x128xf32>
    tpu.vector_store %arg16[%335, %c0_92, %c0_93], %338 {strides = array<i32>} : memref<8x8x128xf32, #tpu.memory_space<vmem>>, vector<1x8x128xf32>,
    %c1_i32_94 = arith.constant 1 : i32
    %339 = arith.index_cast %c1_i32_94 : i32 to index
    %c0_95 = arith.constant 0 : index
    %c0_96 = arith.constant 0 : index
    %340 = vector.load %arg15[%339, %c0_95, %c0_96] : memref<8x8x384xf32, #tpu.memory_space<vmem>>, vector<1x8x384xf32>
    %341 = vector.shape_cast %340 : vector<1x8x384xf32> to vector<8x384xf32>
    %342 = arith.truncf %334 : vector<8x128xf32> to vector<8x128xbf16>
    %cst_97 = arith.constant dense<0.000000e+00> : vector<8x384xf32>
    %343 = tpu.matmul %342, %301, %cst_97 {dimension_numbers = #tpu.dot_dimension_numbers<[1], [0], [0], [1], [0, 0, 1, 1], [], []>} : vector<8x128xbf16>, vector<128x384xbf16>, vector<8x384xf32> -> vector<8x384xf32>
    %344 = vector.extract_strided_slice %341 {offsets = [0, 0], sizes = [8, 128], strides = [1, 1]} : vector<8x384xf32> to vector<8x128xf32>
    %345 = vector.extract_strided_slice %343 {offsets = [0, 0], sizes = [8, 128], strides = [1, 1]} : vector<8x384xf32> to vector<8x128xf32>
    %346 = arith.addf %344, %345 : vector<8x128xf32>
    %347 = arith.negf %346 : vector<8x128xf32>
    %348 = math.exp %347 : vector<8x128xf32>
    %cst_98 = arith.constant 1.000000e+00 : f32
    %349 = vector.broadcast %cst_98 : f32 to vector<8x128xf32>
    %350 = arith.addf %349, %348 : vector<8x128xf32>
    %351 = arith.divf %349, %350 : vector<8x128xf32>
    %352 = vector.extract_strided_slice %341 {offsets = [0, 128], sizes = [8, 128], strides = [1, 1]} : vector<8x384xf32> to vector<8x128xf32>
    %353 = vector.extract_strided_slice %343 {offsets = [0, 128], sizes = [8, 128], strides = [1, 1]} : vector<8x384xf32> to vector<8x128xf32>
    %354 = arith.addf %352, %353 : vector<8x128xf32>
    %355 = arith.negf %354 : vector<8x128xf32>
    %356 = math.exp %355 : vector<8x128xf32>
    %cst_99 = arith.constant 1.000000e+00 : f32
    %357 = vector.broadcast %cst_99 : f32 to vector<8x128xf32>
    %358 = arith.addf %357, %356 : vector<8x128xf32>
    %359 = arith.divf %357, %358 : vector<8x128xf32>
    %360 = vector.extract_strided_slice %341 {offsets = [0, 256], sizes = [8, 128], strides = [1, 1]} : vector<8x384xf32> to vector<8x128xf32>
    %361 = vector.extract_strided_slice %343 {offsets = [0, 256], sizes = [8, 128], strides = [1, 1]} : vector<8x384xf32> to vector<8x128xf32>
    %362 = vector.broadcast %285 : vector<1x128xf32> to vector<8x128xf32>
    %363 = arith.addf %361, %362 : vector<8x128xf32>
    %364 = arith.mulf %351, %363 : vector<8x128xf32>
    %365 = arith.addf %360, %364 : vector<8x128xf32>
    %366 = math.tanh %365 : vector<8x128xf32>
    %cst_100 = arith.constant 1.000000e+00 : f32
    %367 = vector.broadcast %cst_100 : f32 to vector<8x128xf32>
    %368 = arith.subf %367, %359 : vector<8x128xf32>
    %369 = arith.mulf %368, %366 : vector<8x128xf32>
    %370 = arith.mulf %359, %334 : vector<8x128xf32>
    %371 = arith.addf %369, %370 : vector<8x128xf32>
    %372 = arith.index_cast %c1_i32_94 : i32 to index
    %c0_101 = arith.constant 0 : index
    %c0_102 = arith.constant 0 : index
    %373 = vector.load %arg16[%372, %c0_101, %c0_102] : memref<8x8x128xf32, #tpu.memory_space<vmem>>, vector<1x8x128xf32>
    %374 = vector.shape_cast %373 : vector<1x8x128xf32> to vector<8x128xf32>
    %375 = vector.shape_cast %371 : vector<8x128xf32> to vector<1x8x128xf32>
    tpu.vector_store %arg16[%372, %c0_101, %c0_102], %375 {strides = array<i32>} : memref<8x8x128xf32, #tpu.memory_space<vmem>>, vector<1x8x128xf32>,
    %c2_i32_103 = arith.constant 2 : i32
    %376 = arith.index_cast %c2_i32_103 : i32 to index
    %c0_104 = arith.constant 0 : index
    %c0_105 = arith.constant 0 : index
    %377 = vector.load %arg15[%376, %c0_104, %c0_105] : memref<8x8x384xf32, #tpu.memory_space<vmem>>, vector<1x8x384xf32>
    %378 = vector.shape_cast %377 : vector<1x8x384xf32> to vector<8x384xf32>
    %379 = arith.truncf %371 : vector<8x128xf32> to vector<8x128xbf16>
    %cst_106 = arith.constant dense<0.000000e+00> : vector<8x384xf32>
    %380 = tpu.matmul %379, %301, %cst_106 {dimension_numbers = #tpu.dot_dimension_numbers<[1], [0], [0], [1], [0, 0, 1, 1], [], []>} : vector<8x128xbf16>, vector<128x384xbf16>, vector<8x384xf32> -> vector<8x384xf32>
    %381 = vector.extract_strided_slice %378 {offsets = [0, 0], sizes = [8, 128], strides = [1, 1]} : vector<8x384xf32> to vector<8x128xf32>
    %382 = vector.extract_strided_slice %380 {offsets = [0, 0], sizes = [8, 128], strides = [1, 1]} : vector<8x384xf32> to vector<8x128xf32>
    %383 = arith.addf %381, %382 : vector<8x128xf32>
    %384 = arith.negf %383 : vector<8x128xf32>
    %385 = math.exp %384 : vector<8x128xf32>
    %cst_107 = arith.constant 1.000000e+00 : f32
    %386 = vector.broadcast %cst_107 : f32 to vector<8x128xf32>
    %387 = arith.addf %386, %385 : vector<8x128xf32>
    %388 = arith.divf %386, %387 : vector<8x128xf32>
    %389 = vector.extract_strided_slice %378 {offsets = [0, 128], sizes = [8, 128], strides = [1, 1]} : vector<8x384xf32> to vector<8x128xf32>
    %390 = vector.extract_strided_slice %380 {offsets = [0, 128], sizes = [8, 128], strides = [1, 1]} : vector<8x384xf32> to vector<8x128xf32>
    %391 = arith.addf %389, %390 : vector<8x128xf32>
    %392 = arith.negf %391 : vector<8x128xf32>
    %393 = math.exp %392 : vector<8x128xf32>
    %cst_108 = arith.constant 1.000000e+00 : f32
    %394 = vector.broadcast %cst_108 : f32 to vector<8x128xf32>
    %395 = arith.addf %394, %393 : vector<8x128xf32>
    %396 = arith.divf %394, %395 : vector<8x128xf32>
    %397 = vector.extract_strided_slice %378 {offsets = [0, 256], sizes = [8, 128], strides = [1, 1]} : vector<8x384xf32> to vector<8x128xf32>
    %398 = vector.extract_strided_slice %380 {offsets = [0, 256], sizes = [8, 128], strides = [1, 1]} : vector<8x384xf32> to vector<8x128xf32>
    %399 = vector.broadcast %285 : vector<1x128xf32> to vector<8x128xf32>
    %400 = arith.addf %398, %399 : vector<8x128xf32>
    %401 = arith.mulf %388, %400 : vector<8x128xf32>
    %402 = arith.addf %397, %401 : vector<8x128xf32>
    %403 = math.tanh %402 : vector<8x128xf32>
    %cst_109 = arith.constant 1.000000e+00 : f32
    %404 = vector.broadcast %cst_109 : f32 to vector<8x128xf32>
    %405 = arith.subf %404, %396 : vector<8x128xf32>
    %406 = arith.mulf %405, %403 : vector<8x128xf32>
    %407 = arith.mulf %396, %371 : vector<8x128xf32>
    %408 = arith.addf %406, %407 : vector<8x128xf32>
    %409 = arith.index_cast %c2_i32_103 : i32 to index
    %c0_110 = arith.constant 0 : index
    %c0_111 = arith.constant 0 : index
    %410 = vector.load %arg16[%409, %c0_110, %c0_111] : memref<8x8x128xf32, #tpu.memory_space<vmem>>, vector<1x8x128xf32>
    %411 = vector.shape_cast %410 : vector<1x8x128xf32> to vector<8x128xf32>
    %412 = vector.shape_cast %408 : vector<8x128xf32> to vector<1x8x128xf32>
    tpu.vector_store %arg16[%409, %c0_110, %c0_111], %412 {strides = array<i32>} : memref<8x8x128xf32, #tpu.memory_space<vmem>>, vector<1x8x128xf32>,
    %c3_i32_112 = arith.constant 3 : i32
    %413 = arith.index_cast %c3_i32_112 : i32 to index
    %c0_113 = arith.constant 0 : index
    %c0_114 = arith.constant 0 : index
    %414 = vector.load %arg15[%413, %c0_113, %c0_114] : memref<8x8x384xf32, #tpu.memory_space<vmem>>, vector<1x8x384xf32>
    %415 = vector.shape_cast %414 : vector<1x8x384xf32> to vector<8x384xf32>
    %416 = arith.truncf %408 : vector<8x128xf32> to vector<8x128xbf16>
    %cst_115 = arith.constant dense<0.000000e+00> : vector<8x384xf32>
    %417 = tpu.matmul %416, %301, %cst_115 {dimension_numbers = #tpu.dot_dimension_numbers<[1], [0], [0], [1], [0, 0, 1, 1], [], []>} : vector<8x128xbf16>, vector<128x384xbf16>, vector<8x384xf32> -> vector<8x384xf32>
    %418 = vector.extract_strided_slice %415 {offsets = [0, 0], sizes = [8, 128], strides = [1, 1]} : vector<8x384xf32> to vector<8x128xf32>
    %419 = vector.extract_strided_slice %417 {offsets = [0, 0], sizes = [8, 128], strides = [1, 1]} : vector<8x384xf32> to vector<8x128xf32>
    %420 = arith.addf %418, %419 : vector<8x128xf32>
    %421 = arith.negf %420 : vector<8x128xf32>
    %422 = math.exp %421 : vector<8x128xf32>
    %cst_116 = arith.constant 1.000000e+00 : f32
    %423 = vector.broadcast %cst_116 : f32 to vector<8x128xf32>
    %424 = arith.addf %423, %422 : vector<8x128xf32>
    %425 = arith.divf %423, %424 : vector<8x128xf32>
    %426 = vector.extract_strided_slice %415 {offsets = [0, 128], sizes = [8, 128], strides = [1, 1]} : vector<8x384xf32> to vector<8x128xf32>
    %427 = vector.extract_strided_slice %417 {offsets = [0, 128], sizes = [8, 128], strides = [1, 1]} : vector<8x384xf32> to vector<8x128xf32>
    %428 = arith.addf %426, %427 : vector<8x128xf32>
    %429 = arith.negf %428 : vector<8x128xf32>
    %430 = math.exp %429 : vector<8x128xf32>
    %cst_117 = arith.constant 1.000000e+00 : f32
    %431 = vector.broadcast %cst_117 : f32 to vector<8x128xf32>
    %432 = arith.addf %431, %430 : vector<8x128xf32>
    %433 = arith.divf %431, %432 : vector<8x128xf32>
    %434 = vector.extract_strided_slice %415 {offsets = [0, 256], sizes = [8, 128], strides = [1, 1]} : vector<8x384xf32> to vector<8x128xf32>
    %435 = vector.extract_strided_slice %417 {offsets = [0, 256], sizes = [8, 128], strides = [1, 1]} : vector<8x384xf32> to vector<8x128xf32>
    %436 = vector.broadcast %285 : vector<1x128xf32> to vector<8x128xf32>
    %437 = arith.addf %435, %436 : vector<8x128xf32>
    %438 = arith.mulf %425, %437 : vector<8x128xf32>
    %439 = arith.addf %434, %438 : vector<8x128xf32>
    %440 = math.tanh %439 : vector<8x128xf32>
    %cst_118 = arith.constant 1.000000e+00 : f32
    %441 = vector.broadcast %cst_118 : f32 to vector<8x128xf32>
    %442 = arith.subf %441, %433 : vector<8x128xf32>
    %443 = arith.mulf %442, %440 : vector<8x128xf32>
    %444 = arith.mulf %433, %408 : vector<8x128xf32>
    %445 = arith.addf %443, %444 : vector<8x128xf32>
    %446 = arith.index_cast %c3_i32_112 : i32 to index
    %c0_119 = arith.constant 0 : index
    %c0_120 = arith.constant 0 : index
    %447 = vector.load %arg16[%446, %c0_119, %c0_120] : memref<8x8x128xf32, #tpu.memory_space<vmem>>, vector<1x8x128xf32>
    %448 = vector.shape_cast %447 : vector<1x8x128xf32> to vector<8x128xf32>
    %449 = vector.shape_cast %445 : vector<8x128xf32> to vector<1x8x128xf32>
    tpu.vector_store %arg16[%446, %c0_119, %c0_120], %449 {strides = array<i32>} : memref<8x8x128xf32, #tpu.memory_space<vmem>>, vector<1x8x128xf32>,
    %c4_i32_121 = arith.constant 4 : i32
    %450 = arith.index_cast %c4_i32_121 : i32 to index
    %c0_122 = arith.constant 0 : index
    %c0_123 = arith.constant 0 : index
    %451 = vector.load %arg15[%450, %c0_122, %c0_123] : memref<8x8x384xf32, #tpu.memory_space<vmem>>, vector<1x8x384xf32>
    %452 = vector.shape_cast %451 : vector<1x8x384xf32> to vector<8x384xf32>
    %453 = arith.truncf %445 : vector<8x128xf32> to vector<8x128xbf16>
    %cst_124 = arith.constant dense<0.000000e+00> : vector<8x384xf32>
    %454 = tpu.matmul %453, %301, %cst_124 {dimension_numbers = #tpu.dot_dimension_numbers<[1], [0], [0], [1], [0, 0, 1, 1], [], []>} : vector<8x128xbf16>, vector<128x384xbf16>, vector<8x384xf32> -> vector<8x384xf32>
    %455 = vector.extract_strided_slice %452 {offsets = [0, 0], sizes = [8, 128], strides = [1, 1]} : vector<8x384xf32> to vector<8x128xf32>
    %456 = vector.extract_strided_slice %454 {offsets = [0, 0], sizes = [8, 128], strides = [1, 1]} : vector<8x384xf32> to vector<8x128xf32>
    %457 = arith.addf %455, %456 : vector<8x128xf32>
    %458 = arith.negf %457 : vector<8x128xf32>
    %459 = math.exp %458 : vector<8x128xf32>
    %cst_125 = arith.constant 1.000000e+00 : f32
    %460 = vector.broadcast %cst_125 : f32 to vector<8x128xf32>
    %461 = arith.addf %460, %459 : vector<8x128xf32>
    %462 = arith.divf %460, %461 : vector<8x128xf32>
    %463 = vector.extract_strided_slice %452 {offsets = [0, 128], sizes = [8, 128], strides = [1, 1]} : vector<8x384xf32> to vector<8x128xf32>
    %464 = vector.extract_strided_slice %454 {offsets = [0, 128], sizes = [8, 128], strides = [1, 1]} : vector<8x384xf32> to vector<8x128xf32>
    %465 = arith.addf %463, %464 : vector<8x128xf32>
    %466 = arith.negf %465 : vector<8x128xf32>
    %467 = math.exp %466 : vector<8x128xf32>
    %cst_126 = arith.constant 1.000000e+00 : f32
    %468 = vector.broadcast %cst_126 : f32 to vector<8x128xf32>
    %469 = arith.addf %468, %467 : vector<8x128xf32>
    %470 = arith.divf %468, %469 : vector<8x128xf32>
    %471 = vector.extract_strided_slice %452 {offsets = [0, 256], sizes = [8, 128], strides = [1, 1]} : vector<8x384xf32> to vector<8x128xf32>
    %472 = vector.extract_strided_slice %454 {offsets = [0, 256], sizes = [8, 128], strides = [1, 1]} : vector<8x384xf32> to vector<8x128xf32>
    %473 = vector.broadcast %285 : vector<1x128xf32> to vector<8x128xf32>
    %474 = arith.addf %472, %473 : vector<8x128xf32>
    %475 = arith.mulf %462, %474 : vector<8x128xf32>
    %476 = arith.addf %471, %475 : vector<8x128xf32>
    %477 = math.tanh %476 : vector<8x128xf32>
    %cst_127 = arith.constant 1.000000e+00 : f32
    %478 = vector.broadcast %cst_127 : f32 to vector<8x128xf32>
    %479 = arith.subf %478, %470 : vector<8x128xf32>
    %480 = arith.mulf %479, %477 : vector<8x128xf32>
    %481 = arith.mulf %470, %445 : vector<8x128xf32>
    %482 = arith.addf %480, %481 : vector<8x128xf32>
    %483 = arith.index_cast %c4_i32_121 : i32 to index
    %c0_128 = arith.constant 0 : index
    %c0_129 = arith.constant 0 : index
    %484 = vector.load %arg16[%483, %c0_128, %c0_129] : memref<8x8x128xf32, #tpu.memory_space<vmem>>, vector<1x8x128xf32>
    %485 = vector.shape_cast %484 : vector<1x8x128xf32> to vector<8x128xf32>
    %486 = vector.shape_cast %482 : vector<8x128xf32> to vector<1x8x128xf32>
    tpu.vector_store %arg16[%483, %c0_128, %c0_129], %486 {strides = array<i32>} : memref<8x8x128xf32, #tpu.memory_space<vmem>>, vector<1x8x128xf32>,
    %c5_i32_130 = arith.constant 5 : i32
    %487 = arith.index_cast %c5_i32_130 : i32 to index
    %c0_131 = arith.constant 0 : index
    %c0_132 = arith.constant 0 : index
    %488 = vector.load %arg15[%487, %c0_131, %c0_132] : memref<8x8x384xf32, #tpu.memory_space<vmem>>, vector<1x8x384xf32>
    %489 = vector.shape_cast %488 : vector<1x8x384xf32> to vector<8x384xf32>
    %490 = arith.truncf %482 : vector<8x128xf32> to vector<8x128xbf16>
    %cst_133 = arith.constant dense<0.000000e+00> : vector<8x384xf32>
    %491 = tpu.matmul %490, %301, %cst_133 {dimension_numbers = #tpu.dot_dimension_numbers<[1], [0], [0], [1], [0, 0, 1, 1], [], []>} : vector<8x128xbf16>, vector<128x384xbf16>, vector<8x384xf32> -> vector<8x384xf32>
    %492 = vector.extract_strided_slice %489 {offsets = [0, 0], sizes = [8, 128], strides = [1, 1]} : vector<8x384xf32> to vector<8x128xf32>
    %493 = vector.extract_strided_slice %491 {offsets = [0, 0], sizes = [8, 128], strides = [1, 1]} : vector<8x384xf32> to vector<8x128xf32>
    %494 = arith.addf %492, %493 : vector<8x128xf32>
    %495 = arith.negf %494 : vector<8x128xf32>
    %496 = math.exp %495 : vector<8x128xf32>
    %cst_134 = arith.constant 1.000000e+00 : f32
    %497 = vector.broadcast %cst_134 : f32 to vector<8x128xf32>
    %498 = arith.addf %497, %496 : vector<8x128xf32>
    %499 = arith.divf %497, %498 : vector<8x128xf32>
    %500 = vector.extract_strided_slice %489 {offsets = [0, 128], sizes = [8, 128], strides = [1, 1]} : vector<8x384xf32> to vector<8x128xf32>
    %501 = vector.extract_strided_slice %491 {offsets = [0, 128], sizes = [8, 128], strides = [1, 1]} : vector<8x384xf32> to vector<8x128xf32>
    %502 = arith.addf %500, %501 : vector<8x128xf32>
    %503 = arith.negf %502 : vector<8x128xf32>
    %504 = math.exp %503 : vector<8x128xf32>
    %cst_135 = arith.constant 1.000000e+00 : f32
    %505 = vector.broadcast %cst_135 : f32 to vector<8x128xf32>
    %506 = arith.addf %505, %504 : vector<8x128xf32>
    %507 = arith.divf %505, %506 : vector<8x128xf32>
    %508 = vector.extract_strided_slice %489 {offsets = [0, 256], sizes = [8, 128], strides = [1, 1]} : vector<8x384xf32> to vector<8x128xf32>
    %509 = vector.extract_strided_slice %491 {offsets = [0, 256], sizes = [8, 128], strides = [1, 1]} : vector<8x384xf32> to vector<8x128xf32>
    %510 = vector.broadcast %285 : vector<1x128xf32> to vector<8x128xf32>
    %511 = arith.addf %509, %510 : vector<8x128xf32>
    %512 = arith.mulf %499, %511 : vector<8x128xf32>
    %513 = arith.addf %508, %512 : vector<8x128xf32>
    %514 = math.tanh %513 : vector<8x128xf32>
    %cst_136 = arith.constant 1.000000e+00 : f32
    %515 = vector.broadcast %cst_136 : f32 to vector<8x128xf32>
    %516 = arith.subf %515, %507 : vector<8x128xf32>
    %517 = arith.mulf %516, %514 : vector<8x128xf32>
    %518 = arith.mulf %507, %482 : vector<8x128xf32>
    %519 = arith.addf %517, %518 : vector<8x128xf32>
    %520 = arith.index_cast %c5_i32_130 : i32 to index
    %c0_137 = arith.constant 0 : index
    %c0_138 = arith.constant 0 : index
    %521 = vector.load %arg16[%520, %c0_137, %c0_138] : memref<8x8x128xf32, #tpu.memory_space<vmem>>, vector<1x8x128xf32>
    %522 = vector.shape_cast %521 : vector<1x8x128xf32> to vector<8x128xf32>
    %523 = vector.shape_cast %519 : vector<8x128xf32> to vector<1x8x128xf32>
    tpu.vector_store %arg16[%520, %c0_137, %c0_138], %523 {strides = array<i32>} : memref<8x8x128xf32, #tpu.memory_space<vmem>>, vector<1x8x128xf32>,
    %c6_i32_139 = arith.constant 6 : i32
    %524 = arith.index_cast %c6_i32_139 : i32 to index
    %c0_140 = arith.constant 0 : index
    %c0_141 = arith.constant 0 : index
    %525 = vector.load %arg15[%524, %c0_140, %c0_141] : memref<8x8x384xf32, #tpu.memory_space<vmem>>, vector<1x8x384xf32>
    %526 = vector.shape_cast %525 : vector<1x8x384xf32> to vector<8x384xf32>
    %527 = arith.truncf %519 : vector<8x128xf32> to vector<8x128xbf16>
    %cst_142 = arith.constant dense<0.000000e+00> : vector<8x384xf32>
    %528 = tpu.matmul %527, %301, %cst_142 {dimension_numbers = #tpu.dot_dimension_numbers<[1], [0], [0], [1], [0, 0, 1, 1], [], []>} : vector<8x128xbf16>, vector<128x384xbf16>, vector<8x384xf32> -> vector<8x384xf32>
    %529 = vector.extract_strided_slice %526 {offsets = [0, 0], sizes = [8, 128], strides = [1, 1]} : vector<8x384xf32> to vector<8x128xf32>
    %530 = vector.extract_strided_slice %528 {offsets = [0, 0], sizes = [8, 128], strides = [1, 1]} : vector<8x384xf32> to vector<8x128xf32>
    %531 = arith.addf %529, %530 : vector<8x128xf32>
    %532 = arith.negf %531 : vector<8x128xf32>
    %533 = math.exp %532 : vector<8x128xf32>
    %cst_143 = arith.constant 1.000000e+00 : f32
    %534 = vector.broadcast %cst_143 : f32 to vector<8x128xf32>
    %535 = arith.addf %534, %533 : vector<8x128xf32>
    %536 = arith.divf %534, %535 : vector<8x128xf32>
    %537 = vector.extract_strided_slice %526 {offsets = [0, 128], sizes = [8, 128], strides = [1, 1]} : vector<8x384xf32> to vector<8x128xf32>
    %538 = vector.extract_strided_slice %528 {offsets = [0, 128], sizes = [8, 128], strides = [1, 1]} : vector<8x384xf32> to vector<8x128xf32>
    %539 = arith.addf %537, %538 : vector<8x128xf32>
    %540 = arith.negf %539 : vector<8x128xf32>
    %541 = math.exp %540 : vector<8x128xf32>
    %cst_144 = arith.constant 1.000000e+00 : f32
    %542 = vector.broadcast %cst_144 : f32 to vector<8x128xf32>
    %543 = arith.addf %542, %541 : vector<8x128xf32>
    %544 = arith.divf %542, %543 : vector<8x128xf32>
    %545 = vector.extract_strided_slice %526 {offsets = [0, 256], sizes = [8, 128], strides = [1, 1]} : vector<8x384xf32> to vector<8x128xf32>
    %546 = vector.extract_strided_slice %528 {offsets = [0, 256], sizes = [8, 128], strides = [1, 1]} : vector<8x384xf32> to vector<8x128xf32>
    %547 = vector.broadcast %285 : vector<1x128xf32> to vector<8x128xf32>
    %548 = arith.addf %546, %547 : vector<8x128xf32>
    %549 = arith.mulf %536, %548 : vector<8x128xf32>
    %550 = arith.addf %545, %549 : vector<8x128xf32>
    %551 = math.tanh %550 : vector<8x128xf32>
    %cst_145 = arith.constant 1.000000e+00 : f32
    %552 = vector.broadcast %cst_145 : f32 to vector<8x128xf32>
    %553 = arith.subf %552, %544 : vector<8x128xf32>
    %554 = arith.mulf %553, %551 : vector<8x128xf32>
    %555 = arith.mulf %544, %519 : vector<8x128xf32>
    %556 = arith.addf %554, %555 : vector<8x128xf32>
    %557 = arith.index_cast %c6_i32_139 : i32 to index
    %c0_146 = arith.constant 0 : index
    %c0_147 = arith.constant 0 : index
    %558 = vector.load %arg16[%557, %c0_146, %c0_147] : memref<8x8x128xf32, #tpu.memory_space<vmem>>, vector<1x8x128xf32>
    %559 = vector.shape_cast %558 : vector<1x8x128xf32> to vector<8x128xf32>
    %560 = vector.shape_cast %556 : vector<8x128xf32> to vector<1x8x128xf32>
    tpu.vector_store %arg16[%557, %c0_146, %c0_147], %560 {strides = array<i32>} : memref<8x8x128xf32, #tpu.memory_space<vmem>>, vector<1x8x128xf32>,
    %c7_i32_148 = arith.constant 7 : i32
    %561 = arith.index_cast %c7_i32_148 : i32 to index
    %c0_149 = arith.constant 0 : index
    %c0_150 = arith.constant 0 : index
    %562 = vector.load %arg15[%561, %c0_149, %c0_150] : memref<8x8x384xf32, #tpu.memory_space<vmem>>, vector<1x8x384xf32>
    %563 = vector.shape_cast %562 : vector<1x8x384xf32> to vector<8x384xf32>
    %564 = arith.truncf %556 : vector<8x128xf32> to vector<8x128xbf16>
    %cst_151 = arith.constant dense<0.000000e+00> : vector<8x384xf32>
    %565 = tpu.matmul %564, %301, %cst_151 {dimension_numbers = #tpu.dot_dimension_numbers<[1], [0], [0], [1], [0, 0, 1, 1], [], []>} : vector<8x128xbf16>, vector<128x384xbf16>, vector<8x384xf32> -> vector<8x384xf32>
    %566 = vector.extract_strided_slice %563 {offsets = [0, 0], sizes = [8, 128], strides = [1, 1]} : vector<8x384xf32> to vector<8x128xf32>
    %567 = vector.extract_strided_slice %565 {offsets = [0, 0], sizes = [8, 128], strides = [1, 1]} : vector<8x384xf32> to vector<8x128xf32>
    %568 = arith.addf %566, %567 : vector<8x128xf32>
    %569 = arith.negf %568 : vector<8x128xf32>
    %570 = math.exp %569 : vector<8x128xf32>
    %cst_152 = arith.constant 1.000000e+00 : f32
    %571 = vector.broadcast %cst_152 : f32 to vector<8x128xf32>
    %572 = arith.addf %571, %570 : vector<8x128xf32>
    %573 = arith.divf %571, %572 : vector<8x128xf32>
    %574 = vector.extract_strided_slice %563 {offsets = [0, 128], sizes = [8, 128], strides = [1, 1]} : vector<8x384xf32> to vector<8x128xf32>
    %575 = vector.extract_strided_slice %565 {offsets = [0, 128], sizes = [8, 128], strides = [1, 1]} : vector<8x384xf32> to vector<8x128xf32>
    %576 = arith.addf %574, %575 : vector<8x128xf32>
    %577 = arith.negf %576 : vector<8x128xf32>
    %578 = math.exp %577 : vector<8x128xf32>
    %cst_153 = arith.constant 1.000000e+00 : f32
    %579 = vector.broadcast %cst_153 : f32 to vector<8x128xf32>
    %580 = arith.addf %579, %578 : vector<8x128xf32>
    %581 = arith.divf %579, %580 : vector<8x128xf32>
    %582 = vector.extract_strided_slice %563 {offsets = [0, 256], sizes = [8, 128], strides = [1, 1]} : vector<8x384xf32> to vector<8x128xf32>
    %583 = vector.extract_strided_slice %565 {offsets = [0, 256], sizes = [8, 128], strides = [1, 1]} : vector<8x384xf32> to vector<8x128xf32>
    %584 = vector.broadcast %285 : vector<1x128xf32> to vector<8x128xf32>
    %585 = arith.addf %583, %584 : vector<8x128xf32>
    %586 = arith.mulf %573, %585 : vector<8x128xf32>
    %587 = arith.addf %582, %586 : vector<8x128xf32>
    %588 = math.tanh %587 : vector<8x128xf32>
    %cst_154 = arith.constant 1.000000e+00 : f32
    %589 = vector.broadcast %cst_154 : f32 to vector<8x128xf32>
    %590 = arith.subf %589, %581 : vector<8x128xf32>
    %591 = arith.mulf %590, %588 : vector<8x128xf32>
    %592 = arith.mulf %581, %556 : vector<8x128xf32>
    %593 = arith.addf %591, %592 : vector<8x128xf32>
    %594 = arith.index_cast %c7_i32_148 : i32 to index
    %c0_155 = arith.constant 0 : index
    %c0_156 = arith.constant 0 : index
    %595 = vector.load %arg16[%594, %c0_155, %c0_156] : memref<8x8x128xf32, #tpu.memory_space<vmem>>, vector<1x8x128xf32>
    %596 = vector.shape_cast %595 : vector<1x8x128xf32> to vector<8x128xf32>
    %597 = vector.shape_cast %593 : vector<8x128xf32> to vector<1x8x128xf32>
    tpu.vector_store %arg16[%594, %c0_155, %c0_156], %597 {strides = array<i32>} : memref<8x8x128xf32, #tpu.memory_space<vmem>>, vector<1x8x128xf32>,
    %c8_i32_157 = arith.constant 8 : i32
    %c0_158 = arith.constant 0 : index
    %c0_159 = arith.constant 0 : index
    %598 = vector.load %arg14[%c0_158, %c0_159] : memref<8x128xf32, #tpu.memory_space<vmem>>, vector<8x128xf32>
    tpu.vector_store %arg14[%c0_158, %c0_159], %593 {strides = array<i32>} : memref<8x128xf32, #tpu.memory_space<vmem>>, vector<8x128xf32>,
    %c0_160 = arith.constant 0 : index
    %c0_161 = arith.constant 0 : index
    %c0_162 = arith.constant 0 : index
    %599 = vector.load %arg16[%c0_160, %c0_161, %c0_162] : memref<8x8x128xf32, #tpu.memory_space<vmem>>, vector<8x8x128xf32>
    %600 = tpu.transpose %599, [1, 0, 2] : vector<8x8x128xf32> -> vector<8x8x128xf32>
    %601 = vector.shape_cast %600 : vector<8x8x128xf32> to vector<64x128xf32>
    %602 = arith.truncf %601 : vector<64x128xf32> to vector<64x128xbf16>
    %c0_163 = arith.constant 0 : index
    %c0_164 = arith.constant 0 : index
    %603 = vector.load %arg11[%c0_163, %c0_164] : memref<128x128xbf16, #tpu.memory_space<vmem>>, vector<128x128xbf16>
    %cst_165 = arith.constant dense<0.000000e+00> : vector<64x128xf32>
    %604 = tpu.matmul %602, %603, %cst_165 {dimension_numbers = #tpu.dot_dimension_numbers<[1], [0], [0], [1], [0, 0, 1, 1], [], []>} : vector<64x128xbf16>, vector<128x128xbf16>, vector<64x128xf32> -> vector<64x128xf32>
    %c0_166 = arith.constant 0 : index
    %c0_167 = arith.constant 0 : index
    %605 = vector.load %arg12[%c0_166, %c0_167] : memref<1x128xf32, #tpu.memory_space<vmem>>, vector<1x128xf32>
    %606 = vector.broadcast %605 : vector<1x128xf32> to vector<64x128xf32>
    %607 = arith.addf %604, %606 : vector<64x128xf32>
    %608 = vector.shape_cast %607 : vector<64x128xf32> to vector<8x8x128xf32>
    %c0_168 = arith.constant 0 : index
    %c0_169 = arith.constant 0 : index
    %c0_170 = arith.constant 0 : index
    %609 = vector.load %arg13[%c0_168, %c0_169, %c0_170] : memref<8x8x128xf32, #tpu.memory_space<vmem>>, vector<8x8x128xf32>
    tpu.vector_store %arg13[%c0_168, %c0_169, %c0_170], %608 {strides = array<i32>} : memref<8x8x128xf32, #tpu.memory_space<vmem>>, vector<8x8x128xf32>,
    return
  }
}

</mosaic_0001>

<llo_original>
// kernel: encoder_decoder_forward.1
$region0: #{encoder_decoder_forward.1}
  #allocation0 [shape = 'u32[]', space=smem, size = 0x4, offset = 0x4, fixed_abs, tag = 'smem constant byte address 0x4 - core index']
  #allocation1 [shape = 'u32[144,128]{1,0:T(1,128)}', space=vmem, size = 0x12000, scoped, tag = 'internal scratch']
  #allocation2 [shape = 'f32[8,8,384]{2,1,0:T(8,128)}', space=vmem, size = 0x18000, scoped, tag = 'scratch operand']
  #allocation3 [shape = 'f32[8,8,128]{2,1,0:T(8,128)}', space=vmem, size = 0x8000, scoped, tag = 'scratch operand']
  %s0 = inlined_call_operand.vmem [shape: bf16[8,8,128], index: 0, kind: input, shape index: {}]
  %s1 = inlined_call_operand.vmem [shape: bf16[8,8,128], index: 1, kind: input, shape index: {}]
  %s2 = inlined_call_operand.vmem [shape: bf16[128,384], index: 2, kind: input, shape index: {}]
  %s3 = inlined_call_operand.vmem [shape: bf16[128,384], index: 3, kind: input, shape index: {}]
  %s4 = inlined_call_operand.vmem [shape: f32[1,384], index: 4, kind: input, shape index: {}]
  %s5 = inlined_call_operand.vmem [shape: f32[1,384], index: 5, kind: input, shape index: {}]
  %s6 = inlined_call_operand.vmem [shape: bf16[128,384], index: 6, kind: input, shape index: {}]
  %s7 = inlined_call_operand.vmem [shape: bf16[128,384], index: 7, kind: input, shape index: {}]
  %s8 = inlined_call_operand.vmem [shape: bf16[128,384], index: 8, kind: input, shape index: {}]
  %s9 = inlined_call_operand.vmem [shape: f32[1,384], index: 9, kind: input, shape index: {}]
  %s10 = inlined_call_operand.vmem [shape: f32[1,384], index: 10, kind: input, shape index: {}]
  %s11 = inlined_call_operand.vmem [shape: bf16[128,128], index: 11, kind: input, shape index: {}]
  %s12 = inlined_call_operand.vmem [shape: f32[1,128], index: 12, kind: input, shape index: {}]
  %s13 = inlined_call_operand.hbm [shape: f32[8,8,128], index: 13, kind: output, shape index: {0}]
  %s14 = inlined_call_operand.hbm [shape: f32[8,128], index: 14, kind: output, shape index: {1}]
  %15 = xla_tuple %s13, %s14
  %s16 = sld [smem:[#allocation0]]
  $region70: #{encoder_decoder_forward.1} parent=0
    _
  %s18 = ssub.s32 1, %s16
  %s19 = scalar_select 0, %s18, %s16
  $region1: #{encoder_decoder_forward.1} parent=0
    #allocation4 [shape = 'u8[32768]{0}', space=vmem, size = 0x8000, scoped, tag = 'output window, operand 0, single buffered']
    #allocation5 [shape = 's32[1]{0}', space=sflag, size = 0x4, scoped, tag = 'scoped memory for encoder_decoder_forward.1']
    #allocation6 [shape = 'u8[4096]{0}', space=vmem, size = 0x1000, scoped, tag = 'output window, operand 1, single buffered']
    #allocation7 [shape = 's32[1]{0}', space=sflag, size = 0x4, scoped, tag = 'scoped memory for encoder_decoder_forward.1']
    %20 = vsyncpa [#allocation5], 0
    %21 = vsyncpa [#allocation7], 0
    // Predicated region
    $region2: #{encoder_decoder_forward.1} parent=1 // pred_check
      _
    $region3: #{encoder_decoder_forward.1} parent=1 // pred_check_branch
      %23 = sbr.rel (0) target = $region5
    $region4: #{encoder_decoder_forward.1} parent=1 // pred_region
      _
    $region5: #{encoder_decoder_forward.1} parent=1 // pred_fallthru
      _
    // Predicated region
    $region6: #{encoder_decoder_forward.1} parent=1 // pred_check
      _
    $region7: #{encoder_decoder_forward.1} parent=1 // pred_check_branch
      %25 = sbr.rel (0) target = $region9
    $region8: #{encoder_decoder_forward.1} parent=1 // pred_region
      _
    $region9: #{encoder_decoder_forward.1} parent=1 // pred_fallthru
      _
    // Predicated region
    $region10: #{encoder_decoder_forward.1} parent=1 // pred_check
      _
    $region11: #{encoder_decoder_forward.1} parent=1 // pred_check_branch
      %27 = sbr.rel (0) target = $region13
    $region12: #{encoder_decoder_forward.1} parent=1 // pred_region
      _
    $region13: #{encoder_decoder_forward.1} parent=1 // pred_fallthru
      _
    // Predicated region
    $region14: #{encoder_decoder_forward.1} parent=1 // pred_check
      _
    $region15: #{encoder_decoder_forward.1} parent=1 // pred_check_branch
      %29 = sbr.rel (0) target = $region17
    $region16: #{encoder_decoder_forward.1} parent=1 // pred_region
      _
    $region17: #{encoder_decoder_forward.1} parent=1 // pred_fallthru
      _
    // Predicated region
    $region18: #{encoder_decoder_forward.1} parent=1 // pred_check
      _
    $region19: #{encoder_decoder_forward.1} parent=1 // pred_check_branch
      %31 = sbr.rel (0) target = $region21
    $region20: #{encoder_decoder_forward.1} parent=1 // pred_region
      _
    $region21: #{encoder_decoder_forward.1} parent=1 // pred_fallthru
      _
    // Predicated region
    $region22: #{encoder_decoder_forward.1} parent=1 // pred_check
      _
    $region23: #{encoder_decoder_forward.1} parent=1 // pred_check_branch
      %33 = sbr.rel (0) target = $region25
    $region24: #{encoder_decoder_forward.1} parent=1 // pred_region
      _
    $region25: #{encoder_decoder_forward.1} parent=1 // pred_fallthru
      _
    // Predicated region
    $region26: #{encoder_decoder_forward.1} parent=1 // pred_check
      _
    $region27: #{encoder_decoder_forward.1} parent=1 // pred_check_branch
      %35 = sbr.rel (0) target = $region29
    $region28: #{encoder_decoder_forward.1} parent=1 // pred_region
      _
    $region29: #{encoder_decoder_forward.1} parent=1 // pred_fallthru
      _
    // Predicated region
    $region30: #{encoder_decoder_forward.1} parent=1 // pred_check
      _
    $region31: #{encoder_decoder_forward.1} parent=1 // pred_check_branch
      %37 = sbr.rel (0) target = $region33
    $region32: #{encoder_decoder_forward.1} parent=1 // pred_region
      _
    $region33: #{encoder_decoder_forward.1} parent=1 // pred_fallthru
      _
    // Predicated region
    $region34: #{encoder_decoder_forward.1} parent=1 // pred_check
      _
    $region35: #{encoder_decoder_forward.1} parent=1 // pred_check_branch
      %39 = sbr.rel (0) target = $region37
    $region36: #{encoder_decoder_forward.1} parent=1 // pred_region
      _
    $region37: #{encoder_decoder_forward.1} parent=1 // pred_fallthru
      _
    // Predicated region
    $region38: #{encoder_decoder_forward.1} parent=1 // pred_check
      _
    $region39: #{encoder_decoder_forward.1} parent=1 // pred_check_branch
      %41 = sbr.rel (0) target = $region41
    $region40: #{encoder_decoder_forward.1} parent=1 // pred_region
      _
    $region41: #{encoder_decoder_forward.1} parent=1 // pred_fallthru
      _
    // Predicated region
    $region42: #{encoder_decoder_forward.1} parent=1 // pred_check
      _
    $region43: #{encoder_decoder_forward.1} parent=1 // pred_check_branch
      %43 = sbr.rel (0) target = $region45
    $region44: #{encoder_decoder_forward.1} parent=1 // pred_region
      _
    $region45: #{encoder_decoder_forward.1} parent=1 // pred_fallthru
      _
    // Predicated region
    $region46: #{encoder_decoder_forward.1} parent=1 // pred_check
      _
    $region47: #{encoder_decoder_forward.1} parent=1 // pred_check_branch
      %45 = sbr.rel (0) target = $region49
    $region48: #{encoder_decoder_forward.1} parent=1 // pred_region
      _
    $region49: #{encoder_decoder_forward.1} parent=1 // pred_fallthru
      _
    // Predicated region
    $region50: #{encoder_decoder_forward.1} parent=1 // pred_check
      _
    $region51: #{encoder_decoder_forward.1} parent=1 // pred_check_branch
      %47 = sbr.rel (0) target = $region53
    $region52: #{encoder_decoder_forward.1} parent=1 // pred_region
      _
    $region53: #{encoder_decoder_forward.1} parent=1 // pred_fallthru
      _
    %v49 = vld [vmem:[%s4] sm:$0x7]
    %v50 = vld [vmem:[%s5] sm:$0x3]
    %v52 = vlaneseq
    %v53 = vshrl.u32 %v52, 7
    %v54 = vsub.s32 0, %v53
    %v55 = vrot.slane %v50, %v54
    %v56 = vlaneseq
    %v57 = vshrl.u32 %v56, 7
    %v58 = vsub.s32 1, %v57
    %v59 = vrot.slane %v50, %v58
    %v61 = vcombine.low %v55, %v59
    %v63 = vunpack.c.l.s4 1966171168
    %v64 = vunpack.c.0.s8 %v63
    %v65 = vlaneseq
    %v66 = vshrl.u32 %v65, 7
    %v67 = vsub.s32 %v64, %v66
    %v68 = vrot.slane %v61, %v67
    %v70 = vunpack.c.l.s4 1966171168
    %v71 = vunpack.c.0.s8 %v70
    %v72 = vlaneseq
    %v73 = vshrl.u32 %v72, 7
    %v74 = vsub.s32 %v71, %v73
    %v75 = vrot.slane 0.0, %v74
    %v76 = vcombine.low %v68, %v75
    %v78 = vunpack.c.l.s4 1966171168
    %v79 = vunpack.c.0.s8 %v78
    %v80 = vlaneseq
    %v81 = vshrl.u32 %v80, 7
    %v82 = vsub.s32 %v79, %v81
    %v83 = vrot.slane %v76, %v82
    %v85 = vadd.f32 %v49, %v83
    %v86 = vld [vmem:[%s5 + $0x2] sm:$0x1]
    %v87 = vld [vmem:[%s0] sm:$0xf]
    %v88 = vld [vmem:[%s0 + $0x4] sm:$0xf]
    %v89 = vld [vmem:[%s0 + $0x8] sm:$0xf]
    %v90 = vld [vmem:[%s0 + $0xc] sm:$0xf]
    %v91 = vld [vmem:[%s0 + $0x10] sm:$0xf]
    %v92 = vld [vmem:[%s0 + $0x14] sm:$0xf]
    %v93 = vld [vmem:[%s0 + $0x18] sm:$0xf]
    %v94 = vld [vmem:[%s0 + $0x1c] sm:$0xf]
    %v95 = vld [vmem:[%s2] sm:$0xff]
    %v96 = vld [vmem:[%s2 + $0x8] sm:$0xf]
    %v97 = vld [vmem:[%s2 + $0xc] sm:$0xff]
    %v98 = vld [vmem:[%s2 + $0x14] sm:$0xf]
    %v99 = vld [vmem:[%s2 + $0x18] sm:$0xff]
    %v100 = vld [vmem:[%s2 + $0x20] sm:$0xf]
    %v101 = vld [vmem:[%s2 + $0x24] sm:$0xff]
    %v102 = vld [vmem:[%s2 + $0x2c] sm:$0xf]
    %v103 = vld [vmem:[%s2 + $0x30] sm:$0xff]
    %v104 = vld [vmem:[%s2 + $0x38] sm:$0xf]
    %v105 = vld [vmem:[%s2 + $0x3c] sm:$0xff]
    %v106 = vld [vmem:[%s2 + $0x44] sm:$0xf]
    %v107 = vld [vmem:[%s2 + $0x48] sm:$0xff]
    %v108 = vld [vmem:[%s2 + $0x50] sm:$0xf]
    %v109 = vld [vmem:[%s2 + $0x54] sm:$0xff]
    %v110 = vld [vmem:[%s2 + $0x5c] sm:$0xf]
    %v111 = vld [vmem:[%s2 + $0x60] sm:$0xff]
    %v112 = vld [vmem:[%s2 + $0x68] sm:$0xf]
    %v113 = vld [vmem:[%s2 + $0x6c] sm:$0xff]
    %v114 = vld [vmem:[%s2 + $0x74] sm:$0xf]
    %v115 = vld [vmem:[%s2 + $0x78] sm:$0xff]
    %v116 = vld [vmem:[%s2 + $0x80] sm:$0xf]
    %v117 = vld [vmem:[%s2 + $0x84] sm:$0xff]
    %v118 = vld [vmem:[%s2 + $0x8c] sm:$0xf]
    %v119 = vld [vmem:[%s2 + $0x90] sm:$0xff]
    %v120 = vld [vmem:[%s2 + $0x98] sm:$0xf]
    %v121 = vld [vmem:[%s2 + $0x9c] sm:$0xff]
    %v122 = vld [vmem:[%s2 + $0xa4] sm:$0xf]
    %v123 = vld [vmem:[%s2 + $0xa8] sm:$0xff]
    %v124 = vld [vmem:[%s2 + $0xb0] sm:$0xf]
    %v125 = vld [vmem:[%s2 + $0xb4] sm:$0xff]
    %v126 = vld [vmem:[%s2 + $0xbc] sm:$0xf]
    %v128 = vlaneseq
    %v129 = vshrl.u32 %v128, 7
    %v130 = vsub.s32 0, %v129
    %v131 = vrot.slane %v85, %v130
    %v132 = vlaneseq
    %v133 = vshrl.u32 %v132, 7
    %v134 = vsub.s32 1, %v133
    %v135 = vrot.slane %v85, %v134
    %v136 = vlaneseq
    %v137 = vshrl.u32 %v136, 7
    %v138 = vsub.s32 2, %v137
    %v139 = vrot.slane %v85, %v138
    %v151 = vunpack.c.l.b16 %v87
    %v152 = vunpack.c.l.b16 %v88
    %v153 = vunpack.c.l.b16 %v89
    %v154 = vunpack.c.l.b16 %v90
    %v155 = vunpack.c.l.b16 %v91
    %v156 = vunpack.c.l.b16 %v92
    %v157 = vunpack.c.l.b16 %v93
    %v158 = vunpack.c.l.b16 %v94
    %v159 = vpack.c.b16 %v152, %v151
    %v160 = vpack.c.b16 %v154, %v153
    %v161 = vpack.c.b16 %v156, %v155
    %v162 = vpack.c.b16 %v158, %v157
    %v199 = vunpack.c.l.b16 %v95
    %v200 = vunpack.c.h.b16 %v95
    %v201 = vunpack.c.l.b16 %v96
    %v202 = vunpack.c.l.b16 %v97
    %v203 = vunpack.c.h.b16 %v97
    %v204 = vunpack.c.l.b16 %v98
    %v205 = vunpack.c.l.b16 %v99
    %v206 = vunpack.c.h.b16 %v99
    %v207 = vunpack.c.l.b16 %v100
    %v208 = vunpack.c.l.b16 %v101
    %v209 = vunpack.c.h.b16 %v101
    %v210 = vunpack.c.l.b16 %v102
    %v211 = vunpack.c.l.b16 %v103
    %v212 = vunpack.c.h.b16 %v103
    %v213 = vunpack.c.l.b16 %v104
    %v214 = vunpack.c.l.b16 %v105
    %v215 = vunpack.c.h.b16 %v105
    %v216 = vunpack.c.l.b16 %v106
    %v217 = vunpack.c.l.b16 %v107
    %v218 = vunpack.c.h.b16 %v107
    %v219 = vunpack.c.l.b16 %v108
    %v220 = vunpack.c.l.b16 %v109
    %v221 = vunpack.c.h.b16 %v109
    %v222 = vunpack.c.l.b16 %v110
    %v223 = vunpack.c.l.b16 %v111
    %v224 = vunpack.c.h.b16 %v111
    %v225 = vunpack.c.l.b16 %v112
    %v226 = vunpack.c.l.b16 %v113
    %v227 = vunpack.c.h.b16 %v113
    %v228 = vunpack.c.l.b16 %v114
    %v229 = vunpack.c.l.b16 %v115
    %v230 = vunpack.c.h.b16 %v115
    %v231 = vunpack.c.l.b16 %v116
    %v232 = vunpack.c.l.b16 %v117
    %v233 = vunpack.c.h.b16 %v117
    %v234 = vunpack.c.l.b16 %v118
    %v235 = vunpack.c.l.b16 %v119
    %v236 = vunpack.c.h.b16 %v119
    %v237 = vunpack.c.l.b16 %v120
    %v238 = vunpack.c.l.b16 %v121
    %v239 = vunpack.c.h.b16 %v121
    %v240 = vunpack.c.l.b16 %v122
    %v241 = vunpack.c.l.b16 %v123
    %v242 = vunpack.c.h.b16 %v123
    %v243 = vunpack.c.l.b16 %v124
    %v244 = vunpack.c.l.b16 %v125
    %v245 = vunpack.c.h.b16 %v125
    %v246 = vunpack.c.l.b16 %v126
    %v247 = vpack.c.b16 %v202, %v199
    %v248 = vpack.c.b16 %v203, %v200
    %v249 = vpack.c.b16 %v204, %v201
    %v250 = vpack.c.b16 %v208, %v205
    %v251 = vpack.c.b16 %v209, %v206
    %v252 = vpack.c.b16 %v210, %v207
    %v253 = vpack.c.b16 %v214, %v211
    %v254 = vpack.c.b16 %v215, %v212
    %v255 = vpack.c.b16 %v216, %v213
    %v256 = vpack.c.b16 %v220, %v217
    %v257 = vpack.c.b16 %v221, %v218
    %v258 = vpack.c.b16 %v222, %v219
    %v259 = vpack.c.b16 %v226, %v223
    %v260 = vpack.c.b16 %v227, %v224
    %v261 = vpack.c.b16 %v228, %v225
    %v262 = vpack.c.b16 %v232, %v229
    %v263 = vpack.c.b16 %v233, %v230
    %v264 = vpack.c.b16 %v234, %v231
    %v265 = vpack.c.b16 %v238, %v235
    %v266 = vpack.c.b16 %v239, %v236
    %v267 = vpack.c.b16 %v240, %v237
    %v268 = vpack.c.b16 %v244, %v241
    %v269 = vpack.c.b16 %v245, %v242
    %v270 = vpack.c.b16 %v246, %v243
    %295 = vmatprep.subr.bf16.mxu0 %v248
    %296 = vmatpush1.bf16.msra.mxu0 %v247
    %297 = vmatprep.subr.bf16.mxu0 %v251
    %298 = vmatpush1.bf16.msra.mxu0 %v250
    %299 = vmatprep.subr.bf16.mxu0 %v254
    %300 = vmatpush1.bf16.msra.mxu0 %v253
    %301 = vmatprep.subr.bf16.mxu0 %v257
    %302 = vmatpush1.bf16.msra.mxu0 %v256
    %303 = vmatprep.subr.bf16.mxu0 %v260
    %304 = vmatpush1.bf16.msra.mxu0 %v259
    %305 = vmatprep.subr.bf16.mxu0 %v263
    %306 = vmatpush1.bf16.msra.mxu0 %v262
    %307 = vmatprep.subr.bf16.mxu0 %v266
    %308 = vmatpush1.bf16.msra.mxu0 %v265
    %309 = vmatprep.subr.bf16.mxu0 %v269
    %310 = vmatpush1.bf16.msra.mxu0 %v268
    %311 = vmatprep.subr.bf16.mxu0 0
    %312 = vmatpush1.bf16.msra.mxu0 0
    %313 = vmatprep.subr.bf16.mxu0 0
    %314 = vmatpush1.bf16.msra.mxu0 0
    %315 = vmatprep.subr.bf16.mxu0 0
    %316 = vmatpush1.bf16.msra.mxu0 0
    %317 = vmatprep.subr.bf16.mxu0 0
    %318 = vmatpush1.bf16.msra.mxu0 0
    %319 = vmatprep.subr.bf16.mxu0 0
    %320 = vmatpush1.bf16.msra.mxu0 0
    %321 = vmatprep.subr.bf16.mxu0 0
    %322 = vmatpush1.bf16.msra.mxu0 0
    %323 = vmatprep.subr.bf16.mxu0 0
    %324 = vmatpush1.bf16.msra.mxu0 0
    %325 = vmatprep.subr.bf16.mxu0 0
    %326 = vmatpush1.bf16.msra.mxu0 0
    %327 = vmatprep.mubr.bf16.mxu0 0
    %328 = vmatmul.mubr.bf16.gmra.mrb[0].mxu0 %v159
    %v329 = vpop.f32.mrb[0].mxu0
    %v330 = vadd.f32 %v131, %v329
    %v331 = vpop.f32.mrb[0].mxu0
    %v332 = vadd.f32 %v135, %v331
    %v333 = vpop.f32.mrb[0].mxu0
    %v334 = vadd.f32 %v131, %v333
    %v335 = vpop.f32.mrb[0].mxu0
    %v336 = vadd.f32 %v135, %v335
    %337 = vmatprep.mubr.bf16.mxu0 0
    %338 = vmatmul.mubr.bf16.gmra.mrb[0].mxu0 %v160
    %v339 = vpop.f32.mrb[0].mxu0
    %v340 = vadd.f32 %v131, %v339
    %v341 = vpop.f32.mrb[0].mxu0
    %v342 = vadd.f32 %v135, %v341
    %v343 = vpop.f32.mrb[0].mxu0
    %v344 = vadd.f32 %v131, %v343
    %v345 = vpop.f32.mrb[0].mxu0
    %v346 = vadd.f32 %v135, %v345
    %347 = vmatprep.mubr.bf16.mxu0 0
    %348 = vmatmul.mubr.bf16.gmra.mrb[0].mxu0 %v161
    %v349 = vpop.f32.mrb[0].mxu0
    %v350 = vadd.f32 %v131, %v349
    %v351 = vpop.f32.mrb[0].mxu0
    %v352 = vadd.f32 %v135, %v351
    %v353 = vpop.f32.mrb[0].mxu0
    %v354 = vadd.f32 %v131, %v353
    %v355 = vpop.f32.mrb[0].mxu0
    %v356 = vadd.f32 %v135, %v355
    %357 = vmatprep.mubr.bf16.mxu0 0
    %358 = vmatmul.mubr.bf16.gmra.mrb[0].mxu0 %v162
    %v359 = vpop.f32.mrb[0].mxu0
    %v360 = vadd.f32 %v131, %v359
    %v361 = vpop.f32.mrb[0].mxu0
    %v362 = vadd.f32 %v135, %v361
    %v363 = vpop.f32.mrb[0].mxu0
    %v364 = vadd.f32 %v131, %v363
    %v365 = vpop.f32.mrb[0].mxu0
    %v366 = vadd.f32 %v135, %v365
    %367 = vdwg.mxu0
    %368 = vmatprep.subr.bf16.mxu0 0
    %369 = vmatpush1.bf16.msra.mxu0 %v249
    %370 = vmatprep.subr.bf16.mxu0 0
    %371 = vmatpush1.bf16.msra.mxu0 %v252
    %372 = vmatprep.subr.bf16.mxu0 0
    %373 = vmatpush1.bf16.msra.mxu0 %v255
    %374 = vmatprep.subr.bf16.mxu0 0
    %375 = vmatpush1.bf16.msra.mxu0 %v258
    %376 = vmatprep.subr.bf16.mxu0 0
    %377 = vmatpush1.bf16.msra.mxu0 %v261
    %378 = vmatprep.subr.bf16.mxu0 0
    %379 = vmatpush1.bf16.msra.mxu0 %v264
    %380 = vmatprep.subr.bf16.mxu0 0
    %381 = vmatpush1.bf16.msra.mxu0 %v267
    %382 = vmatprep.subr.bf16.mxu0 0
    %383 = vmatpush1.bf16.msra.mxu0 %v270
    %384 = vmatprep.subr.bf16.mxu0 0
    %385 = vmatpush1.bf16.msra.mxu0 0
    %386 = vmatprep.subr.bf16.mxu0 0
    %387 = vmatpush1.bf16.msra.mxu0 0
    %388 = vmatprep.subr.bf16.mxu0 0
    %389 = vmatpush1.bf16.msra.mxu0 0
    %390 = vmatprep.subr.bf16.mxu0 0
    %391 = vmatpush1.bf16.msra.mxu0 0
    %392 = vmatprep.subr.bf16.mxu0 0
    %393 = vmatpush1.bf16.msra.mxu0 0
    %394 = vmatprep.subr.bf16.mxu0 0
    %395 = vmatpush1.bf16.msra.mxu0 0
    %396 = vmatprep.subr.bf16.mxu0 0
    %397 = vmatpush1.bf16.msra.mxu0 0
    %398 = vmatprep.subr.bf16.mxu0 0
    %399 = vmatpush1.bf16.msra.mxu0 0
    %400 = vmatprep.mubr.bf16.mxu0 0
    %401 = vmatmul.mubr.bf16.gmra.mrb[0].mxu0 %v159
    %v402 = vpop.f32.mrb[0].mxu0
    %v403 = vadd.f32 %v139, %v402
    %v404 = vpop.f32.mrb[0].mxu0
    %v405 = vpop.f32.mrb[0].mxu0
    %v406 = vadd.f32 %v139, %v405
    %v407 = vpop.f32.mrb[0].mxu0
    %408 = vmatprep.mubr.bf16.mxu0 0
    %409 = vmatmul.mubr.bf16.gmra.mrb[0].mxu0 %v160
    %v410 = vpop.f32.mrb[0].mxu0
    %v411 = vadd.f32 %v139, %v410
    %v412 = vpop.f32.mrb[0].mxu0
    %v413 = vpop.f32.mrb[0].mxu0
    %v414 = vadd.f32 %v139, %v413
    %v415 = vpop.f32.mrb[0].mxu0
    %416 = vmatprep.mubr.bf16.mxu0 0
    %417 = vmatmul.mubr.bf16.gmra.mrb[0].mxu0 %v161
    %v418 = vpop.f32.mrb[0].mxu0
    %v419 = vadd.f32 %v139, %v418
    %v420 = vpop.f32.mrb[0].mxu0
    %v421 = vpop.f32.mrb[0].mxu0
    %v422 = vadd.f32 %v139, %v421
    %v423 = vpop.f32.mrb[0].mxu0
    %424 = vmatprep.mubr.bf16.mxu0 0
    %425 = vmatmul.mubr.bf16.gmra.mrb[0].mxu0 %v162
    %v426 = vpop.f32.mrb[0].mxu0
    %v427 = vadd.f32 %v139, %v426
    %v428 = vpop.f32.mrb[0].mxu0
    %v429 = vpop.f32.mrb[0].mxu0
    %v430 = vadd.f32 %v139, %v429
    %v431 = vpop.f32.mrb[0].mxu0
    %432 = vdwg.mxu0
    %433 = vst [vmem:[#allocation2] sm:$0xff] %v330
    %434 = vst [vmem:[#allocation2 + $0x8] sm:$0xff] %v332
    %435 = vst [vmem:[#allocation2 + $0x10] sm:$0xff] %v403
    %436 = vst [vmem:[#allocation2 + $0x18] sm:$0xff] %v334
    %437 = vst [vmem:[#allocation2 + $0x20] sm:$0xff] %v336
    %438 = vst [vmem:[#allocation2 + $0x28] sm:$0xff] %v406
    %439 = vst [vmem:[#allocation2 + $0x30] sm:$0xff] %v340
    %440 = vst [vmem:[#allocation2 + $0x38] sm:$0xff] %v342
    %441 = vst [vmem:[#allocation2 + $0x40] sm:$0xff] %v411
    %442 = vst [vmem:[#allocation2 + $0x48] sm:$0xff] %v344
    %443 = vst [vmem:[#allocation2 + $0x50] sm:$0xff] %v346
    %444 = vst [vmem:[#allocation2 + $0x58] sm:$0xff] %v414
    %445 = vst [vmem:[#allocation2 + $0x60] sm:$0xff] %v350
    %446 = vst [vmem:[#allocation2 + $0x68] sm:$0xff] %v352
    %447 = vst [vmem:[#allocation2 + $0x70] sm:$0xff] %v419
    %448 = vst [vmem:[#allocation2 + $0x78] sm:$0xff] %v354
    %449 = vst [vmem:[#allocation2 + $0x80] sm:$0xff] %v356
    %450 = vst [vmem:[#allocation2 + $0x88] sm:$0xff] %v422
    %451 = vst [vmem:[#allocation2 + $0x90] sm:$0xff] %v360
    %452 = vst [vmem:[#allocation2 + $0x98] sm:$0xff] %v362
    %453 = vst [vmem:[#allocation2 + $0xa0] sm:$0xff] %v427
    %454 = vst [vmem:[#allocation2 + $0xa8] sm:$0xff] %v364
    %455 = vst [vmem:[#allocation2 + $0xb0] sm:$0xff] %v366
    %456 = vst [vmem:[#allocation2 + $0xb8] sm:$0xff] %v430
    %v457 = vld [vmem:[%s3] sm:$0xff]
    %v458 = vld [vmem:[%s3 + $0x8] sm:$0xf]
    %v459 = vld [vmem:[%s3 + $0xc] sm:$0xff]
    %v460 = vld [vmem:[%s3 + $0x14] sm:$0xf]
    %v461 = vld [vmem:[%s3 + $0x18] sm:$0xff]
    %v462 = vld [vmem:[%s3 + $0x20] sm:$0xf]
    %v463 = vld [vmem:[%s3 + $0x24] sm:$0xff]
    %v464 = vld [vmem:[%s3 + $0x2c] sm:$0xf]
    %v465 = vld [vmem:[%s3 + $0x30] sm:$0xff]
    %v466 = vld [vmem:[%s3 + $0x38] sm:$0xf]
    %v467 = vld [vmem:[%s3 + $0x3c] sm:$0xff]
    %v468 = vld [vmem:[%s3 + $0x44] sm:$0xf]
    %v469 = vld [vmem:[%s3 + $0x48] sm:$0xff]
    %v470 = vld [vmem:[%s3 + $0x50] sm:$0xf]
    %v471 = vld [vmem:[%s3 + $0x54] sm:$0xff]
    %v472 = vld [vmem:[%s3 + $0x5c] sm:$0xf]
    %v473 = vld [vmem:[%s3 + $0x60] sm:$0xff]
    %v474 = vld [vmem:[%s3 + $0x68] sm:$0xf]
    %v475 = vld [vmem:[%s3 + $0x6c] sm:$0xff]
    %v476 = vld [vmem:[%s3 + $0x74] sm:$0xf]
    %v477 = vld [vmem:[%s3 + $0x78] sm:$0xff]
    %v478 = vld [vmem:[%s3 + $0x80] sm:$0xf]
    %v479 = vld [vmem:[%s3 + $0x84] sm:$0xff]
    %v480 = vld [vmem:[%s3 + $0x8c] sm:$0xf]
    %v481 = vld [vmem:[%s3 + $0x90] sm:$0xff]
    %v482 = vld [vmem:[%s3 + $0x98] sm:$0xf]
    %v483 = vld [vmem:[%s3 + $0x9c] sm:$0xff]
    %v484 = vld [vmem:[%s3 + $0xa4] sm:$0xf]
    %v485 = vld [vmem:[%s3 + $0xa8] sm:$0xff]
    %v486 = vld [vmem:[%s3 + $0xb0] sm:$0xf]
    %v487 = vld [vmem:[%s3 + $0xb4] sm:$0xff]
    %v488 = vld [vmem:[%s3 + $0xbc] sm:$0xf]
    %v489 = vld [vmem:[#allocation2] sm:$0xff]
    %v490 = vld [vmem:[#allocation2 + $0x8] sm:$0xff]
    %v491 = vld [vmem:[#allocation2 + $0x10] sm:$0xff]
    %v524 = vunpack.c.l.b16 %v457
    %v525 = vunpack.c.h.b16 %v457
    %v526 = vunpack.c.l.b16 %v458
    %v527 = vunpack.c.l.b16 %v459
    %v528 = vunpack.c.h.b16 %v459
    %v529 = vunpack.c.l.b16 %v460
    %v530 = vunpack.c.l.b16 %v461
    %v531 = vunpack.c.h.b16 %v461
    %v532 = vunpack.c.l.b16 %v462
    %v533 = vunpack.c.l.b16 %v463
    %v534 = vunpack.c.h.b16 %v463
    %v535 = vunpack.c.l.b16 %v464
    %v536 = vunpack.c.l.b16 %v465
    %v537 = vunpack.c.h.b16 %v465
    %v538 = vunpack.c.l.b16 %v466
    %v539 = vunpack.c.l.b16 %v467
    %v540 = vunpack.c.h.b16 %v467
    %v541 = vunpack.c.l.b16 %v468
    %v542 = vunpack.c.l.b16 %v469
    %v543 = vunpack.c.h.b16 %v469
    %v544 = vunpack.c.l.b16 %v470
    %v545 = vunpack.c.l.b16 %v471
    %v546 = vunpack.c.h.b16 %v471
    %v547 = vunpack.c.l.b16 %v472
    %v548 = vunpack.c.l.b16 %v473
    %v549 = vunpack.c.h.b16 %v473
    %v550 = vunpack.c.l.b16 %v474
    %v551 = vunpack.c.l.b16 %v475
    %v552 = vunpack.c.h.b16 %v475
    %v553 = vunpack.c.l.b16 %v476
    %v554 = vunpack.c.l.b16 %v477
    %v555 = vunpack.c.h.b16 %v477
    %v556 = vunpack.c.l.b16 %v478
    %v557 = vunpack.c.l.b16 %v479
    %v558 = vunpack.c.h.b16 %v479
    %v559 = vunpack.c.l.b16 %v480
    %v560 = vunpack.c.l.b16 %v481
    %v561 = vunpack.c.h.b16 %v481
    %v562 = vunpack.c.l.b16 %v482
    %v563 = vunpack.c.l.b16 %v483
    %v564 = vunpack.c.h.b16 %v483
    %v565 = vunpack.c.l.b16 %v484
    %v566 = vunpack.c.l.b16 %v485
    %v567 = vunpack.c.h.b16 %v485
    %v568 = vunpack.c.l.b16 %v486
    %v569 = vunpack.c.l.b16 %v487
    %v570 = vunpack.c.h.b16 %v487
    %v571 = vunpack.c.l.b16 %v488
    %v572 = vpack.c.b16 %v527, %v524
    %v573 = vpack.c.b16 %v528, %v525
    %v574 = vpack.c.b16 %v529, %v526
    %v575 = vpack.c.b16 %v533, %v530
    %v576 = vpack.c.b16 %v534, %v531
    %v577 = vpack.c.b16 %v535, %v532
    %v578 = vpack.c.b16 %v539, %v536
    %v579 = vpack.c.b16 %v540, %v537
    %v580 = vpack.c.b16 %v541, %v538
    %v581 = vpack.c.b16 %v545, %v542
    %v582 = vpack.c.b16 %v546, %v543
    %v583 = vpack.c.b16 %v547, %v544
    %v584 = vpack.c.b16 %v551, %v548
    %v585 = vpack.c.b16 %v552, %v549
    %v586 = vpack.c.b16 %v553, %v550
    %v587 = vpack.c.b16 %v557, %v554
    %v588 = vpack.c.b16 %v558, %v555
    %v589 = vpack.c.b16 %v559, %v556
    %v590 = vpack.c.b16 %v563, %v560
    %v591 = vpack.c.b16 %v564, %v561
    %v592 = vpack.c.b16 %v565, %v562
    %v593 = vpack.c.b16 %v569, %v566
    %v594 = vpack.c.b16 %v570, %v567
    %v595 = vpack.c.b16 %v571, %v568
    %620 = vmatprep.subr.bf16.mxu0 %v573
    %621 = vmatpush1.bf16.msra.mxu0 %v572
    %622 = vmatprep.subr.bf16.mxu0 %v576
    %623 = vmatpush1.bf16.msra.mxu0 %v575
    %624 = vmatprep.subr.bf16.mxu0 %v579
    %625 = vmatpush1.bf16.msra.mxu0 %v578
    %626 = vmatprep.subr.bf16.mxu0 %v582
    %627 = vmatpush1.bf16.msra.mxu0 %v581
    %628 = vmatprep.subr.bf16.mxu0 %v585
    %629 = vmatpush1.bf16.msra.mxu0 %v584
    %630 = vmatprep.subr.bf16.mxu0 %v588
    %631 = vmatpush1.bf16.msra.mxu0 %v587
    %632 = vmatprep.subr.bf16.mxu0 %v591
    %633 = vmatpush1.bf16.msra.mxu0 %v590
    %634 = vmatprep.subr.bf16.mxu0 %v594
    %635 = vmatpush1.bf16.msra.mxu0 %v593
    %636 = vmatprep.subr.bf16.mxu0 0
    %637 = vmatpush1.bf16.msra.mxu0 0
    %638 = vmatprep.subr.bf16.mxu0 0
    %639 = vmatpush1.bf16.msra.mxu0 0
    %640 = vmatprep.subr.bf16.mxu0 0
    %641 = vmatpush1.bf16.msra.mxu0 0
    %642 = vmatprep.subr.bf16.mxu0 0
    %643 = vmatpush1.bf16.msra.mxu0 0
    %644 = vmatprep.subr.bf16.mxu0 0
    %645 = vmatpush1.bf16.msra.mxu0 0
    %646 = vmatprep.subr.bf16.mxu0 0
    %647 = vmatpush1.bf16.msra.mxu0 0
    %648 = vmatprep.subr.bf16.mxu0 0
    %649 = vmatpush1.bf16.msra.mxu0 0
    %650 = vmatprep.subr.bf16.mxu0 0
    %651 = vmatpush1.bf16.msra.mxu0 0
    %652 = vmatprep.mubr.bf16.mxu0 0
    %653 = vmatmul.mubr.bf16.gmra.mrb[0].mxu0 0
    %v654 = vpop.f32.mrb[0].mxu0
    %v655 = vadd.f32 0.0, %v654
    %v656 = vpop.f32.mrb[0].mxu0
    %v657 = vadd.f32 0.0, %v656
    %v658 = vpop.f32.mrb[0].mxu0
    %v659 = vpop.f32.mrb[0].mxu0
    %660 = vdwg.mxu0
    %661 = vmatprep.subr.bf16.mxu0 0
    %662 = vmatpush1.bf16.msra.mxu0 %v574
    %663 = vmatprep.subr.bf16.mxu0 0
    %664 = vmatpush1.bf16.msra.mxu0 %v577
    %665 = vmatprep.subr.bf16.mxu0 0
    %666 = vmatpush1.bf16.msra.mxu0 %v580
    %667 = vmatprep.subr.bf16.mxu0 0
    %668 = vmatpush1.bf16.msra.mxu0 %v583
    %669 = vmatprep.subr.bf16.mxu0 0
    %670 = vmatpush1.bf16.msra.mxu0 %v586
    %671 = vmatprep.subr.bf16.mxu0 0
    %672 = vmatpush1.bf16.msra.mxu0 %v589
    %673 = vmatprep.subr.bf16.mxu0 0
    %674 = vmatpush1.bf16.msra.mxu0 %v592
    %675 = vmatprep.subr.bf16.mxu0 0
    %676 = vmatpush1.bf16.msra.mxu0 %v595
    %677 = vmatprep.subr.bf16.mxu0 0
    %678 = vmatpush1.bf16.msra.mxu0 0
    %679 = vmatprep.subr.bf16.mxu0 0
    %680 = vmatpush1.bf16.msra.mxu0 0
    %681 = vmatprep.subr.bf16.mxu0 0
    %682 = vmatpush1.bf16.msra.mxu0 0
    %683 = vmatprep.subr.bf16.mxu0 0
    %684 = vmatpush1.bf16.msra.mxu0 0
    %685 = vmatprep.subr.bf16.mxu0 0
    %686 = vmatpush1.bf16.msra.mxu0 0
    %687 = vmatprep.subr.bf16.mxu0 0
    %688 = vmatpush1.bf16.msra.mxu0 0
    %689 = vmatprep.subr.bf16.mxu0 0
    %690 = vmatpush1.bf16.msra.mxu0 0
    %691 = vmatprep.subr.bf16.mxu0 0
    %692 = vmatpush1.bf16.msra.mxu0 0
    %693 = vmatprep.mubr.bf16.mxu0 0
    %694 = vmatmul.mubr.bf16.gmra.mrb[0].mxu0 0
    %v695 = vpop.f32.mrb[0].mxu0
    %v696 = vadd.f32 0.0, %v695
    %v697 = vpop.f32.mrb[0].mxu0
    %v698 = vpop.f32.mrb[0].mxu0
    %v699 = vpop.f32.mrb[0].mxu0
    %700 = vdwg.mxu0
    %v701 = vadd.f32 %v489, %v655
    %v702 = vxor.u32 %v701, 2147483648
    %v703 = vmul.f32 %v702, 1.442695
    %v704 = vpow.pop %v703
    %v705 = vadd.f32 %v704, 1.0
    %v706 = vrcp.pop %v705
    %v707 = vmul.f32 1.0, %v706
    %v708 = vadd.f32 %v490, %v657
    %v709 = vxor.u32 %v708, 2147483648
    %v710 = vmul.f32 %v709, 1.442695
    %v711 = vpow.pop %v710
    %v712 = vadd.f32 %v711, 1.0
    %v713 = vrcp.pop %v712
    %v714 = vmul.f32 1.0, %v713
    %v716 = vlaneseq
    %v717 = vshrl.u32 %v716, 7
    %v718 = vsub.s32 0, %v717
    %v719 = vrot.slane %v86, %v718
    %v721 = vadd.f32 %v696, %v719
    %v722 = vmul.f32 %v707, %v721
    %v723 = vadd.f32 %v491, %v722
    %v724 = vtanh.pop %v723
    %v725 = vsub.f32 1.0, %v714
    %v726 = vmul.f32 %v725, %v724
    %v727 = vmul.f32 %v714, 0.0
    %v728 = vadd.f32 %v726, %v727
    %s729 = scalar_lea.vmem [#allocation2], 24
    %v730 = vld [vmem:[%s729] sm:$0xff]
    %v731 = vld [vmem:[%s729 + $0x8] sm:$0xff]
    %v732 = vld [vmem:[%s729 + $0x10] sm:$0xff]
    %v733 = vpack.c.bf16 %v728, %v728
    %734 = vmatprep.subr.bf16.mxu0 %v573
    %735 = vmatpush1.bf16.msra.mxu0 %v572
    %736 = vmatprep.subr.bf16.mxu0 %v576
    %737 = vmatpush1.bf16.msra.mxu0 %v575
    %738 = vmatprep.subr.bf16.mxu0 %v579
    %739 = vmatpush1.bf16.msra.mxu0 %v578
    %740 = vmatprep.subr.bf16.mxu0 %v582
    %741 = vmatpush1.bf16.msra.mxu0 %v581
    %742 = vmatprep.subr.bf16.mxu0 %v585
    %743 = vmatpush1.bf16.msra.mxu0 %v584
    %744 = vmatprep.subr.bf16.mxu0 %v588
    %745 = vmatpush1.bf16.msra.mxu0 %v587
    %746 = vmatprep.subr.bf16.mxu0 %v591
    %747 = vmatpush1.bf16.msra.mxu0 %v590
    %748 = vmatprep.subr.bf16.mxu0 %v594
    %749 = vmatpush1.bf16.msra.mxu0 %v593
    %750 = vmatprep.subr.bf16.mxu0 0
    %751 = vmatpush1.bf16.msra.mxu0 0
    %752 = vmatprep.subr.bf16.mxu0 0
    %753 = vmatpush1.bf16.msra.mxu0 0
    %754 = vmatprep.subr.bf16.mxu0 0
    %755 = vmatpush1.bf16.msra.mxu0 0
    %756 = vmatprep.subr.bf16.mxu0 0
    %757 = vmatpush1.bf16.msra.mxu0 0
    %758 = vmatprep.subr.bf16.mxu0 0
    %759 = vmatpush1.bf16.msra.mxu0 0
    %760 = vmatprep.subr.bf16.mxu0 0
    %761 = vmatpush1.bf16.msra.mxu0 0
    %762 = vmatprep.subr.bf16.mxu0 0
    %763 = vmatpush1.bf16.msra.mxu0 0
    %764 = vmatprep.subr.bf16.mxu0 0
    %765 = vmatpush1.bf16.msra.mxu0 0
    %766 = vmatprep.mubr.bf16.mxu0 0
    %767 = vmatmul.mubr.bf16.gmra.mrb[0].mxu0 %v733
    %v768 = vpop.f32.mrb[0].mxu0
    %v769 = vadd.f32 0.0, %v768
    %v770 = vpop.f32.mrb[0].mxu0
    %v771 = vadd.f32 0.0, %v770
    %v772 = vpop.f32.mrb[0].mxu0
    %v773 = vpop.f32.mrb[0].mxu0
    %774 = vdwg.mxu0
    %775 = vmatprep.subr.bf16.mxu0 0
    %776 = vmatpush1.bf16.msra.mxu0 %v574
    %777 = vmatprep.subr.bf16.mxu0 0
    %778 = vmatpush1.bf16.msra.mxu0 %v577
    %779 = vmatprep.subr.bf16.mxu0 0
    %780 = vmatpush1.bf16.msra.mxu0 %v580
    %781 = vmatprep.subr.bf16.mxu0 0
    %782 = vmatpush1.bf16.msra.mxu0 %v583
    %783 = vmatprep.subr.bf16.mxu0 0
    %784 = vmatpush1.bf16.msra.mxu0 %v586
    %785 = vmatprep.subr.bf16.mxu0 0
    %786 = vmatpush1.bf16.msra.mxu0 %v589
    %787 = vmatprep.subr.bf16.mxu0 0
    %788 = vmatpush1.bf16.msra.mxu0 %v592
    %789 = vmatprep.subr.bf16.mxu0 0
    %790 = vmatpush1.bf16.msra.mxu0 %v595
    %791 = vmatprep.subr.bf16.mxu0 0
    %792 = vmatpush1.bf16.msra.mxu0 0
    %793 = vmatprep.subr.bf16.mxu0 0
    %794 = vmatpush1.bf16.msra.mxu0 0
    %795 = vmatprep.subr.bf16.mxu0 0
    %796 = vmatpush1.bf16.msra.mxu0 0
    %797 = vmatprep.subr.bf16.mxu0 0
    %798 = vmatpush1.bf16.msra.mxu0 0
    %799 = vmatprep.subr.bf16.mxu0 0
    %800 = vmatpush1.bf16.msra.mxu0 0
    %801 = vmatprep.subr.bf16.mxu0 0
    %802 = vmatpush1.bf16.msra.mxu0 0
    %803 = vmatprep.subr.bf16.mxu0 0
    %804 = vmatpush1.bf16.msra.mxu0 0
    %805 = vmatprep.subr.bf16.mxu0 0
    %806 = vmatpush1.bf16.msra.mxu0 0
    %807 = vmatprep.mubr.bf16.mxu0 0
    %808 = vmatmul.mubr.bf16.gmra.mrb[0].mxu0 %v733
    %v809 = vpop.f32.mrb[0].mxu0
    %v810 = vadd.f32 0.0, %v809
    %v811 = vpop.f32.mrb[0].mxu0
    %v812 = vpop.f32.mrb[0].mxu0
    %v813 = vpop.f32.mrb[0].mxu0
    %814 = vdwg.mxu0
    %v815 = vadd.f32 %v730, %v769
    %v816 = vxor.u32 %v815, 2147483648
    %v817 = vmul.f32 %v816, 1.442695
    %v818 = vpow.pop %v817
    %v819 = vadd.f32 %v818, 1.0
    %v820 = vrcp.pop %v819
    %v821 = vmul.f32 1.0, %v820
    %v822 = vadd.f32 %v731, %v771
    %v823 = vxor.u32 %v822, 2147483648
    %v824 = vmul.f32 %v823, 1.442695
    %v825 = vpow.pop %v824
    %v826 = vadd.f32 %v825, 1.0
    %v827 = vrcp.pop %v826
    %v828 = vmul.f32 1.0, %v827
    %v829 = vadd.f32 %v810, %v719
    %v830 = vmul.f32 %v821, %v829
    %v831 = vadd.f32 %v732, %v830
    %v832 = vtanh.pop %v831
    %v833 = vsub.f32 1.0, %v828
    %v834 = vmul.f32 %v833, %v832
    %v835 = vmul.f32 %v828, %v728
    %v836 = vadd.f32 %v834, %v835
    %s837 = scalar_lea.vmem [#allocation2], 48
    %v838 = vld [vmem:[%s837] sm:$0xff]
    %v839 = vld [vmem:[%s837 + $0x8] sm:$0xff]
    %v840 = vld [vmem:[%s837 + $0x10] sm:$0xff]
    %v841 = vpack.c.bf16 %v836, %v836
    %842 = vmatprep.subr.bf16.mxu0 %v573
    %843 = vmatpush1.bf16.msra.mxu0 %v572
    %844 = vmatprep.subr.bf16.mxu0 %v576
    %845 = vmatpush1.bf16.msra.mxu0 %v575
    %846 = vmatprep.subr.bf16.mxu0 %v579
    %847 = vmatpush1.bf16.msra.mxu0 %v578
    %848 = vmatprep.subr.bf16.mxu0 %v582
    %849 = vmatpush1.bf16.msra.mxu0 %v581
    %850 = vmatprep.subr.bf16.mxu0 %v585
    %851 = vmatpush1.bf16.msra.mxu0 %v584
    %852 = vmatprep.subr.bf16.mxu0 %v588
    %853 = vmatpush1.bf16.msra.mxu0 %v587
    %854 = vmatprep.subr.bf16.mxu0 %v591
    %855 = vmatpush1.bf16.msra.mxu0 %v590
    %856 = vmatprep.subr.bf16.mxu0 %v594
    %857 = vmatpush1.bf16.msra.mxu0 %v593
    %858 = vmatprep.subr.bf16.mxu0 0
    %859 = vmatpush1.bf16.msra.mxu0 0
    %860 = vmatprep.subr.bf16.mxu0 0
    %861 = vmatpush1.bf16.msra.mxu0 0
    %862 = vmatprep.subr.bf16.mxu0 0
    %863 = vmatpush1.bf16.msra.mxu0 0
    %864 = vmatprep.subr.bf16.mxu0 0
    %865 = vmatpush1.bf16.msra.mxu0 0
    %866 = vmatprep.subr.bf16.mxu0 0
    %867 = vmatpush1.bf16.msra.mxu0 0
    %868 = vmatprep.subr.bf16.mxu0 0
    %869 = vmatpush1.bf16.msra.mxu0 0
    %870 = vmatprep.subr.bf16.mxu0 0
    %871 = vmatpush1.bf16.msra.mxu0 0
    %872 = vmatprep.subr.bf16.mxu0 0
    %873 = vmatpush1.bf16.msra.mxu0 0
    %874 = vmatprep.mubr.bf16.mxu0 0
    %875 = vmatmul.mubr.bf16.gmra.mrb[0].mxu0 %v841
    %v876 = vpop.f32.mrb[0].mxu0
    %v877 = vadd.f32 0.0, %v876
    %v878 = vpop.f32.mrb[0].mxu0
    %v879 = vadd.f32 0.0, %v878
    %v880 = vpop.f32.mrb[0].mxu0
    %v881 = vpop.f32.mrb[0].mxu0
    %882 = vdwg.mxu0
    %883 = vmatprep.subr.bf16.mxu0 0
    %884 = vmatpush1.bf16.msra.mxu0 %v574
    %885 = vmatprep.subr.bf16.mxu0 0
    %886 = vmatpush1.bf16.msra.mxu0 %v577
    %887 = vmatprep.subr.bf16.mxu0 0
    %888 = vmatpush1.bf16.msra.mxu0 %v580
    %889 = vmatprep.subr.bf16.mxu0 0
    %890 = vmatpush1.bf16.msra.mxu0 %v583
    %891 = vmatprep.subr.bf16.mxu0 0
    %892 = vmatpush1.bf16.msra.mxu0 %v586
    %893 = vmatprep.subr.bf16.mxu0 0
    %894 = vmatpush1.bf16.msra.mxu0 %v589
    %895 = vmatprep.subr.bf16.mxu0 0
    %896 = vmatpush1.bf16.msra.mxu0 %v592
    %897 = vmatprep.subr.bf16.mxu0 0
    %898 = vmatpush1.bf16.msra.mxu0 %v595
    %899 = vmatprep.subr.bf16.mxu0 0
    %900 = vmatpush1.bf16.msra.mxu0 0
    %901 = vmatprep.subr.bf16.mxu0 0
    %902 = vmatpush1.bf16.msra.mxu0 0
    %903 = vmatprep.subr.bf16.mxu0 0
    %904 = vmatpush1.bf16.msra.mxu0 0
    %905 = vmatprep.subr.bf16.mxu0 0
    %906 = vmatpush1.bf16.msra.mxu0 0
    %907 = vmatprep.subr.bf16.mxu0 0
    %908 = vmatpush1.bf16.msra.mxu0 0
    %909 = vmatprep.subr.bf16.mxu0 0
    %910 = vmatpush1.bf16.msra.mxu0 0
    %911 = vmatprep.subr.bf16.mxu0 0
    %912 = vmatpush1.bf16.msra.mxu0 0
    %913 = vmatprep.subr.bf16.mxu0 0
    %914 = vmatpush1.bf16.msra.mxu0 0
    %915 = vmatprep.mubr.bf16.mxu0 0
    %916 = vmatmul.mubr.bf16.gmra.mrb[0].mxu0 %v841
    %v917 = vpop.f32.mrb[0].mxu0
    %v918 = vadd.f32 0.0, %v917
    %v919 = vpop.f32.mrb[0].mxu0
    %v920 = vpop.f32.mrb[0].mxu0
    %v921 = vpop.f32.mrb[0].mxu0
    %922 = vdwg.mxu0
    %v923 = vadd.f32 %v838, %v877
    %v924 = vxor.u32 %v923, 2147483648
    %v925 = vmul.f32 %v924, 1.442695
    %v926 = vpow.pop %v925
    %v927 = vadd.f32 %v926, 1.0
    %v928 = vrcp.pop %v927
    %v929 = vmul.f32 1.0, %v928
    %v930 = vadd.f32 %v839, %v879
    %v931 = vxor.u32 %v930, 2147483648
    %v932 = vmul.f32 %v931, 1.442695
    %v933 = vpow.pop %v932
    %v934 = vadd.f32 %v933, 1.0
    %v935 = vrcp.pop %v934
    %v936 = vmul.f32 1.0, %v935
    %v937 = vadd.f32 %v918, %v719
    %v938 = vmul.f32 %v929, %v937
    %v939 = vadd.f32 %v840, %v938
    %v940 = vtanh.pop %v939
    %v941 = vsub.f32 1.0, %v936
    %v942 = vmul.f32 %v941, %v940
    %v943 = vmul.f32 %v936, %v836
    %v944 = vadd.f32 %v942, %v943
    %s945 = scalar_lea.vmem [#allocation2], 72
    %v946 = vld [vmem:[%s945] sm:$0xff]
    %v947 = vld [vmem:[%s945 + $0x8] sm:$0xff]
    %v948 = vld [vmem:[%s945 + $0x10] sm:$0xff]
    %v949 = vpack.c.bf16 %v944, %v944
    %950 = vmatprep.subr.bf16.mxu0 %v573
    %951 = vmatpush1.bf16.msra.mxu0 %v572
    %952 = vmatprep.subr.bf16.mxu0 %v576
    %953 = vmatpush1.bf16.msra.mxu0 %v575
    %954 = vmatprep.subr.bf16.mxu0 %v579
    %955 = vmatpush1.bf16.msra.mxu0 %v578
    %956 = vmatprep.subr.bf16.mxu0 %v582
    %957 = vmatpush1.bf16.msra.mxu0 %v581
    %958 = vmatprep.subr.bf16.mxu0 %v585
    %959 = vmatpush1.bf16.msra.mxu0 %v584
    %960 = vmatprep.subr.bf16.mxu0 %v588
    %961 = vmatpush1.bf16.msra.mxu0 %v587
    %962 = vmatprep.subr.bf16.mxu0 %v591
    %963 = vmatpush1.bf16.msra.mxu0 %v590
    %964 = vmatprep.subr.bf16.mxu0 %v594
    %965 = vmatpush1.bf16.msra.mxu0 %v593
    %966 = vmatprep.subr.bf16.mxu0 0
    %967 = vmatpush1.bf16.msra.mxu0 0
    %968 = vmatprep.subr.bf16.mxu0 0
    %969 = vmatpush1.bf16.msra.mxu0 0
    %970 = vmatprep.subr.bf16.mxu0 0
    %971 = vmatpush1.bf16.msra.mxu0 0
    %972 = vmatprep.subr.bf16.mxu0 0
    %973 = vmatpush1.bf16.msra.mxu0 0
    %974 = vmatprep.subr.bf16.mxu0 0
    %975 = vmatpush1.bf16.msra.mxu0 0
    %976 = vmatprep.subr.bf16.mxu0 0
    %977 = vmatpush1.bf16.msra.mxu0 0
    %978 = vmatprep.subr.bf16.mxu0 0
    %979 = vmatpush1.bf16.msra.mxu0 0
    %980 = vmatprep.subr.bf16.mxu0 0
    %981 = vmatpush1.bf16.msra.mxu0 0
    %982 = vmatprep.mubr.bf16.mxu0 0
    %983 = vmatmul.mubr.bf16.gmra.mrb[0].mxu0 %v949
    %v984 = vpop.f32.mrb[0].mxu0
    %v985 = vadd.f32 0.0, %v984
    %v986 = vpop.f32.mrb[0].mxu0
    %v987 = vadd.f32 0.0, %v986
    %v988 = vpop.f32.mrb[0].mxu0
    %v989 = vpop.f32.mrb[0].mxu0
    %990 = vdwg.mxu0
    %991 = vmatprep.subr.bf16.mxu0 0
    %992 = vmatpush1.bf16.msra.mxu0 %v574
    %993 = vmatprep.subr.bf16.mxu0 0
    %994 = vmatpush1.bf16.msra.mxu0 %v577
    %995 = vmatprep.subr.bf16.mxu0 0
    %996 = vmatpush1.bf16.msra.mxu0 %v580
    %997 = vmatprep.subr.bf16.mxu0 0
    %998 = vmatpush1.bf16.msra.mxu0 %v583
    %999 = vmatprep.subr.bf16.mxu0 0
    %1000 = vmatpush1.bf16.msra.mxu0 %v586
    %1001 = vmatprep.subr.bf16.mxu0 0
    %1002 = vmatpush1.bf16.msra.mxu0 %v589
    %1003 = vmatprep.subr.bf16.mxu0 0
    %1004 = vmatpush1.bf16.msra.mxu0 %v592
    %1005 = vmatprep.subr.bf16.mxu0 0
    %1006 = vmatpush1.bf16.msra.mxu0 %v595
    %1007 = vmatprep.subr.bf16.mxu0 0
    %1008 = vmatpush1.bf16.msra.mxu0 0
    %1009 = vmatprep.subr.bf16.mxu0 0
    %1010 = vmatpush1.bf16.msra.mxu0 0
    %1011 = vmatprep.subr.bf16.mxu0 0
    %1012 = vmatpush1.bf16.msra.mxu0 0
    %1013 = vmatprep.subr.bf16.mxu0 0
    %1014 = vmatpush1.bf16.msra.mxu0 0
    %1015 = vmatprep.subr.bf16.mxu0 0
    %1016 = vmatpush1.bf16.msra.mxu0 0
    %1017 = vmatprep.subr.bf16.mxu0 0
    %1018 = vmatpush1.bf16.msra.mxu0 0
    %1019 = vmatprep.subr.bf16.mxu0 0
    %1020 = vmatpush1.bf16.msra.mxu0 0
    %1021 = vmatprep.subr.bf16.mxu0 0
    %1022 = vmatpush1.bf16.msra.mxu0 0
    %1023 = vmatprep.mubr.bf16.mxu0 0
    %1024 = vmatmul.mubr.bf16.gmra.mrb[0].mxu0 %v949
    %v1025 = vpop.f32.mrb[0].mxu0
    %v1026 = vadd.f32 0.0, %v1025
    %v1027 = vpop.f32.mrb[0].mxu0
    %v1028 = vpop.f32.mrb[0].mxu0
    %v1029 = vpop.f32.mrb[0].mxu0
    %1030 = vdwg.mxu0
    %v1031 = vadd.f32 %v946, %v985
    %v1032 = vxor.u32 %v1031, 2147483648
    %v1033 = vmul.f32 %v1032, 1.442695
    %v1034 = vpow.pop %v1033
    %v1035 = vadd.f32 %v1034, 1.0
    %v1036 = vrcp.pop %v1035
    %v1037 = vmul.f32 1.0, %v1036
    %v1038 = vadd.f32 %v947, %v987
    %v1039 = vxor.u32 %v1038, 2147483648
    %v1040 = vmul.f32 %v1039, 1.442695
    %v1041 = vpow.pop %v1040
    %v1042 = vadd.f32 %v1041, 1.0
    %v1043 = vrcp.pop %v1042
    %v1044 = vmul.f32 1.0, %v1043
    %v1045 = vadd.f32 %v1026, %v719
    %v1046 = vmul.f32 %v1037, %v1045
    %v1047 = vadd.f32 %v948, %v1046
    %v1048 = vtanh.pop %v1047
    %v1049 = vsub.f32 1.0, %v1044
    %v1050 = vmul.f32 %v1049, %v1048
    %v1051 = vmul.f32 %v1044, %v944
    %v1052 = vadd.f32 %v1050, %v1051
    %s1053 = scalar_lea.vmem [#allocation2], 96
    %v1054 = vld [vmem:[%s1053] sm:$0xff]
    %v1055 = vld [vmem:[%s1053 + $0x8] sm:$0xff]
    %v1056 = vld [vmem:[%s1053 + $0x10] sm:$0xff]
    %v1057 = vpack.c.bf16 %v1052, %v1052
    %1058 = vmatprep.subr.bf16.mxu0 %v573
    %1059 = vmatpush1.bf16.msra.mxu0 %v572
    %1060 = vmatprep.subr.bf16.mxu0 %v576
    %1061 = vmatpush1.bf16.msra.mxu0 %v575
    %1062 = vmatprep.subr.bf16.mxu0 %v579
    %1063 = vmatpush1.bf16.msra.mxu0 %v578
    %1064 = vmatprep.subr.bf16.mxu0 %v582
    %1065 = vmatpush1.bf16.msra.mxu0 %v581
    %1066 = vmatprep.subr.bf16.mxu0 %v585
    %1067 = vmatpush1.bf16.msra.mxu0 %v584
    %1068 = vmatprep.subr.bf16.mxu0 %v588
    %1069 = vmatpush1.bf16.msra.mxu0 %v587
    %1070 = vmatprep.subr.bf16.mxu0 %v591
    %1071 = vmatpush1.bf16.msra.mxu0 %v590
    %1072 = vmatprep.subr.bf16.mxu0 %v594
    %1073 = vmatpush1.bf16.msra.mxu0 %v593
    %1074 = vmatprep.subr.bf16.mxu0 0
    %1075 = vmatpush1.bf16.msra.mxu0 0
    %1076 = vmatprep.subr.bf16.mxu0 0
    %1077 = vmatpush1.bf16.msra.mxu0 0
    %1078 = vmatprep.subr.bf16.mxu0 0
    %1079 = vmatpush1.bf16.msra.mxu0 0
    %1080 = vmatprep.subr.bf16.mxu0 0
    %1081 = vmatpush1.bf16.msra.mxu0 0
    %1082 = vmatprep.subr.bf16.mxu0 0
    %1083 = vmatpush1.bf16.msra.mxu0 0
    %1084 = vmatprep.subr.bf16.mxu0 0
    %1085 = vmatpush1.bf16.msra.mxu0 0
    %1086 = vmatprep.subr.bf16.mxu0 0
    %1087 = vmatpush1.bf16.msra.mxu0 0
    %1088 = vmatprep.subr.bf16.mxu0 0
    %1089 = vmatpush1.bf16.msra.mxu0 0
    %1090 = vmatprep.mubr.bf16.mxu0 0
    %1091 = vmatmul.mubr.bf16.gmra.mrb[0].mxu0 %v1057
    %v1092 = vpop.f32.mrb[0].mxu0
    %v1093 = vadd.f32 0.0, %v1092
    %v1094 = vpop.f32.mrb[0].mxu0
    %v1095 = vadd.f32 0.0, %v1094
    %v1096 = vpop.f32.mrb[0].mxu0
    %v1097 = vpop.f32.mrb[0].mxu0
    %1098 = vdwg.mxu0
    %1099 = vmatprep.subr.bf16.mxu0 0
    %1100 = vmatpush1.bf16.msra.mxu0 %v574
    %1101 = vmatprep.subr.bf16.mxu0 0
    %1102 = vmatpush1.bf16.msra.mxu0 %v577
    %1103 = vmatprep.subr.bf16.mxu0 0
    %1104 = vmatpush1.bf16.msra.mxu0 %v580
    %1105 = vmatprep.subr.bf16.mxu0 0
    %1106 = vmatpush1.bf16.msra.mxu0 %v583
    %1107 = vmatprep.subr.bf16.mxu0 0
    %1108 = vmatpush1.bf16.msra.mxu0 %v586
    %1109 = vmatprep.subr.bf16.mxu0 0
    %1110 = vmatpush1.bf16.msra.mxu0 %v589
    %1111 = vmatprep.subr.bf16.mxu0 0
    %1112 = vmatpush1.bf16.msra.mxu0 %v592
    %1113 = vmatprep.subr.bf16.mxu0 0
    %1114 = vmatpush1.bf16.msra.mxu0 %v595
    %1115 = vmatprep.subr.bf16.mxu0 0
    %1116 = vmatpush1.bf16.msra.mxu0 0
    %1117 = vmatprep.subr.bf16.mxu0 0
    %1118 = vmatpush1.bf16.msra.mxu0 0
    %1119 = vmatprep.subr.bf16.mxu0 0
    %1120 = vmatpush1.bf16.msra.mxu0 0
    %1121 = vmatprep.subr.bf16.mxu0 0
    %1122 = vmatpush1.bf16.msra.mxu0 0
    %1123 = vmatprep.subr.bf16.mxu0 0
    %1124 = vmatpush1.bf16.msra.mxu0 0
    %1125 = vmatprep.subr.bf16.mxu0 0
    %1126 = vmatpush1.bf16.msra.mxu0 0
    %1127 = vmatprep.subr.bf16.mxu0 0
    %1128 = vmatpush1.bf16.msra.mxu0 0
    %1129 = vmatprep.subr.bf16.mxu0 0
    %1130 = vmatpush1.bf16.msra.mxu0 0
    %1131 = vmatprep.mubr.bf16.mxu0 0
    %1132 = vmatmul.mubr.bf16.gmra.mrb[0].mxu0 %v1057
    %v1133 = vpop.f32.mrb[0].mxu0
    %v1134 = vadd.f32 0.0, %v1133
    %v1135 = vpop.f32.mrb[0].mxu0
    %v1136 = vpop.f32.mrb[0].mxu0
    %v1137 = vpop.f32.mrb[0].mxu0
    %1138 = vdwg.mxu0
    %v1139 = vadd.f32 %v1054, %v1093
    %v1140 = vxor.u32 %v1139, 2147483648
    %v1141 = vmul.f32 %v1140, 1.442695
    %v1142 = vpow.pop %v1141
    %v1143 = vadd.f32 %v1142, 1.0
    %v1144 = vrcp.pop %v1143
    %v1145 = vmul.f32 1.0, %v1144
    %v1146 = vadd.f32 %v1055, %v1095
    %v1147 = vxor.u32 %v1146, 2147483648
    %v1148 = vmul.f32 %v1147, 1.442695
    %v1149 = vpow.pop %v1148
    %v1150 = vadd.f32 %v1149, 1.0
    %v1151 = vrcp.pop %v1150
    %v1152 = vmul.f32 1.0, %v1151
    %v1153 = vadd.f32 %v1134, %v719
    %v1154 = vmul.f32 %v1145, %v1153
    %v1155 = vadd.f32 %v1056, %v1154
    %v1156 = vtanh.pop %v1155
    %v1157 = vsub.f32 1.0, %v1152
    %v1158 = vmul.f32 %v1157, %v1156
    %v1159 = vmul.f32 %v1152, %v1052
    %v1160 = vadd.f32 %v1158, %v1159
    %s1161 = scalar_lea.vmem [#allocation2], 120
    %v1162 = vld [vmem:[%s1161] sm:$0xff]
    %v1163 = vld [vmem:[%s1161 + $0x8] sm:$0xff]
    %v1164 = vld [vmem:[%s1161 + $0x10] sm:$0xff]
    %v1165 = vpack.c.bf16 %v1160, %v1160
    %1166 = vmatprep.subr.bf16.mxu0 %v573
    %1167 = vmatpush1.bf16.msra.mxu0 %v572
    %1168 = vmatprep.subr.bf16.mxu0 %v576
    %1169 = vmatpush1.bf16.msra.mxu0 %v575
    %1170 = vmatprep.subr.bf16.mxu0 %v579
    %1171 = vmatpush1.bf16.msra.mxu0 %v578
    %1172 = vmatprep.subr.bf16.mxu0 %v582
    %1173 = vmatpush1.bf16.msra.mxu0 %v581
    %1174 = vmatprep.subr.bf16.mxu0 %v585
    %1175 = vmatpush1.bf16.msra.mxu0 %v584
    %1176 = vmatprep.subr.bf16.mxu0 %v588
    %1177 = vmatpush1.bf16.msra.mxu0 %v587
    %1178 = vmatprep.subr.bf16.mxu0 %v591
    %1179 = vmatpush1.bf16.msra.mxu0 %v590
    %1180 = vmatprep.subr.bf16.mxu0 %v594
    %1181 = vmatpush1.bf16.msra.mxu0 %v593
    %1182 = vmatprep.subr.bf16.mxu0 0
    %1183 = vmatpush1.bf16.msra.mxu0 0
    %1184 = vmatprep.subr.bf16.mxu0 0
    %1185 = vmatpush1.bf16.msra.mxu0 0
    %1186 = vmatprep.subr.bf16.mxu0 0
    %1187 = vmatpush1.bf16.msra.mxu0 0
    %1188 = vmatprep.subr.bf16.mxu0 0
    %1189 = vmatpush1.bf16.msra.mxu0 0
    %1190 = vmatprep.subr.bf16.mxu0 0
    %1191 = vmatpush1.bf16.msra.mxu0 0
    %1192 = vmatprep.subr.bf16.mxu0 0
    %1193 = vmatpush1.bf16.msra.mxu0 0
    %1194 = vmatprep.subr.bf16.mxu0 0
    %1195 = vmatpush1.bf16.msra.mxu0 0
    %1196 = vmatprep.subr.bf16.mxu0 0
    %1197 = vmatpush1.bf16.msra.mxu0 0
    %1198 = vmatprep.mubr.bf16.mxu0 0
    %1199 = vmatmul.mubr.bf16.gmra.mrb[0].mxu0 %v1165
    %v1200 = vpop.f32.mrb[0].mxu0
    %v1201 = vadd.f32 0.0, %v1200
    %v1202 = vpop.f32.mrb[0].mxu0
    %v1203 = vadd.f32 0.0, %v1202
    %v1204 = vpop.f32.mrb[0].mxu0
    %v1205 = vpop.f32.mrb[0].mxu0
    %1206 = vdwg.mxu0
    %1207 = vmatprep.subr.bf16.mxu0 0
    %1208 = vmatpush1.bf16.msra.mxu0 %v574
    %1209 = vmatprep.subr.bf16.mxu0 0
    %1210 = vmatpush1.bf16.msra.mxu0 %v577
    %1211 = vmatprep.subr.bf16.mxu0 0
    %1212 = vmatpush1.bf16.msra.mxu0 %v580
    %1213 = vmatprep.subr.bf16.mxu0 0
    %1214 = vmatpush1.bf16.msra.mxu0 %v583
    %1215 = vmatprep.subr.bf16.mxu0 0
    %1216 = vmatpush1.bf16.msra.mxu0 %v586
    %1217 = vmatprep.subr.bf16.mxu0 0
    %1218 = vmatpush1.bf16.msra.mxu0 %v589
    %1219 = vmatprep.subr.bf16.mxu0 0
    %1220 = vmatpush1.bf16.msra.mxu0 %v592
    %1221 = vmatprep.subr.bf16.mxu0 0
    %1222 = vmatpush1.bf16.msra.mxu0 %v595
    %1223 = vmatprep.subr.bf16.mxu0 0
    %1224 = vmatpush1.bf16.msra.mxu0 0
    %1225 = vmatprep.subr.bf16.mxu0 0
    %1226 = vmatpush1.bf16.msra.mxu0 0
    %1227 = vmatprep.subr.bf16.mxu0 0
    %1228 = vmatpush1.bf16.msra.mxu0 0
    %1229 = vmatprep.subr.bf16.mxu0 0
    %1230 = vmatpush1.bf16.msra.mxu0 0
    %1231 = vmatprep.subr.bf16.mxu0 0
    %1232 = vmatpush1.bf16.msra.mxu0 0
    %1233 = vmatprep.subr.bf16.mxu0 0
    %1234 = vmatpush1.bf16.msra.mxu0 0
    %1235 = vmatprep.subr.bf16.mxu0 0
    %1236 = vmatpush1.bf16.msra.mxu0 0
    %1237 = vmatprep.subr.bf16.mxu0 0
    %1238 = vmatpush1.bf16.msra.mxu0 0
    %1239 = vmatprep.mubr.bf16.mxu0 0
    %1240 = vmatmul.mubr.bf16.gmra.mrb[0].mxu0 %v1165
    %v1241 = vpop.f32.mrb[0].mxu0
    %v1242 = vadd.f32 0.0, %v1241
    %v1243 = vpop.f32.mrb[0].mxu0
    %v1244 = vpop.f32.mrb[0].mxu0
    %v1245 = vpop.f32.mrb[0].mxu0
    %1246 = vdwg.mxu0
    %v1247 = vadd.f32 %v1162, %v1201
    %v1248 = vxor.u32 %v1247, 2147483648
    %v1249 = vmul.f32 %v1248, 1.442695
    %v1250 = vpow.pop %v1249
    %v1251 = vadd.f32 %v1250, 1.0
    %v1252 = vrcp.pop %v1251
    %v1253 = vmul.f32 1.0, %v1252
    %v1254 = vadd.f32 %v1163, %v1203
    %v1255 = vxor.u32 %v1254, 2147483648
    %v1256 = vmul.f32 %v1255, 1.442695
    %v1257 = vpow.pop %v1256
    %v1258 = vadd.f32 %v1257, 1.0
    %v1259 = vrcp.pop %v1258
    %v1260 = vmul.f32 1.0, %v1259
    %v1261 = vadd.f32 %v1242, %v719
    %v1262 = vmul.f32 %v1253, %v1261
    %v1263 = vadd.f32 %v1164, %v1262
    %v1264 = vtanh.pop %v1263
    %v1265 = vsub.f32 1.0, %v1260
    %v1266 = vmul.f32 %v1265, %v1264
    %v1267 = vmul.f32 %v1260, %v1160
    %v1268 = vadd.f32 %v1266, %v1267
    %s1269 = scalar_lea.vmem [#allocation2], 144
    %v1270 = vld [vmem:[%s1269] sm:$0xff]
    %v1271 = vld [vmem:[%s1269 + $0x8] sm:$0xff]
    %v1272 = vld [vmem:[%s1269 + $0x10] sm:$0xff]
    %v1273 = vpack.c.bf16 %v1268, %v1268
    %1274 = vmatprep.subr.bf16.mxu0 %v573
    %1275 = vmatpush1.bf16.msra.mxu0 %v572
    %1276 = vmatprep.subr.bf16.mxu0 %v576
    %1277 = vmatpush1.bf16.msra.mxu0 %v575
    %1278 = vmatprep.subr.bf16.mxu0 %v579
    %1279 = vmatpush1.bf16.msra.mxu0 %v578
    %1280 = vmatprep.subr.bf16.mxu0 %v582
    %1281 = vmatpush1.bf16.msra.mxu0 %v581
    %1282 = vmatprep.subr.bf16.mxu0 %v585
    %1283 = vmatpush1.bf16.msra.mxu0 %v584
    %1284 = vmatprep.subr.bf16.mxu0 %v588
    %1285 = vmatpush1.bf16.msra.mxu0 %v587
    %1286 = vmatprep.subr.bf16.mxu0 %v591
    %1287 = vmatpush1.bf16.msra.mxu0 %v590
    %1288 = vmatprep.subr.bf16.mxu0 %v594
    %1289 = vmatpush1.bf16.msra.mxu0 %v593
    %1290 = vmatprep.subr.bf16.mxu0 0
    %1291 = vmatpush1.bf16.msra.mxu0 0
    %1292 = vmatprep.subr.bf16.mxu0 0
    %1293 = vmatpush1.bf16.msra.mxu0 0
    %1294 = vmatprep.subr.bf16.mxu0 0
    %1295 = vmatpush1.bf16.msra.mxu0 0
    %1296 = vmatprep.subr.bf16.mxu0 0
    %1297 = vmatpush1.bf16.msra.mxu0 0
    %1298 = vmatprep.subr.bf16.mxu0 0
    %1299 = vmatpush1.bf16.msra.mxu0 0
    %1300 = vmatprep.subr.bf16.mxu0 0
    %1301 = vmatpush1.bf16.msra.mxu0 0
    %1302 = vmatprep.subr.bf16.mxu0 0
    %1303 = vmatpush1.bf16.msra.mxu0 0
    %1304 = vmatprep.subr.bf16.mxu0 0
    %1305 = vmatpush1.bf16.msra.mxu0 0
    %1306 = vmatprep.mubr.bf16.mxu0 0
    %1307 = vmatmul.mubr.bf16.gmra.mrb[0].mxu0 %v1273
    %v1308 = vpop.f32.mrb[0].mxu0
    %v1309 = vadd.f32 0.0, %v1308
    %v1310 = vpop.f32.mrb[0].mxu0
    %v1311 = vadd.f32 0.0, %v1310
    %v1312 = vpop.f32.mrb[0].mxu0
    %v1313 = vpop.f32.mrb[0].mxu0
    %1314 = vdwg.mxu0
    %1315 = vmatprep.subr.bf16.mxu0 0
    %1316 = vmatpush1.bf16.msra.mxu0 %v574
    %1317 = vmatprep.subr.bf16.mxu0 0
    %1318 = vmatpush1.bf16.msra.mxu0 %v577
    %1319 = vmatprep.subr.bf16.mxu0 0
    %1320 = vmatpush1.bf16.msra.mxu0 %v580
    %1321 = vmatprep.subr.bf16.mxu0 0
    %1322 = vmatpush1.bf16.msra.mxu0 %v583
    %1323 = vmatprep.subr.bf16.mxu0 0
    %1324 = vmatpush1.bf16.msra.mxu0 %v586
    %1325 = vmatprep.subr.bf16.mxu0 0
    %1326 = vmatpush1.bf16.msra.mxu0 %v589
    %1327 = vmatprep.subr.bf16.mxu0 0
    %1328 = vmatpush1.bf16.msra.mxu0 %v592
    %1329 = vmatprep.subr.bf16.mxu0 0
    %1330 = vmatpush1.bf16.msra.mxu0 %v595
    %1331 = vmatprep.subr.bf16.mxu0 0
    %1332 = vmatpush1.bf16.msra.mxu0 0
    %1333 = vmatprep.subr.bf16.mxu0 0
    %1334 = vmatpush1.bf16.msra.mxu0 0
    %1335 = vmatprep.subr.bf16.mxu0 0
    %1336 = vmatpush1.bf16.msra.mxu0 0
    %1337 = vmatprep.subr.bf16.mxu0 0
    %1338 = vmatpush1.bf16.msra.mxu0 0
    %1339 = vmatprep.subr.bf16.mxu0 0
    %1340 = vmatpush1.bf16.msra.mxu0 0
    %1341 = vmatprep.subr.bf16.mxu0 0
    %1342 = vmatpush1.bf16.msra.mxu0 0
    %1343 = vmatprep.subr.bf16.mxu0 0
    %1344 = vmatpush1.bf16.msra.mxu0 0
    %1345 = vmatprep.subr.bf16.mxu0 0
    %1346 = vmatpush1.bf16.msra.mxu0 0
    %1347 = vmatprep.mubr.bf16.mxu0 0
    %1348 = vmatmul.mubr.bf16.gmra.mrb[0].mxu0 %v1273
    %v1349 = vpop.f32.mrb[0].mxu0
    %v1350 = vadd.f32 0.0, %v1349
    %v1351 = vpop.f32.mrb[0].mxu0
    %v1352 = vpop.f32.mrb[0].mxu0
    %v1353 = vpop.f32.mrb[0].mxu0
    %1354 = vdwg.mxu0
    %v1355 = vadd.f32 %v1270, %v1309
    %v1356 = vxor.u32 %v1355, 2147483648
    %v1357 = vmul.f32 %v1356, 1.442695
    %v1358 = vpow.pop %v1357
    %v1359 = vadd.f32 %v1358, 1.0
    %v1360 = vrcp.pop %v1359
    %v1361 = vmul.f32 1.0, %v1360
    %v1362 = vadd.f32 %v1271, %v1311
    %v1363 = vxor.u32 %v1362, 2147483648
    %v1364 = vmul.f32 %v1363, 1.442695
    %v1365 = vpow.pop %v1364
    %v1366 = vadd.f32 %v1365, 1.0
    %v1367 = vrcp.pop %v1366
    %v1368 = vmul.f32 1.0, %v1367
    %v1369 = vadd.f32 %v1350, %v719
    %v1370 = vmul.f32 %v1361, %v1369
    %v1371 = vadd.f32 %v1272, %v1370
    %v1372 = vtanh.pop %v1371
    %v1373 = vsub.f32 1.0, %v1368
    %v1374 = vmul.f32 %v1373, %v1372
    %v1375 = vmul.f32 %v1368, %v1268
    %v1376 = vadd.f32 %v1374, %v1375
    %s1377 = scalar_lea.vmem [#allocation2], 168
    %v1378 = vld [vmem:[%s1377] sm:$0xff]
    %v1379 = vld [vmem:[%s1377 + $0x8] sm:$0xff]
    %v1380 = vld [vmem:[%s1377 + $0x10] sm:$0xff]
    %v1381 = vpack.c.bf16 %v1376, %v1376
    %1382 = vmatprep.subr.bf16.mxu0 %v573
    %1383 = vmatpush1.bf16.msra.mxu0 %v572
    %1384 = vmatprep.subr.bf16.mxu0 %v576
    %1385 = vmatpush1.bf16.msra.mxu0 %v575
    %1386 = vmatprep.subr.bf16.mxu0 %v579
    %1387 = vmatpush1.bf16.msra.mxu0 %v578
    %1388 = vmatprep.subr.bf16.mxu0 %v582
    %1389 = vmatpush1.bf16.msra.mxu0 %v581
    %1390 = vmatprep.subr.bf16.mxu0 %v585
    %1391 = vmatpush1.bf16.msra.mxu0 %v584
    %1392 = vmatprep.subr.bf16.mxu0 %v588
    %1393 = vmatpush1.bf16.msra.mxu0 %v587
    %1394 = vmatprep.subr.bf16.mxu0 %v591
    %1395 = vmatpush1.bf16.msra.mxu0 %v590
    %1396 = vmatprep.subr.bf16.mxu0 %v594
    %1397 = vmatpush1.bf16.msra.mxu0 %v593
    %1398 = vmatprep.subr.bf16.mxu0 0
    %1399 = vmatpush1.bf16.msra.mxu0 0
    %1400 = vmatprep.subr.bf16.mxu0 0
    %1401 = vmatpush1.bf16.msra.mxu0 0
    %1402 = vmatprep.subr.bf16.mxu0 0
    %1403 = vmatpush1.bf16.msra.mxu0 0
    %1404 = vmatprep.subr.bf16.mxu0 0
    %1405 = vmatpush1.bf16.msra.mxu0 0
    %1406 = vmatprep.subr.bf16.mxu0 0
    %1407 = vmatpush1.bf16.msra.mxu0 0
    %1408 = vmatprep.subr.bf16.mxu0 0
    %1409 = vmatpush1.bf16.msra.mxu0 0
    %1410 = vmatprep.subr.bf16.mxu0 0
    %1411 = vmatpush1.bf16.msra.mxu0 0
    %1412 = vmatprep.subr.bf16.mxu0 0
    %1413 = vmatpush1.bf16.msra.mxu0 0
    %1414 = vmatprep.mubr.bf16.mxu0 0
    %1415 = vmatmul.mubr.bf16.gmra.mrb[0].mxu0 %v1381
    %v1416 = vpop.f32.mrb[0].mxu0
    %v1417 = vadd.f32 0.0, %v1416
    %v1418 = vpop.f32.mrb[0].mxu0
    %v1419 = vadd.f32 0.0, %v1418
    %v1420 = vpop.f32.mrb[0].mxu0
    %v1421 = vpop.f32.mrb[0].mxu0
    %1422 = vdwg.mxu0
    %1423 = vmatprep.subr.bf16.mxu0 0
    %1424 = vmatpush1.bf16.msra.mxu0 %v574
    %1425 = vmatprep.subr.bf16.mxu0 0
    %1426 = vmatpush1.bf16.msra.mxu0 %v577
    %1427 = vmatprep.subr.bf16.mxu0 0
    %1428 = vmatpush1.bf16.msra.mxu0 %v580
    %1429 = vmatprep.subr.bf16.mxu0 0
    %1430 = vmatpush1.bf16.msra.mxu0 %v583
    %1431 = vmatprep.subr.bf16.mxu0 0
    %1432 = vmatpush1.bf16.msra.mxu0 %v586
    %1433 = vmatprep.subr.bf16.mxu0 0
    %1434 = vmatpush1.bf16.msra.mxu0 %v589
    %1435 = vmatprep.subr.bf16.mxu0 0
    %1436 = vmatpush1.bf16.msra.mxu0 %v592
    %1437 = vmatprep.subr.bf16.mxu0 0
    %1438 = vmatpush1.bf16.msra.mxu0 %v595
    %1439 = vmatprep.subr.bf16.mxu0 0
    %1440 = vmatpush1.bf16.msra.mxu0 0
    %1441 = vmatprep.subr.bf16.mxu0 0
    %1442 = vmatpush1.bf16.msra.mxu0 0
    %1443 = vmatprep.subr.bf16.mxu0 0
    %1444 = vmatpush1.bf16.msra.mxu0 0
    %1445 = vmatprep.subr.bf16.mxu0 0
    %1446 = vmatpush1.bf16.msra.mxu0 0
    %1447 = vmatprep.subr.bf16.mxu0 0
    %1448 = vmatpush1.bf16.msra.mxu0 0
    %1449 = vmatprep.subr.bf16.mxu0 0
    %1450 = vmatpush1.bf16.msra.mxu0 0
    %1451 = vmatprep.subr.bf16.mxu0 0
    %1452 = vmatpush1.bf16.msra.mxu0 0
    %1453 = vmatprep.subr.bf16.mxu0 0
    %1454 = vmatpush1.bf16.msra.mxu0 0
    %1455 = vmatprep.mubr.bf16.mxu0 0
    %1456 = vmatmul.mubr.bf16.gmra.mrb[0].mxu0 %v1381
    %v1457 = vpop.f32.mrb[0].mxu0
    %v1458 = vadd.f32 0.0, %v1457
    %v1459 = vpop.f32.mrb[0].mxu0
    %v1460 = vpop.f32.mrb[0].mxu0
    %v1461 = vpop.f32.mrb[0].mxu0
    %1462 = vdwg.mxu0
    %v1463 = vadd.f32 %v1378, %v1417
    %v1464 = vxor.u32 %v1463, 2147483648
    %v1465 = vmul.f32 %v1464, 1.442695
    %v1466 = vpow.pop %v1465
    %v1467 = vadd.f32 %v1466, 1.0
    %v1468 = vrcp.pop %v1467
    %v1469 = vmul.f32 1.0, %v1468
    %v1470 = vadd.f32 %v1379, %v1419
    %v1471 = vxor.u32 %v1470, 2147483648
    %v1472 = vmul.f32 %v1471, 1.442695
    %v1473 = vpow.pop %v1472
    %v1474 = vadd.f32 %v1473, 1.0
    %v1475 = vrcp.pop %v1474
    %v1476 = vmul.f32 1.0, %v1475
    %v1477 = vadd.f32 %v1458, %v719
    %v1478 = vmul.f32 %v1469, %v1477
    %v1479 = vadd.f32 %v1380, %v1478
    %v1480 = vtanh.pop %v1479
    %v1481 = vsub.f32 1.0, %v1476
    %v1482 = vmul.f32 %v1481, %v1480
    %v1483 = vmul.f32 %v1476, %v1376
    %v1484 = vadd.f32 %v1482, %v1483
    %v1485 = vld [vmem:[%s9] sm:$0x7]
    %v1486 = vld [vmem:[%s10] sm:$0x3]
    %v1488 = vlaneseq
    %v1489 = vshrl.u32 %v1488, 7
    %v1490 = vsub.s32 0, %v1489
    %v1491 = vrot.slane %v1486, %v1490
    %v1492 = vlaneseq
    %v1493 = vshrl.u32 %v1492, 7
    %v1494 = vsub.s32 1, %v1493
    %v1495 = vrot.slane %v1486, %v1494
    %v1496 = vcombine.low %v1491, %v1495
    %v1498 = vunpack.c.l.s4 1966171168
    %v1499 = vunpack.c.0.s8 %v1498
    %v1500 = vlaneseq
    %v1501 = vshrl.u32 %v1500, 7
    %v1502 = vsub.s32 %v1499, %v1501
    %v1503 = vrot.slane %v1496, %v1502
    %v1504 = vcombine.low %v1503, %v75
    %v1506 = vunpack.c.l.s4 1966171168
    %v1507 = vunpack.c.0.s8 %v1506
    %v1508 = vlaneseq
    %v1509 = vshrl.u32 %v1508, 7
    %v1510 = vsub.s32 %v1507, %v1509
    %v1511 = vrot.slane %v1504, %v1510
    %v1513 = vadd.f32 %v1485, %v1511
    %v1514 = vld [vmem:[%s10 + $0x2] sm:$0x1]
    %v1515 = vld [vmem:[%s1] sm:$0xf]
    %v1516 = vld [vmem:[%s1 + $0x4] sm:$0xf]
    %v1517 = vld [vmem:[%s1 + $0x8] sm:$0xf]
    %v1518 = vld [vmem:[%s1 + $0xc] sm:$0xf]
    %v1519 = vld [vmem:[%s1 + $0x10] sm:$0xf]
    %v1520 = vld [vmem:[%s1 + $0x14] sm:$0xf]
    %v1521 = vld [vmem:[%s1 + $0x18] sm:$0xf]
    %v1522 = vld [vmem:[%s1 + $0x1c] sm:$0xf]
    %v1523 = vld [vmem:[%s6] sm:$0xff]
    %v1524 = vld [vmem:[%s6 + $0x8] sm:$0xf]
    %v1525 = vld [vmem:[%s6 + $0xc] sm:$0xff]
    %v1526 = vld [vmem:[%s6 + $0x14] sm:$0xf]
    %v1527 = vld [vmem:[%s6 + $0x18] sm:$0xff]
    %v1528 = vld [vmem:[%s6 + $0x20] sm:$0xf]
    %v1529 = vld [vmem:[%s6 + $0x24] sm:$0xff]
    %v1530 = vld [vmem:[%s6 + $0x2c] sm:$0xf]
    %v1531 = vld [vmem:[%s6 + $0x30] sm:$0xff]
    %v1532 = vld [vmem:[%s6 + $0x38] sm:$0xf]
    %v1533 = vld [vmem:[%s6 + $0x3c] sm:$0xff]
    %v1534 = vld [vmem:[%s6 + $0x44] sm:$0xf]
    %v1535 = vld [vmem:[%s6 + $0x48] sm:$0xff]
    %v1536 = vld [vmem:[%s6 + $0x50] sm:$0xf]
    %v1537 = vld [vmem:[%s6 + $0x54] sm:$0xff]
    %v1538 = vld [vmem:[%s6 + $0x5c] sm:$0xf]
    %v1539 = vld [vmem:[%s6 + $0x60] sm:$0xff]
    %v1540 = vld [vmem:[%s6 + $0x68] sm:$0xf]
    %v1541 = vld [vmem:[%s6 + $0x6c] sm:$0xff]
    %v1542 = vld [vmem:[%s6 + $0x74] sm:$0xf]
    %v1543 = vld [vmem:[%s6 + $0x78] sm:$0xff]
    %v1544 = vld [vmem:[%s6 + $0x80] sm:$0xf]
    %v1545 = vld [vmem:[%s6 + $0x84] sm:$0xff]
    %v1546 = vld [vmem:[%s6 + $0x8c] sm:$0xf]
    %v1547 = vld [vmem:[%s6 + $0x90] sm:$0xff]
    %v1548 = vld [vmem:[%s6 + $0x98] sm:$0xf]
    %v1549 = vld [vmem:[%s6 + $0x9c] sm:$0xff]
    %v1550 = vld [vmem:[%s6 + $0xa4] sm:$0xf]
    %v1551 = vld [vmem:[%s6 + $0xa8] sm:$0xff]
    %v1552 = vld [vmem:[%s6 + $0xb0] sm:$0xf]
    %v1553 = vld [vmem:[%s6 + $0xb4] sm:$0xff]
    %v1554 = vld [vmem:[%s6 + $0xbc] sm:$0xf]
    %v1563 = vunpack.c.l.b16 %v1515
    %v1564 = vunpack.c.l.b16 %v1516
    %v1565 = vunpack.c.l.b16 %v1517
    %v1566 = vunpack.c.l.b16 %v1518
    %v1567 = vunpack.c.l.b16 %v1519
    %v1568 = vunpack.c.l.b16 %v1520
    %v1569 = vunpack.c.l.b16 %v1521
    %v1570 = vunpack.c.l.b16 %v1522
    %v1571 = vpack.c.b16 %v1564, %v1563
    %v1572 = vpack.c.b16 %v1566, %v1565
    %v1573 = vpack.c.b16 %v1568, %v1567
    %v1574 = vpack.c.b16 %v1570, %v1569
    %v1611 = vunpack.c.l.b16 %v1523
    %v1612 = vunpack.c.h.b16 %v1523
    %v1613 = vunpack.c.l.b16 %v1524
    %v1614 = vunpack.c.l.b16 %v1525
    %v1615 = vunpack.c.h.b16 %v1525
    %v1616 = vunpack.c.l.b16 %v1526
    %v1617 = vunpack.c.l.b16 %v1527
    %v1618 = vunpack.c.h.b16 %v1527
    %v1619 = vunpack.c.l.b16 %v1528
    %v1620 = vunpack.c.l.b16 %v1529
    %v1621 = vunpack.c.h.b16 %v1529
    %v1622 = vunpack.c.l.b16 %v1530
    %v1623 = vunpack.c.l.b16 %v1531
    %v1624 = vunpack.c.h.b16 %v1531
    %v1625 = vunpack.c.l.b16 %v1532
    %v1626 = vunpack.c.l.b16 %v1533
    %v1627 = vunpack.c.h.b16 %v1533
    %v1628 = vunpack.c.l.b16 %v1534
    %v1629 = vunpack.c.l.b16 %v1535
    %v1630 = vunpack.c.h.b16 %v1535
    %v1631 = vunpack.c.l.b16 %v1536
    %v1632 = vunpack.c.l.b16 %v1537
    %v1633 = vunpack.c.h.b16 %v1537
    %v1634 = vunpack.c.l.b16 %v1538
    %v1635 = vunpack.c.l.b16 %v1539
    %v1636 = vunpack.c.h.b16 %v1539
    %v1637 = vunpack.c.l.b16 %v1540
    %v1638 = vunpack.c.l.b16 %v1541
    %v1639 = vunpack.c.h.b16 %v1541
    %v1640 = vunpack.c.l.b16 %v1542
    %v1641 = vunpack.c.l.b16 %v1543
    %v1642 = vunpack.c.h.b16 %v1543
    %v1643 = vunpack.c.l.b16 %v1544
    %v1644 = vunpack.c.l.b16 %v1545
    %v1645 = vunpack.c.h.b16 %v1545
    %v1646 = vunpack.c.l.b16 %v1546
    %v1647 = vunpack.c.l.b16 %v1547
    %v1648 = vunpack.c.h.b16 %v1547
    %v1649 = vunpack.c.l.b16 %v1548
    %v1650 = vunpack.c.l.b16 %v1549
    %v1651 = vunpack.c.h.b16 %v1549
    %v1652 = vunpack.c.l.b16 %v1550
    %v1653 = vunpack.c.l.b16 %v1551
    %v1654 = vunpack.c.h.b16 %v1551
    %v1655 = vunpack.c.l.b16 %v1552
    %v1656 = vunpack.c.l.b16 %v1553
    %v1657 = vunpack.c.h.b16 %v1553
    %v1658 = vunpack.c.l.b16 %v1554
    %v1659 = vpack.c.b16 %v1614, %v1611
    %v1660 = vpack.c.b16 %v1615, %v1612
    %v1661 = vpack.c.b16 %v1616, %v1613
    %v1662 = vpack.c.b16 %v1620, %v1617
    %v1663 = vpack.c.b16 %v1621, %v1618
    %v1664 = vpack.c.b16 %v1622, %v1619
    %v1665 = vpack.c.b16 %v1626, %v1623
    %v1666 = vpack.c.b16 %v1627, %v1624
    %v1667 = vpack.c.b16 %v1628, %v1625
    %v1668 = vpack.c.b16 %v1632, %v1629
    %v1669 = vpack.c.b16 %v1633, %v1630
    %v1670 = vpack.c.b16 %v1634, %v1631
    %v1671 = vpack.c.b16 %v1638, %v1635
    %v1672 = vpack.c.b16 %v1639, %v1636
    %v1673 = vpack.c.b16 %v1640, %v1637
    %v1674 = vpack.c.b16 %v1644, %v1641
    %v1675 = vpack.c.b16 %v1645, %v1642
    %v1676 = vpack.c.b16 %v1646, %v1643
    %v1677 = vpack.c.b16 %v1650, %v1647
    %v1678 = vpack.c.b16 %v1651, %v1648
    %v1679 = vpack.c.b16 %v1652, %v1649
    %v1680 = vpack.c.b16 %v1656, %v1653
    %v1681 = vpack.c.b16 %v1657, %v1654
    %v1682 = vpack.c.b16 %v1658, %v1655
    %1707 = vmatprep.subr.bf16.mxu0 %v1660
    %1708 = vmatpush1.bf16.msra.mxu0 %v1659
    %1709 = vmatprep.subr.bf16.mxu0 %v1663
    %1710 = vmatpush1.bf16.msra.mxu0 %v1662
    %1711 = vmatprep.subr.bf16.mxu0 %v1666
    %1712 = vmatpush1.bf16.msra.mxu0 %v1665
    %1713 = vmatprep.subr.bf16.mxu0 %v1669
    %1714 = vmatpush1.bf16.msra.mxu0 %v1668
    %1715 = vmatprep.subr.bf16.mxu0 %v1672
    %1716 = vmatpush1.bf16.msra.mxu0 %v1671
    %1717 = vmatprep.subr.bf16.mxu0 %v1675
    %1718 = vmatpush1.bf16.msra.mxu0 %v1674
    %1719 = vmatprep.subr.bf16.mxu0 %v1678
    %1720 = vmatpush1.bf16.msra.mxu0 %v1677
    %1721 = vmatprep.subr.bf16.mxu0 %v1681
    %1722 = vmatpush1.bf16.msra.mxu0 %v1680
    %1723 = vmatprep.subr.bf16.mxu0 0
    %1724 = vmatpush1.bf16.msra.mxu0 0
    %1725 = vmatprep.subr.bf16.mxu0 0
    %1726 = vmatpush1.bf16.msra.mxu0 0
    %1727 = vmatprep.subr.bf16.mxu0 0
    %1728 = vmatpush1.bf16.msra.mxu0 0
    %1729 = vmatprep.subr.bf16.mxu0 0
    %1730 = vmatpush1.bf16.msra.mxu0 0
    %1731 = vmatprep.subr.bf16.mxu0 0
    %1732 = vmatpush1.bf16.msra.mxu0 0
    %1733 = vmatprep.subr.bf16.mxu0 0
    %1734 = vmatpush1.bf16.msra.mxu0 0
    %1735 = vmatprep.subr.bf16.mxu0 0
    %1736 = vmatpush1.bf16.msra.mxu0 0
    %1737 = vmatprep.subr.bf16.mxu0 0
    %1738 = vmatpush1.bf16.msra.mxu0 0
    %1739 = vmatprep.mubr.bf16.mxu0 0
    %1740 = vmatmul.mubr.bf16.gmra.mrb[0].mxu0 %v1571
    %v1741 = vpop.f32.mrb[0].mxu0
    %v1742 = vadd.f32 0.0, %v1741
    %v1743 = vpop.f32.mrb[0].mxu0
    %v1744 = vadd.f32 0.0, %v1743
    %v1745 = vpop.f32.mrb[0].mxu0
    %v1746 = vadd.f32 0.0, %v1745
    %v1747 = vpop.f32.mrb[0].mxu0
    %v1748 = vadd.f32 0.0, %v1747
    %1749 = vmatprep.mubr.bf16.mxu0 0
    %1750 = vmatmul.mubr.bf16.gmra.mrb[0].mxu0 %v1572
    %v1751 = vpop.f32.mrb[0].mxu0
    %v1752 = vadd.f32 0.0, %v1751
    %v1753 = vpop.f32.mrb[0].mxu0
    %v1754 = vadd.f32 0.0, %v1753
    %v1755 = vpop.f32.mrb[0].mxu0
    %v1756 = vadd.f32 0.0, %v1755
    %v1757 = vpop.f32.mrb[0].mxu0
    %v1758 = vadd.f32 0.0, %v1757
    %1759 = vmatprep.mubr.bf16.mxu0 0
    %1760 = vmatmul.mubr.bf16.gmra.mrb[0].mxu0 %v1573
    %v1761 = vpop.f32.mrb[0].mxu0
    %v1762 = vadd.f32 0.0, %v1761
    %v1763 = vpop.f32.mrb[0].mxu0
    %v1764 = vadd.f32 0.0, %v1763
    %v1765 = vpop.f32.mrb[0].mxu0
    %v1766 = vadd.f32 0.0, %v1765
    %v1767 = vpop.f32.mrb[0].mxu0
    %v1768 = vadd.f32 0.0, %v1767
    %1769 = vmatprep.mubr.bf16.mxu0 0
    %1770 = vmatmul.mubr.bf16.gmra.mrb[0].mxu0 %v1574
    %v1771 = vpop.f32.mrb[0].mxu0
    %v1772 = vadd.f32 0.0, %v1771
    %v1773 = vpop.f32.mrb[0].mxu0
    %v1774 = vadd.f32 0.0, %v1773
    %v1775 = vpop.f32.mrb[0].mxu0
    %v1776 = vadd.f32 0.0, %v1775
    %v1777 = vpop.f32.mrb[0].mxu0
    %v1778 = vadd.f32 0.0, %v1777
    %1779 = vdwg.mxu0
    %1780 = vmatprep.subr.bf16.mxu0 0
    %1781 = vmatpush1.bf16.msra.mxu0 %v1661
    %1782 = vmatprep.subr.bf16.mxu0 0
    %1783 = vmatpush1.bf16.msra.mxu0 %v1664
    %1784 = vmatprep.subr.bf16.mxu0 0
    %1785 = vmatpush1.bf16.msra.mxu0 %v1667
    %1786 = vmatprep.subr.bf16.mxu0 0
    %1787 = vmatpush1.bf16.msra.mxu0 %v1670
    %1788 = vmatprep.subr.bf16.mxu0 0
    %1789 = vmatpush1.bf16.msra.mxu0 %v1673
    %1790 = vmatprep.subr.bf16.mxu0 0
    %1791 = vmatpush1.bf16.msra.mxu0 %v1676
    %1792 = vmatprep.subr.bf16.mxu0 0
    %1793 = vmatpush1.bf16.msra.mxu0 %v1679
    %1794 = vmatprep.subr.bf16.mxu0 0
    %1795 = vmatpush1.bf16.msra.mxu0 %v1682
    %1796 = vmatprep.subr.bf16.mxu0 0
    %1797 = vmatpush1.bf16.msra.mxu0 0
    %1798 = vmatprep.subr.bf16.mxu0 0
    %1799 = vmatpush1.bf16.msra.mxu0 0
    %1800 = vmatprep.subr.bf16.mxu0 0
    %1801 = vmatpush1.bf16.msra.mxu0 0
    %1802 = vmatprep.subr.bf16.mxu0 0
    %1803 = vmatpush1.bf16.msra.mxu0 0
    %1804 = vmatprep.subr.bf16.mxu0 0
    %1805 = vmatpush1.bf16.msra.mxu0 0
    %1806 = vmatprep.subr.bf16.mxu0 0
    %1807 = vmatpush1.bf16.msra.mxu0 0
    %1808 = vmatprep.subr.bf16.mxu0 0
    %1809 = vmatpush1.bf16.msra.mxu0 0
    %1810 = vmatprep.subr.bf16.mxu0 0
    %1811 = vmatpush1.bf16.msra.mxu0 0
    %1812 = vmatprep.mubr.bf16.mxu0 0
    %1813 = vmatmul.mubr.bf16.gmra.mrb[0].mxu0 %v1571
    %v1814 = vpop.f32.mrb[0].mxu0
    %v1815 = vadd.f32 0.0, %v1814
    %v1816 = vpop.f32.mrb[0].mxu0
    %v1817 = vpop.f32.mrb[0].mxu0
    %v1818 = vadd.f32 0.0, %v1817
    %v1819 = vpop.f32.mrb[0].mxu0
    %1820 = vmatprep.mubr.bf16.mxu0 0
    %1821 = vmatmul.mubr.bf16.gmra.mrb[0].mxu0 %v1572
    %v1822 = vpop.f32.mrb[0].mxu0
    %v1823 = vadd.f32 0.0, %v1822
    %v1824 = vpop.f32.mrb[0].mxu0
    %v1825 = vpop.f32.mrb[0].mxu0
    %v1826 = vadd.f32 0.0, %v1825
    %v1827 = vpop.f32.mrb[0].mxu0
    %1828 = vmatprep.mubr.bf16.mxu0 0
    %1829 = vmatmul.mubr.bf16.gmra.mrb[0].mxu0 %v1573
    %v1830 = vpop.f32.mrb[0].mxu0
    %v1831 = vadd.f32 0.0, %v1830
    %v1832 = vpop.f32.mrb[0].mxu0
    %v1833 = vpop.f32.mrb[0].mxu0
    %v1834 = vadd.f32 0.0, %v1833
    %v1835 = vpop.f32.mrb[0].mxu0
    %1836 = vmatprep.mubr.bf16.mxu0 0
    %1837 = vmatmul.mubr.bf16.gmra.mrb[0].mxu0 %v1574
    %v1838 = vpop.f32.mrb[0].mxu0
    %v1839 = vadd.f32 0.0, %v1838
    %v1840 = vpop.f32.mrb[0].mxu0
    %v1841 = vpop.f32.mrb[0].mxu0
    %v1842 = vadd.f32 0.0, %v1841
    %v1843 = vpop.f32.mrb[0].mxu0
    %1844 = vdwg.mxu0
    %v1845 = vpack.c.bf16 %v1484, %v1484
    %v1846 = vld [vmem:[%s7] sm:$0xff]
    %v1847 = vld [vmem:[%s7 + $0x8] sm:$0xf]
    %v1848 = vld [vmem:[%s7 + $0xc] sm:$0xff]
    %v1849 = vld [vmem:[%s7 + $0x14] sm:$0xf]
    %v1850 = vld [vmem:[%s7 + $0x18] sm:$0xff]
    %v1851 = vld [vmem:[%s7 + $0x20] sm:$0xf]
    %v1852 = vld [vmem:[%s7 + $0x24] sm:$0xff]
    %v1853 = vld [vmem:[%s7 + $0x2c] sm:$0xf]
    %v1854 = vld [vmem:[%s7 + $0x30] sm:$0xff]
    %v1855 = vld [vmem:[%s7 + $0x38] sm:$0xf]
    %v1856 = vld [vmem:[%s7 + $0x3c] sm:$0xff]
    %v1857 = vld [vmem:[%s7 + $0x44] sm:$0xf]
    %v1858 = vld [vmem:[%s7 + $0x48] sm:$0xff]
    %v1859 = vld [vmem:[%s7 + $0x50] sm:$0xf]
    %v1860 = vld [vmem:[%s7 + $0x54] sm:$0xff]
    %v1861 = vld [vmem:[%s7 + $0x5c] sm:$0xf]
    %v1862 = vld [vmem:[%s7 + $0x60] sm:$0xff]
    %v1863 = vld [vmem:[%s7 + $0x68] sm:$0xf]
    %v1864 = vld [vmem:[%s7 + $0x6c] sm:$0xff]
    %v1865 = vld [vmem:[%s7 + $0x74] sm:$0xf]
    %v1866 = vld [vmem:[%s7 + $0x78] sm:$0xff]
    %v1867 = vld [vmem:[%s7 + $0x80] sm:$0xf]
    %v1868 = vld [vmem:[%s7 + $0x84] sm:$0xff]
    %v1869 = vld [vmem:[%s7 + $0x8c] sm:$0xf]
    %v1870 = vld [vmem:[%s7 + $0x90] sm:$0xff]
    %v1871 = vld [vmem:[%s7 + $0x98] sm:$0xf]
    %v1872 = vld [vmem:[%s7 + $0x9c] sm:$0xff]
    %v1873 = vld [vmem:[%s7 + $0xa4] sm:$0xf]
    %v1874 = vld [vmem:[%s7 + $0xa8] sm:$0xff]
    %v1875 = vld [vmem:[%s7 + $0xb0] sm:$0xf]
    %v1876 = vld [vmem:[%s7 + $0xb4] sm:$0xff]
    %v1877 = vld [vmem:[%s7 + $0xbc] sm:$0xf]
    %v1910 = vunpack.c.l.b16 %v1846
    %v1911 = vunpack.c.h.b16 %v1846
    %v1912 = vunpack.c.l.b16 %v1847
    %v1913 = vunpack.c.l.b16 %v1848
    %v1914 = vunpack.c.h.b16 %v1848
    %v1915 = vunpack.c.l.b16 %v1849
    %v1916 = vunpack.c.l.b16 %v1850
    %v1917 = vunpack.c.h.b16 %v1850
    %v1918 = vunpack.c.l.b16 %v1851
    %v1919 = vunpack.c.l.b16 %v1852
    %v1920 = vunpack.c.h.b16 %v1852
    %v1921 = vunpack.c.l.b16 %v1853
    %v1922 = vunpack.c.l.b16 %v1854
    %v1923 = vunpack.c.h.b16 %v1854
    %v1924 = vunpack.c.l.b16 %v1855
    %v1925 = vunpack.c.l.b16 %v1856
    %v1926 = vunpack.c.h.b16 %v1856
    %v1927 = vunpack.c.l.b16 %v1857
    %v1928 = vunpack.c.l.b16 %v1858
    %v1929 = vunpack.c.h.b16 %v1858
    %v1930 = vunpack.c.l.b16 %v1859
    %v1931 = vunpack.c.l.b16 %v1860
    %v1932 = vunpack.c.h.b16 %v1860
    %v1933 = vunpack.c.l.b16 %v1861
    %v1934 = vunpack.c.l.b16 %v1862
    %v1935 = vunpack.c.h.b16 %v1862
    %v1936 = vunpack.c.l.b16 %v1863
    %v1937 = vunpack.c.l.b16 %v1864
    %v1938 = vunpack.c.h.b16 %v1864
    %v1939 = vunpack.c.l.b16 %v1865
    %v1940 = vunpack.c.l.b16 %v1866
    %v1941 = vunpack.c.h.b16 %v1866
    %v1942 = vunpack.c.l.b16 %v1867
    %v1943 = vunpack.c.l.b16 %v1868
    %v1944 = vunpack.c.h.b16 %v1868
    %v1945 = vunpack.c.l.b16 %v1869
    %v1946 = vunpack.c.l.b16 %v1870
    %v1947 = vunpack.c.h.b16 %v1870
    %v1948 = vunpack.c.l.b16 %v1871
    %v1949 = vunpack.c.l.b16 %v1872
    %v1950 = vunpack.c.h.b16 %v1872
    %v1951 = vunpack.c.l.b16 %v1873
    %v1952 = vunpack.c.l.b16 %v1874
    %v1953 = vunpack.c.h.b16 %v1874
    %v1954 = vunpack.c.l.b16 %v1875
    %v1955 = vunpack.c.l.b16 %v1876
    %v1956 = vunpack.c.h.b16 %v1876
    %v1957 = vunpack.c.l.b16 %v1877
    %v1958 = vpack.c.b16 %v1913, %v1910
    %v1959 = vpack.c.b16 %v1914, %v1911
    %v1960 = vpack.c.b16 %v1915, %v1912
    %v1961 = vpack.c.b16 %v1919, %v1916
    %v1962 = vpack.c.b16 %v1920, %v1917
    %v1963 = vpack.c.b16 %v1921, %v1918
    %v1964 = vpack.c.b16 %v1925, %v1922
    %v1965 = vpack.c.b16 %v1926, %v1923
    %v1966 = vpack.c.b16 %v1927, %v1924
    %v1967 = vpack.c.b16 %v1931, %v1928
    %v1968 = vpack.c.b16 %v1932, %v1929
    %v1969 = vpack.c.b16 %v1933, %v1930
    %v1970 = vpack.c.b16 %v1937, %v1934
    %v1971 = vpack.c.b16 %v1938, %v1935
    %v1972 = vpack.c.b16 %v1939, %v1936
    %v1973 = vpack.c.b16 %v1943, %v1940
    %v1974 = vpack.c.b16 %v1944, %v1941
    %v1975 = vpack.c.b16 %v1945, %v1942
    %v1976 = vpack.c.b16 %v1949, %v1946
    %v1977 = vpack.c.b16 %v1950, %v1947
    %v1978 = vpack.c.b16 %v1951, %v1948
    %v1979 = vpack.c.b16 %v1955, %v1952
    %v1980 = vpack.c.b16 %v1956, %v1953
    %v1981 = vpack.c.b16 %v1957, %v1954
    %2006 = vmatprep.subr.bf16.mxu0 %v1959
    %2007 = vmatpush1.bf16.msra.mxu0 %v1958
    %2008 = vmatprep.subr.bf16.mxu0 %v1962
    %2009 = vmatpush1.bf16.msra.mxu0 %v1961
    %2010 = vmatprep.subr.bf16.mxu0 %v1965
    %2011 = vmatpush1.bf16.msra.mxu0 %v1964
    %2012 = vmatprep.subr.bf16.mxu0 %v1968
    %2013 = vmatpush1.bf16.msra.mxu0 %v1967
    %2014 = vmatprep.subr.bf16.mxu0 %v1971
    %2015 = vmatpush1.bf16.msra.mxu0 %v1970
    %2016 = vmatprep.subr.bf16.mxu0 %v1974
    %2017 = vmatpush1.bf16.msra.mxu0 %v1973
    %2018 = vmatprep.subr.bf16.mxu0 %v1977
    %2019 = vmatpush1.bf16.msra.mxu0 %v1976
    %2020 = vmatprep.subr.bf16.mxu0 %v1980
    %2021 = vmatpush1.bf16.msra.mxu0 %v1979
    %2022 = vmatprep.subr.bf16.mxu0 0
    %2023 = vmatpush1.bf16.msra.mxu0 0
    %2024 = vmatprep.subr.bf16.mxu0 0
    %2025 = vmatpush1.bf16.msra.mxu0 0
    %2026 = vmatprep.subr.bf16.mxu0 0
    %2027 = vmatpush1.bf16.msra.mxu0 0
    %2028 = vmatprep.subr.bf16.mxu0 0
    %2029 = vmatpush1.bf16.msra.mxu0 0
    %2030 = vmatprep.subr.bf16.mxu0 0
    %2031 = vmatpush1.bf16.msra.mxu0 0
    %2032 = vmatprep.subr.bf16.mxu0 0
    %2033 = vmatpush1.bf16.msra.mxu0 0
    %2034 = vmatprep.subr.bf16.mxu0 0
    %2035 = vmatpush1.bf16.msra.mxu0 0
    %2036 = vmatprep.subr.bf16.mxu0 0
    %2037 = vmatpush1.bf16.msra.mxu0 0
    %2038 = vmatprep.mubr.bf16.mxu0 0
    %2039 = vmatmul.mubr.bf16.gmra.mrb[0].mxu0 %v1845
    %v2040 = vpop.f32.mrb[0].mxu0
    %v2041 = vadd.f32 0.0, %v2040
    %v2042 = vpop.f32.mrb[0].mxu0
    %v2043 = vadd.f32 0.0, %v2042
    %v2044 = vpop.f32.mrb[0].mxu0
    %v2045 = vpop.f32.mrb[0].mxu0
    %2046 = vdwg.mxu0
    %2047 = vmatprep.subr.bf16.mxu0 0
    %2048 = vmatpush1.bf16.msra.mxu0 %v1960
    %2049 = vmatprep.subr.bf16.mxu0 0
    %2050 = vmatpush1.bf16.msra.mxu0 %v1963
    %2051 = vmatprep.subr.bf16.mxu0 0
    %2052 = vmatpush1.bf16.msra.mxu0 %v1966
    %2053 = vmatprep.subr.bf16.mxu0 0
    %2054 = vmatpush1.bf16.msra.mxu0 %v1969
    %2055 = vmatprep.subr.bf16.mxu0 0
    %2056 = vmatpush1.bf16.msra.mxu0 %v1972
    %2057 = vmatprep.subr.bf16.mxu0 0
    %2058 = vmatpush1.bf16.msra.mxu0 %v1975
    %2059 = vmatprep.subr.bf16.mxu0 0
    %2060 = vmatpush1.bf16.msra.mxu0 %v1978
    %2061 = vmatprep.subr.bf16.mxu0 0
    %2062 = vmatpush1.bf16.msra.mxu0 %v1981
    %2063 = vmatprep.subr.bf16.mxu0 0
    %2064 = vmatpush1.bf16.msra.mxu0 0
    %2065 = vmatprep.subr.bf16.mxu0 0
    %2066 = vmatpush1.bf16.msra.mxu0 0
    %2067 = vmatprep.subr.bf16.mxu0 0
    %2068 = vmatpush1.bf16.msra.mxu0 0
    %2069 = vmatprep.subr.bf16.mxu0 0
    %2070 = vmatpush1.bf16.msra.mxu0 0
    %2071 = vmatprep.subr.bf16.mxu0 0
    %2072 = vmatpush1.bf16.msra.mxu0 0
    %2073 = vmatprep.subr.bf16.mxu0 0
    %2074 = vmatpush1.bf16.msra.mxu0 0
    %2075 = vmatprep.subr.bf16.mxu0 0
    %2076 = vmatpush1.bf16.msra.mxu0 0
    %2077 = vmatprep.subr.bf16.mxu0 0
    %2078 = vmatpush1.bf16.msra.mxu0 0
    %2079 = vmatprep.mubr.bf16.mxu0 0
    %2080 = vmatmul.mubr.bf16.gmra.mrb[0].mxu0 %v1845
    %v2081 = vpop.f32.mrb[0].mxu0
    %v2082 = vadd.f32 0.0, %v2081
    %v2083 = vpop.f32.mrb[0].mxu0
    %v2084 = vpop.f32.mrb[0].mxu0
    %v2085 = vpop.f32.mrb[0].mxu0
    %2086 = vdwg.mxu0
    %v2087 = vadd.f32 %v1742, %v2041
    %v2088 = vadd.f32 %v1744, %v2043
    %v2089 = vadd.f32 %v1815, %v2082
    %v2090 = vadd.f32 %v1746, %v2041
    %v2091 = vadd.f32 %v1748, %v2043
    %v2092 = vadd.f32 %v1818, %v2082
    %v2093 = vadd.f32 %v1752, %v2041
    %v2094 = vadd.f32 %v1754, %v2043
    %v2095 = vadd.f32 %v1823, %v2082
    %v2096 = vadd.f32 %v1756, %v2041
    %v2097 = vadd.f32 %v1758, %v2043
    %v2098 = vadd.f32 %v1826, %v2082
    %v2099 = vadd.f32 %v1762, %v2041
    %v2100 = vadd.f32 %v1764, %v2043
    %v2101 = vadd.f32 %v1831, %v2082
    %v2102 = vadd.f32 %v1766, %v2041
    %v2103 = vadd.f32 %v1768, %v2043
    %v2104 = vadd.f32 %v1834, %v2082
    %v2105 = vadd.f32 %v1772, %v2041
    %v2106 = vadd.f32 %v1774, %v2043
    %v2107 = vadd.f32 %v1839, %v2082
    %v2108 = vadd.f32 %v1776, %v2041
    %v2109 = vadd.f32 %v1778, %v2043
    %v2110 = vadd.f32 %v1842, %v2082
    %v2112 = vlaneseq
    %v2113 = vshrl.u32 %v2112, 7
    %v2114 = vsub.s32 0, %v2113
    %v2115 = vrot.slane %v1513, %v2114
    %v2116 = vlaneseq
    %v2117 = vshrl.u32 %v2116, 7
    %v2118 = vsub.s32 1, %v2117
    %v2119 = vrot.slane %v1513, %v2118
    %v2120 = vlaneseq
    %v2121 = vshrl.u32 %v2120, 7
    %v2122 = vsub.s32 2, %v2121
    %v2123 = vrot.slane %v1513, %v2122
    %v2127 = vadd.f32 %v2087, %v2115
    %v2128 = vadd.f32 %v2088, %v2119
    %v2129 = vadd.f32 %v2089, %v2123
    %v2130 = vadd.f32 %v2090, %v2115
    %v2131 = vadd.f32 %v2091, %v2119
    %v2132 = vadd.f32 %v2092, %v2123
    %v2133 = vadd.f32 %v2093, %v2115
    %v2134 = vadd.f32 %v2094, %v2119
    %v2135 = vadd.f32 %v2095, %v2123
    %v2136 = vadd.f32 %v2096, %v2115
    %v2137 = vadd.f32 %v2097, %v2119
    %v2138 = vadd.f32 %v2098, %v2123
    %v2139 = vadd.f32 %v2099, %v2115
    %v2140 = vadd.f32 %v2100, %v2119
    %v2141 = vadd.f32 %v2101, %v2123
    %v2142 = vadd.f32 %v2102, %v2115
    %v2143 = vadd.f32 %v2103, %v2119
    %v2144 = vadd.f32 %v2104, %v2123
    %v2145 = vadd.f32 %v2105, %v2115
    %v2146 = vadd.f32 %v2106, %v2119
    %v2147 = vadd.f32 %v2107, %v2123
    %v2148 = vadd.f32 %v2108, %v2115
    %v2149 = vadd.f32 %v2109, %v2119
    %v2150 = vadd.f32 %v2110, %v2123
    %2151 = vst [vmem:[#allocation2] sm:$0xff] %v2127
    %2152 = vst [vmem:[#allocation2 + $0x8] sm:$0xff] %v2128
    %2153 = vst [vmem:[#allocation2 + $0x10] sm:$0xff] %v2129
    %2154 = vst [vmem:[#allocation2 + $0x18] sm:$0xff] %v2130
    %2155 = vst [vmem:[#allocation2 + $0x20] sm:$0xff] %v2131
    %2156 = vst [vmem:[#allocation2 + $0x28] sm:$0xff] %v2132
    %2157 = vst [vmem:[#allocation2 + $0x30] sm:$0xff] %v2133
    %2158 = vst [vmem:[#allocation2 + $0x38] sm:$0xff] %v2134
    %2159 = vst [vmem:[#allocation2 + $0x40] sm:$0xff] %v2135
    %2160 = vst [vmem:[#allocation2 + $0x48] sm:$0xff] %v2136
    %2161 = vst [vmem:[#allocation2 + $0x50] sm:$0xff] %v2137
    %2162 = vst [vmem:[#allocation2 + $0x58] sm:$0xff] %v2138
    %2163 = vst [vmem:[#allocation2 + $0x60] sm:$0xff] %v2139
    %2164 = vst [vmem:[#allocation2 + $0x68] sm:$0xff] %v2140
    %2165 = vst [vmem:[#allocation2 + $0x70] sm:$0xff] %v2141
    %2166 = vst [vmem:[#allocation2 + $0x78] sm:$0xff] %v2142
    %2167 = vst [vmem:[#allocation2 + $0x80] sm:$0xff] %v2143
    %2168 = vst [vmem:[#allocation2 + $0x88] sm:$0xff] %v2144
    %2169 = vst [vmem:[#allocation2 + $0x90] sm:$0xff] %v2145
    %2170 = vst [vmem:[#allocation2 + $0x98] sm:$0xff] %v2146
    %2171 = vst [vmem:[#allocation2 + $0xa0] sm:$0xff] %v2147
    %2172 = vst [vmem:[#allocation2 + $0xa8] sm:$0xff] %v2148
    %2173 = vst [vmem:[#allocation2 + $0xb0] sm:$0xff] %v2149
    %2174 = vst [vmem:[#allocation2 + $0xb8] sm:$0xff] %v2150
    %v2175 = vld [vmem:[%s8] sm:$0xff]
    %v2176 = vld [vmem:[%s8 + $0x8] sm:$0xf]
    %v2177 = vld [vmem:[%s8 + $0xc] sm:$0xff]
    %v2178 = vld [vmem:[%s8 + $0x14] sm:$0xf]
    %v2179 = vld [vmem:[%s8 + $0x18] sm:$0xff]
    %v2180 = vld [vmem:[%s8 + $0x20] sm:$0xf]
    %v2181 = vld [vmem:[%s8 + $0x24] sm:$0xff]
    %v2182 = vld [vmem:[%s8 + $0x2c] sm:$0xf]
    %v2183 = vld [vmem:[%s8 + $0x30] sm:$0xff]
    %v2184 = vld [vmem:[%s8 + $0x38] sm:$0xf]
    %v2185 = vld [vmem:[%s8 + $0x3c] sm:$0xff]
    %v2186 = vld [vmem:[%s8 + $0x44] sm:$0xf]
    %v2187 = vld [vmem:[%s8 + $0x48] sm:$0xff]
    %v2188 = vld [vmem:[%s8 + $0x50] sm:$0xf]
    %v2189 = vld [vmem:[%s8 + $0x54] sm:$0xff]
    %v2190 = vld [vmem:[%s8 + $0x5c] sm:$0xf]
    %v2191 = vld [vmem:[%s8 + $0x60] sm:$0xff]
    %v2192 = vld [vmem:[%s8 + $0x68] sm:$0xf]
    %v2193 = vld [vmem:[%s8 + $0x6c] sm:$0xff]
    %v2194 = vld [vmem:[%s8 + $0x74] sm:$0xf]
    %v2195 = vld [vmem:[%s8 + $0x78] sm:$0xff]
    %v2196 = vld [vmem:[%s8 + $0x80] sm:$0xf]
    %v2197 = vld [vmem:[%s8 + $0x84] sm:$0xff]
    %v2198 = vld [vmem:[%s8 + $0x8c] sm:$0xf]
    %v2199 = vld [vmem:[%s8 + $0x90] sm:$0xff]
    %v2200 = vld [vmem:[%s8 + $0x98] sm:$0xf]
    %v2201 = vld [vmem:[%s8 + $0x9c] sm:$0xff]
    %v2202 = vld [vmem:[%s8 + $0xa4] sm:$0xf]
    %v2203 = vld [vmem:[%s8 + $0xa8] sm:$0xff]
    %v2204 = vld [vmem:[%s8 + $0xb0] sm:$0xf]
    %v2205 = vld [vmem:[%s8 + $0xb4] sm:$0xff]
    %v2206 = vld [vmem:[%s8 + $0xbc] sm:$0xf]
    %v2207 = vld [vmem:[#allocation2] sm:$0xff]
    %v2208 = vld [vmem:[#allocation2 + $0x8] sm:$0xff]
    %v2209 = vld [vmem:[#allocation2 + $0x10] sm:$0xff]
    %v2242 = vunpack.c.l.b16 %v2175
    %v2243 = vunpack.c.h.b16 %v2175
    %v2244 = vunpack.c.l.b16 %v2176
    %v2245 = vunpack.c.l.b16 %v2177
    %v2246 = vunpack.c.h.b16 %v2177
    %v2247 = vunpack.c.l.b16 %v2178
    %v2248 = vunpack.c.l.b16 %v2179
    %v2249 = vunpack.c.h.b16 %v2179
    %v2250 = vunpack.c.l.b16 %v2180
    %v2251 = vunpack.c.l.b16 %v2181
    %v2252 = vunpack.c.h.b16 %v2181
    %v2253 = vunpack.c.l.b16 %v2182
    %v2254 = vunpack.c.l.b16 %v2183
    %v2255 = vunpack.c.h.b16 %v2183
    %v2256 = vunpack.c.l.b16 %v2184
    %v2257 = vunpack.c.l.b16 %v2185
    %v2258 = vunpack.c.h.b16 %v2185
    %v2259 = vunpack.c.l.b16 %v2186
    %v2260 = vunpack.c.l.b16 %v2187
    %v2261 = vunpack.c.h.b16 %v2187
    %v2262 = vunpack.c.l.b16 %v2188
    %v2263 = vunpack.c.l.b16 %v2189
    %v2264 = vunpack.c.h.b16 %v2189
    %v2265 = vunpack.c.l.b16 %v2190
    %v2266 = vunpack.c.l.b16 %v2191
    %v2267 = vunpack.c.h.b16 %v2191
    %v2268 = vunpack.c.l.b16 %v2192
    %v2269 = vunpack.c.l.b16 %v2193
    %v2270 = vunpack.c.h.b16 %v2193
    %v2271 = vunpack.c.l.b16 %v2194
    %v2272 = vunpack.c.l.b16 %v2195
    %v2273 = vunpack.c.h.b16 %v2195
    %v2274 = vunpack.c.l.b16 %v2196
    %v2275 = vunpack.c.l.b16 %v2197
    %v2276 = vunpack.c.h.b16 %v2197
    %v2277 = vunpack.c.l.b16 %v2198
    %v2278 = vunpack.c.l.b16 %v2199
    %v2279 = vunpack.c.h.b16 %v2199
    %v2280 = vunpack.c.l.b16 %v2200
    %v2281 = vunpack.c.l.b16 %v2201
    %v2282 = vunpack.c.h.b16 %v2201
    %v2283 = vunpack.c.l.b16 %v2202
    %v2284 = vunpack.c.l.b16 %v2203
    %v2285 = vunpack.c.h.b16 %v2203
    %v2286 = vunpack.c.l.b16 %v2204
    %v2287 = vunpack.c.l.b16 %v2205
    %v2288 = vunpack.c.h.b16 %v2205
    %v2289 = vunpack.c.l.b16 %v2206
    %v2290 = vpack.c.b16 %v2245, %v2242
    %v2291 = vpack.c.b16 %v2246, %v2243
    %v2292 = vpack.c.b16 %v2247, %v2244
    %v2293 = vpack.c.b16 %v2251, %v2248
    %v2294 = vpack.c.b16 %v2252, %v2249
    %v2295 = vpack.c.b16 %v2253, %v2250
    %v2296 = vpack.c.b16 %v2257, %v2254
    %v2297 = vpack.c.b16 %v2258, %v2255
    %v2298 = vpack.c.b16 %v2259, %v2256
    %v2299 = vpack.c.b16 %v2263, %v2260
    %v2300 = vpack.c.b16 %v2264, %v2261
    %v2301 = vpack.c.b16 %v2265, %v2262
    %v2302 = vpack.c.b16 %v2269, %v2266
    %v2303 = vpack.c.b16 %v2270, %v2267
    %v2304 = vpack.c.b16 %v2271, %v2268
    %v2305 = vpack.c.b16 %v2275, %v2272
    %v2306 = vpack.c.b16 %v2276, %v2273
    %v2307 = vpack.c.b16 %v2277, %v2274
    %v2308 = vpack.c.b16 %v2281, %v2278
    %v2309 = vpack.c.b16 %v2282, %v2279
    %v2310 = vpack.c.b16 %v2283, %v2280
    %v2311 = vpack.c.b16 %v2287, %v2284
    %v2312 = vpack.c.b16 %v2288, %v2285
    %v2313 = vpack.c.b16 %v2289, %v2286
    %2338 = vmatprep.subr.bf16.mxu0 %v2291
    %2339 = vmatpush1.bf16.msra.mxu0 %v2290
    %2340 = vmatprep.subr.bf16.mxu0 %v2294
    %2341 = vmatpush1.bf16.msra.mxu0 %v2293
    %2342 = vmatprep.subr.bf16.mxu0 %v2297
    %2343 = vmatpush1.bf16.msra.mxu0 %v2296
    %2344 = vmatprep.subr.bf16.mxu0 %v2300
    %2345 = vmatpush1.bf16.msra.mxu0 %v2299
    %2346 = vmatprep.subr.bf16.mxu0 %v2303
    %2347 = vmatpush1.bf16.msra.mxu0 %v2302
    %2348 = vmatprep.subr.bf16.mxu0 %v2306
    %2349 = vmatpush1.bf16.msra.mxu0 %v2305
    %2350 = vmatprep.subr.bf16.mxu0 %v2309
    %2351 = vmatpush1.bf16.msra.mxu0 %v2308
    %2352 = vmatprep.subr.bf16.mxu0 %v2312
    %2353 = vmatpush1.bf16.msra.mxu0 %v2311
    %2354 = vmatprep.subr.bf16.mxu0 0
    %2355 = vmatpush1.bf16.msra.mxu0 0
    %2356 = vmatprep.subr.bf16.mxu0 0
    %2357 = vmatpush1.bf16.msra.mxu0 0
    %2358 = vmatprep.subr.bf16.mxu0 0
    %2359 = vmatpush1.bf16.msra.mxu0 0
    %2360 = vmatprep.subr.bf16.mxu0 0
    %2361 = vmatpush1.bf16.msra.mxu0 0
    %2362 = vmatprep.subr.bf16.mxu0 0
    %2363 = vmatpush1.bf16.msra.mxu0 0
    %2364 = vmatprep.subr.bf16.mxu0 0
    %2365 = vmatpush1.bf16.msra.mxu0 0
    %2366 = vmatprep.subr.bf16.mxu0 0
    %2367 = vmatpush1.bf16.msra.mxu0 0
    %2368 = vmatprep.subr.bf16.mxu0 0
    %2369 = vmatpush1.bf16.msra.mxu0 0
    %2370 = vmatprep.mubr.bf16.mxu0 0
    %2371 = vmatmul.mubr.bf16.gmra.mrb[0].mxu0 %v1845
    %v2372 = vpop.f32.mrb[0].mxu0
    %v2373 = vadd.f32 0.0, %v2372
    %v2374 = vpop.f32.mrb[0].mxu0
    %v2375 = vadd.f32 0.0, %v2374
    %v2376 = vpop.f32.mrb[0].mxu0
    %v2377 = vpop.f32.mrb[0].mxu0
    %2378 = vdwg.mxu0
    %2379 = vmatprep.subr.bf16.mxu0 0
    %2380 = vmatpush1.bf16.msra.mxu0 %v2292
    %2381 = vmatprep.subr.bf16.mxu0 0
    %2382 = vmatpush1.bf16.msra.mxu0 %v2295
    %2383 = vmatprep.subr.bf16.mxu0 0
    %2384 = vmatpush1.bf16.msra.mxu0 %v2298
    %2385 = vmatprep.subr.bf16.mxu0 0
    %2386 = vmatpush1.bf16.msra.mxu0 %v2301
    %2387 = vmatprep.subr.bf16.mxu0 0
    %2388 = vmatpush1.bf16.msra.mxu0 %v2304
    %2389 = vmatprep.subr.bf16.mxu0 0
    %2390 = vmatpush1.bf16.msra.mxu0 %v2307
    %2391 = vmatprep.subr.bf16.mxu0 0
    %2392 = vmatpush1.bf16.msra.mxu0 %v2310
    %2393 = vmatprep.subr.bf16.mxu0 0
    %2394 = vmatpush1.bf16.msra.mxu0 %v2313
    %2395 = vmatprep.subr.bf16.mxu0 0
    %2396 = vmatpush1.bf16.msra.mxu0 0
    %2397 = vmatprep.subr.bf16.mxu0 0
    %2398 = vmatpush1.bf16.msra.mxu0 0
    %2399 = vmatprep.subr.bf16.mxu0 0
    %2400 = vmatpush1.bf16.msra.mxu0 0
    %2401 = vmatprep.subr.bf16.mxu0 0
    %2402 = vmatpush1.bf16.msra.mxu0 0
    %2403 = vmatprep.subr.bf16.mxu0 0
    %2404 = vmatpush1.bf16.msra.mxu0 0
    %2405 = vmatprep.subr.bf16.mxu0 0
    %2406 = vmatpush1.bf16.msra.mxu0 0
    %2407 = vmatprep.subr.bf16.mxu0 0
    %2408 = vmatpush1.bf16.msra.mxu0 0
    %2409 = vmatprep.subr.bf16.mxu0 0
    %2410 = vmatpush1.bf16.msra.mxu0 0
    %2411 = vmatprep.mubr.bf16.mxu0 0
    %2412 = vmatmul.mubr.bf16.gmra.mrb[0].mxu0 %v1845
    %v2413 = vpop.f32.mrb[0].mxu0
    %v2414 = vadd.f32 0.0, %v2413
    %v2415 = vpop.f32.mrb[0].mxu0
    %v2416 = vpop.f32.mrb[0].mxu0
    %v2417 = vpop.f32.mrb[0].mxu0
    %2418 = vdwg.mxu0
    %v2419 = vadd.f32 %v2207, %v2373
    %v2420 = vxor.u32 %v2419, 2147483648
    %v2421 = vmul.f32 %v2420, 1.442695
    %v2422 = vpow.pop %v2421
    %v2423 = vadd.f32 %v2422, 1.0
    %v2424 = vrcp.pop %v2423
    %v2425 = vmul.f32 1.0, %v2424
    %v2426 = vadd.f32 %v2208, %v2375
    %v2427 = vxor.u32 %v2426, 2147483648
    %v2428 = vmul.f32 %v2427, 1.442695
    %v2429 = vpow.pop %v2428
    %v2430 = vadd.f32 %v2429, 1.0
    %v2431 = vrcp.pop %v2430
    %v2432 = vmul.f32 1.0, %v2431
    %v2434 = vlaneseq
    %v2435 = vshrl.u32 %v2434, 7
    %v2436 = vsub.s32 0, %v2435
    %v2437 = vrot.slane %v1514, %v2436
    %v2439 = vadd.f32 %v2414, %v2437
    %v2440 = vmul.f32 %v2425, %v2439
    %v2441 = vadd.f32 %v2209, %v2440
    %v2442 = vtanh.pop %v2441
    %v2443 = vsub.f32 1.0, %v2432
    %v2444 = vmul.f32 %v2443, %v2442
    %v2445 = vmul.f32 %v2432, %v1484
    %v2446 = vadd.f32 %v2444, %v2445
    %2447 = vst [vmem:[#allocation3] sm:$0xff] %v2446
    %v2448 = vld [vmem:[%s729] sm:$0xff]
    %v2449 = vld [vmem:[%s729 + $0x8] sm:$0xff]
    %v2450 = vld [vmem:[%s729 + $0x10] sm:$0xff]
    %v2451 = vpack.c.bf16 %v2446, %v2446
    %2452 = vmatprep.subr.bf16.mxu0 %v2291
    %2453 = vmatpush1.bf16.msra.mxu0 %v2290
    %2454 = vmatprep.subr.bf16.mxu0 %v2294
    %2455 = vmatpush1.bf16.msra.mxu0 %v2293
    %2456 = vmatprep.subr.bf16.mxu0 %v2297
    %2457 = vmatpush1.bf16.msra.mxu0 %v2296
    %2458 = vmatprep.subr.bf16.mxu0 %v2300
    %2459 = vmatpush1.bf16.msra.mxu0 %v2299
    %2460 = vmatprep.subr.bf16.mxu0 %v2303
    %2461 = vmatpush1.bf16.msra.mxu0 %v2302
    %2462 = vmatprep.subr.bf16.mxu0 %v2306
    %2463 = vmatpush1.bf16.msra.mxu0 %v2305
    %2464 = vmatprep.subr.bf16.mxu0 %v2309
    %2465 = vmatpush1.bf16.msra.mxu0 %v2308
    %2466 = vmatprep.subr.bf16.mxu0 %v2312
    %2467 = vmatpush1.bf16.msra.mxu0 %v2311
    %2468 = vmatprep.subr.bf16.mxu0 0
    %2469 = vmatpush1.bf16.msra.mxu0 0
    %2470 = vmatprep.subr.bf16.mxu0 0
    %2471 = vmatpush1.bf16.msra.mxu0 0
    %2472 = vmatprep.subr.bf16.mxu0 0
    %2473 = vmatpush1.bf16.msra.mxu0 0
    %2474 = vmatprep.subr.bf16.mxu0 0
    %2475 = vmatpush1.bf16.msra.mxu0 0
    %2476 = vmatprep.subr.bf16.mxu0 0
    %2477 = vmatpush1.bf16.msra.mxu0 0
    %2478 = vmatprep.subr.bf16.mxu0 0
    %2479 = vmatpush1.bf16.msra.mxu0 0
    %2480 = vmatprep.subr.bf16.mxu0 0
    %2481 = vmatpush1.bf16.msra.mxu0 0
    %2482 = vmatprep.subr.bf16.mxu0 0
    %2483 = vmatpush1.bf16.msra.mxu0 0
    %2484 = vmatprep.mubr.bf16.mxu0 0
    %2485 = vmatmul.mubr.bf16.gmra.mrb[0].mxu0 %v2451
    %v2486 = vpop.f32.mrb[0].mxu0
    %v2487 = vadd.f32 0.0, %v2486
    %v2488 = vpop.f32.mrb[0].mxu0
    %v2489 = vadd.f32 0.0, %v2488
    %v2490 = vpop.f32.mrb[0].mxu0
    %v2491 = vpop.f32.mrb[0].mxu0
    %2492 = vdwg.mxu0
    %2493 = vmatprep.subr.bf16.mxu0 0
    %2494 = vmatpush1.bf16.msra.mxu0 %v2292
    %2495 = vmatprep.subr.bf16.mxu0 0
    %2496 = vmatpush1.bf16.msra.mxu0 %v2295
    %2497 = vmatprep.subr.bf16.mxu0 0
    %2498 = vmatpush1.bf16.msra.mxu0 %v2298
    %2499 = vmatprep.subr.bf16.mxu0 0
    %2500 = vmatpush1.bf16.msra.mxu0 %v2301
    %2501 = vmatprep.subr.bf16.mxu0 0
    %2502 = vmatpush1.bf16.msra.mxu0 %v2304
    %2503 = vmatprep.subr.bf16.mxu0 0
    %2504 = vmatpush1.bf16.msra.mxu0 %v2307
    %2505 = vmatprep.subr.bf16.mxu0 0
    %2506 = vmatpush1.bf16.msra.mxu0 %v2310
    %2507 = vmatprep.subr.bf16.mxu0 0
    %2508 = vmatpush1.bf16.msra.mxu0 %v2313
    %2509 = vmatprep.subr.bf16.mxu0 0
    %2510 = vmatpush1.bf16.msra.mxu0 0
    %2511 = vmatprep.subr.bf16.mxu0 0
    %2512 = vmatpush1.bf16.msra.mxu0 0
    %2513 = vmatprep.subr.bf16.mxu0 0
    %2514 = vmatpush1.bf16.msra.mxu0 0
    %2515 = vmatprep.subr.bf16.mxu0 0
    %2516 = vmatpush1.bf16.msra.mxu0 0
    %2517 = vmatprep.subr.bf16.mxu0 0
    %2518 = vmatpush1.bf16.msra.mxu0 0
    %2519 = vmatprep.subr.bf16.mxu0 0
    %2520 = vmatpush1.bf16.msra.mxu0 0
    %2521 = vmatprep.subr.bf16.mxu0 0
    %2522 = vmatpush1.bf16.msra.mxu0 0
    %2523 = vmatprep.subr.bf16.mxu0 0
    %2524 = vmatpush1.bf16.msra.mxu0 0
    %2525 = vmatprep.mubr.bf16.mxu0 0
    %2526 = vmatmul.mubr.bf16.gmra.mrb[0].mxu0 %v2451
    %v2527 = vpop.f32.mrb[0].mxu0
    %v2528 = vadd.f32 0.0, %v2527
    %v2529 = vpop.f32.mrb[0].mxu0
    %v2530 = vpop.f32.mrb[0].mxu0
    %v2531 = vpop.f32.mrb[0].mxu0
    %2532 = vdwg.mxu0
    %v2533 = vadd.f32 %v2448, %v2487
    %v2534 = vxor.u32 %v2533, 2147483648
    %v2535 = vmul.f32 %v2534, 1.442695
    %v2536 = vpow.pop %v2535
    %v2537 = vadd.f32 %v2536, 1.0
    %v2538 = vrcp.pop %v2537
    %v2539 = vmul.f32 1.0, %v2538
    %v2540 = vadd.f32 %v2449, %v2489
    %v2541 = vxor.u32 %v2540, 2147483648
    %v2542 = vmul.f32 %v2541, 1.442695
    %v2543 = vpow.pop %v2542
    %v2544 = vadd.f32 %v2543, 1.0
    %v2545 = vrcp.pop %v2544
    %v2546 = vmul.f32 1.0, %v2545
    %v2547 = vadd.f32 %v2528, %v2437
    %v2548 = vmul.f32 %v2539, %v2547
    %v2549 = vadd.f32 %v2450, %v2548
    %v2550 = vtanh.pop %v2549
    %v2551 = vsub.f32 1.0, %v2546
    %v2552 = vmul.f32 %v2551, %v2550
    %v2553 = vmul.f32 %v2546, %v2446
    %v2554 = vadd.f32 %v2552, %v2553
    %s2555 = scalar_lea.vmem [#allocation3], 8
    %2556 = vst [vmem:[%s2555] sm:$0xff] %v2554
    %v2557 = vld [vmem:[%s837] sm:$0xff]
    %v2558 = vld [vmem:[%s837 + $0x8] sm:$0xff]
    %v2559 = vld [vmem:[%s837 + $0x10] sm:$0xff]
    %v2560 = vpack.c.bf16 %v2554, %v2554
    %2561 = vmatprep.subr.bf16.mxu0 %v2291
    %2562 = vmatpush1.bf16.msra.mxu0 %v2290
    %2563 = vmatprep.subr.bf16.mxu0 %v2294
    %2564 = vmatpush1.bf16.msra.mxu0 %v2293
    %2565 = vmatprep.subr.bf16.mxu0 %v2297
    %2566 = vmatpush1.bf16.msra.mxu0 %v2296
    %2567 = vmatprep.subr.bf16.mxu0 %v2300
    %2568 = vmatpush1.bf16.msra.mxu0 %v2299
    %2569 = vmatprep.subr.bf16.mxu0 %v2303
    %2570 = vmatpush1.bf16.msra.mxu0 %v2302
    %2571 = vmatprep.subr.bf16.mxu0 %v2306
    %2572 = vmatpush1.bf16.msra.mxu0 %v2305
    %2573 = vmatprep.subr.bf16.mxu0 %v2309
    %2574 = vmatpush1.bf16.msra.mxu0 %v2308
    %2575 = vmatprep.subr.bf16.mxu0 %v2312
    %2576 = vmatpush1.bf16.msra.mxu0 %v2311
    %2577 = vmatprep.subr.bf16.mxu0 0
    %2578 = vmatpush1.bf16.msra.mxu0 0
    %2579 = vmatprep.subr.bf16.mxu0 0
    %2580 = vmatpush1.bf16.msra.mxu0 0
    %2581 = vmatprep.subr.bf16.mxu0 0
    %2582 = vmatpush1.bf16.msra.mxu0 0
    %2583 = vmatprep.subr.bf16.mxu0 0
    %2584 = vmatpush1.bf16.msra.mxu0 0
    %2585 = vmatprep.subr.bf16.mxu0 0
    %2586 = vmatpush1.bf16.msra.mxu0 0
    %2587 = vmatprep.subr.bf16.mxu0 0
    %2588 = vmatpush1.bf16.msra.mxu0 0
    %2589 = vmatprep.subr.bf16.mxu0 0
    %2590 = vmatpush1.bf16.msra.mxu0 0
    %2591 = vmatprep.subr.bf16.mxu0 0
    %2592 = vmatpush1.bf16.msra.mxu0 0
    %2593 = vmatprep.mubr.bf16.mxu0 0
    %2594 = vmatmul.mubr.bf16.gmra.mrb[0].mxu0 %v2560
    %v2595 = vpop.f32.mrb[0].mxu0
    %v2596 = vadd.f32 0.0, %v2595
    %v2597 = vpop.f32.mrb[0].mxu0
    %v2598 = vadd.f32 0.0, %v2597
    %v2599 = vpop.f32.mrb[0].mxu0
    %v2600 = vpop.f32.mrb[0].mxu0
    %2601 = vdwg.mxu0
    %2602 = vmatprep.subr.bf16.mxu0 0
    %2603 = vmatpush1.bf16.msra.mxu0 %v2292
    %2604 = vmatprep.subr.bf16.mxu0 0
    %2605 = vmatpush1.bf16.msra.mxu0 %v2295
    %2606 = vmatprep.subr.bf16.mxu0 0
    %2607 = vmatpush1.bf16.msra.mxu0 %v2298
    %2608 = vmatprep.subr.bf16.mxu0 0
    %2609 = vmatpush1.bf16.msra.mxu0 %v2301
    %2610 = vmatprep.subr.bf16.mxu0 0
    %2611 = vmatpush1.bf16.msra.mxu0 %v2304
    %2612 = vmatprep.subr.bf16.mxu0 0
    %2613 = vmatpush1.bf16.msra.mxu0 %v2307
    %2614 = vmatprep.subr.bf16.mxu0 0
    %2615 = vmatpush1.bf16.msra.mxu0 %v2310
    %2616 = vmatprep.subr.bf16.mxu0 0
    %2617 = vmatpush1.bf16.msra.mxu0 %v2313
    %2618 = vmatprep.subr.bf16.mxu0 0
    %2619 = vmatpush1.bf16.msra.mxu0 0
    %2620 = vmatprep.subr.bf16.mxu0 0
    %2621 = vmatpush1.bf16.msra.mxu0 0
    %2622 = vmatprep.subr.bf16.mxu0 0
    %2623 = vmatpush1.bf16.msra.mxu0 0
    %2624 = vmatprep.subr.bf16.mxu0 0
    %2625 = vmatpush1.bf16.msra.mxu0 0
    %2626 = vmatprep.subr.bf16.mxu0 0
    %2627 = vmatpush1.bf16.msra.mxu0 0
    %2628 = vmatprep.subr.bf16.mxu0 0
    %2629 = vmatpush1.bf16.msra.mxu0 0
    %2630 = vmatprep.subr.bf16.mxu0 0
    %2631 = vmatpush1.bf16.msra.mxu0 0
    %2632 = vmatprep.subr.bf16.mxu0 0
    %2633 = vmatpush1.bf16.msra.mxu0 0
    %2634 = vmatprep.mubr.bf16.mxu0 0
    %2635 = vmatmul.mubr.bf16.gmra.mrb[0].mxu0 %v2560
    %v2636 = vpop.f32.mrb[0].mxu0
    %v2637 = vadd.f32 0.0, %v2636
    %v2638 = vpop.f32.mrb[0].mxu0
    %v2639 = vpop.f32.mrb[0].mxu0
    %v2640 = vpop.f32.mrb[0].mxu0
    %2641 = vdwg.mxu0
    %v2642 = vadd.f32 %v2557, %v2596
    %v2643 = vxor.u32 %v2642, 2147483648
    %v2644 = vmul.f32 %v2643, 1.442695
    %v2645 = vpow.pop %v2644
    %v2646 = vadd.f32 %v2645, 1.0
    %v2647 = vrcp.pop %v2646
    %v2648 = vmul.f32 1.0, %v2647
    %v2649 = vadd.f32 %v2558, %v2598
    %v2650 = vxor.u32 %v2649, 2147483648
    %v2651 = vmul.f32 %v2650, 1.442695
    %v2652 = vpow.pop %v2651
    %v2653 = vadd.f32 %v2652, 1.0
    %v2654 = vrcp.pop %v2653
    %v2655 = vmul.f32 1.0, %v2654
    %v2656 = vadd.f32 %v2637, %v2437
    %v2657 = vmul.f32 %v2648, %v2656
    %v2658 = vadd.f32 %v2559, %v2657
    %v2659 = vtanh.pop %v2658
    %v2660 = vsub.f32 1.0, %v2655
    %v2661 = vmul.f32 %v2660, %v2659
    %v2662 = vmul.f32 %v2655, %v2554
    %v2663 = vadd.f32 %v2661, %v2662
    %s2664 = scalar_lea.vmem [#allocation3], 16
    %2665 = vst [vmem:[%s2664] sm:$0xff] %v2663
    %v2666 = vld [vmem:[%s945] sm:$0xff]
    %v2667 = vld [vmem:[%s945 + $0x8] sm:$0xff]
    %v2668 = vld [vmem:[%s945 + $0x10] sm:$0xff]
    %v2669 = vpack.c.bf16 %v2663, %v2663
    %2670 = vmatprep.subr.bf16.mxu0 %v2291
    %2671 = vmatpush1.bf16.msra.mxu0 %v2290
    %2672 = vmatprep.subr.bf16.mxu0 %v2294
    %2673 = vmatpush1.bf16.msra.mxu0 %v2293
    %2674 = vmatprep.subr.bf16.mxu0 %v2297
    %2675 = vmatpush1.bf16.msra.mxu0 %v2296
    %2676 = vmatprep.subr.bf16.mxu0 %v2300
    %2677 = vmatpush1.bf16.msra.mxu0 %v2299
    %2678 = vmatprep.subr.bf16.mxu0 %v2303
    %2679 = vmatpush1.bf16.msra.mxu0 %v2302
    %2680 = vmatprep.subr.bf16.mxu0 %v2306
    %2681 = vmatpush1.bf16.msra.mxu0 %v2305
    %2682 = vmatprep.subr.bf16.mxu0 %v2309
    %2683 = vmatpush1.bf16.msra.mxu0 %v2308
    %2684 = vmatprep.subr.bf16.mxu0 %v2312
    %2685 = vmatpush1.bf16.msra.mxu0 %v2311
    %2686 = vmatprep.subr.bf16.mxu0 0
    %2687 = vmatpush1.bf16.msra.mxu0 0
    %2688 = vmatprep.subr.bf16.mxu0 0
    %2689 = vmatpush1.bf16.msra.mxu0 0
    %2690 = vmatprep.subr.bf16.mxu0 0
    %2691 = vmatpush1.bf16.msra.mxu0 0
    %2692 = vmatprep.subr.bf16.mxu0 0
    %2693 = vmatpush1.bf16.msra.mxu0 0
    %2694 = vmatprep.subr.bf16.mxu0 0
    %2695 = vmatpush1.bf16.msra.mxu0 0
    %2696 = vmatprep.subr.bf16.mxu0 0
    %2697 = vmatpush1.bf16.msra.mxu0 0
    %2698 = vmatprep.subr.bf16.mxu0 0
    %2699 = vmatpush1.bf16.msra.mxu0 0
    %2700 = vmatprep.subr.bf16.mxu0 0
    %2701 = vmatpush1.bf16.msra.mxu0 0
    %2702 = vmatprep.mubr.bf16.mxu0 0
    %2703 = vmatmul.mubr.bf16.gmra.mrb[0].mxu0 %v2669
    %v2704 = vpop.f32.mrb[0].mxu0
    %v2705 = vadd.f32 0.0, %v2704
    %v2706 = vpop.f32.mrb[0].mxu0
    %v2707 = vadd.f32 0.0, %v2706
    %v2708 = vpop.f32.mrb[0].mxu0
    %v2709 = vpop.f32.mrb[0].mxu0
    %2710 = vdwg.mxu0
    %2711 = vmatprep.subr.bf16.mxu0 0
    %2712 = vmatpush1.bf16.msra.mxu0 %v2292
    %2713 = vmatprep.subr.bf16.mxu0 0
    %2714 = vmatpush1.bf16.msra.mxu0 %v2295
    %2715 = vmatprep.subr.bf16.mxu0 0
    %2716 = vmatpush1.bf16.msra.mxu0 %v2298
    %2717 = vmatprep.subr.bf16.mxu0 0
    %2718 = vmatpush1.bf16.msra.mxu0 %v2301
    %2719 = vmatprep.subr.bf16.mxu0 0
    %2720 = vmatpush1.bf16.msra.mxu0 %v2304
    %2721 = vmatprep.subr.bf16.mxu0 0
    %2722 = vmatpush1.bf16.msra.mxu0 %v2307
    %2723 = vmatprep.subr.bf16.mxu0 0
    %2724 = vmatpush1.bf16.msra.mxu0 %v2310
    %2725 = vmatprep.subr.bf16.mxu0 0
    %2726 = vmatpush1.bf16.msra.mxu0 %v2313
    %2727 = vmatprep.subr.bf16.mxu0 0
    %2728 = vmatpush1.bf16.msra.mxu0 0
    %2729 = vmatprep.subr.bf16.mxu0 0
    %2730 = vmatpush1.bf16.msra.mxu0 0
    %2731 = vmatprep.subr.bf16.mxu0 0
    %2732 = vmatpush1.bf16.msra.mxu0 0
    %2733 = vmatprep.subr.bf16.mxu0 0
    %2734 = vmatpush1.bf16.msra.mxu0 0
    %2735 = vmatprep.subr.bf16.mxu0 0
    %2736 = vmatpush1.bf16.msra.mxu0 0
    %2737 = vmatprep.subr.bf16.mxu0 0
    %2738 = vmatpush1.bf16.msra.mxu0 0
    %2739 = vmatprep.subr.bf16.mxu0 0
    %2740 = vmatpush1.bf16.msra.mxu0 0
    %2741 = vmatprep.subr.bf16.mxu0 0
    %2742 = vmatpush1.bf16.msra.mxu0 0
    %2743 = vmatprep.mubr.bf16.mxu0 0
    %2744 = vmatmul.mubr.bf16.gmra.mrb[0].mxu0 %v2669
    %v2745 = vpop.f32.mrb[0].mxu0
    %v2746 = vadd.f32 0.0, %v2745
    %v2747 = vpop.f32.mrb[0].mxu0
    %v2748 = vpop.f32.mrb[0].mxu0
    %v2749 = vpop.f32.mrb[0].mxu0
    %2750 = vdwg.mxu0
    %v2751 = vadd.f32 %v2666, %v2705
    %v2752 = vxor.u32 %v2751, 2147483648
    %v2753 = vmul.f32 %v2752, 1.442695
    %v2754 = vpow.pop %v2753
    %v2755 = vadd.f32 %v2754, 1.0
    %v2756 = vrcp.pop %v2755
    %v2757 = vmul.f32 1.0, %v2756
    %v2758 = vadd.f32 %v2667, %v2707
    %v2759 = vxor.u32 %v2758, 2147483648
    %v2760 = vmul.f32 %v2759, 1.442695
    %v2761 = vpow.pop %v2760
    %v2762 = vadd.f32 %v2761, 1.0
    %v2763 = vrcp.pop %v2762
    %v2764 = vmul.f32 1.0, %v2763
    %v2765 = vadd.f32 %v2746, %v2437
    %v2766 = vmul.f32 %v2757, %v2765
    %v2767 = vadd.f32 %v2668, %v2766
    %v2768 = vtanh.pop %v2767
    %v2769 = vsub.f32 1.0, %v2764
    %v2770 = vmul.f32 %v2769, %v2768
    %v2771 = vmul.f32 %v2764, %v2663
    %v2772 = vadd.f32 %v2770, %v2771
    %s2773 = scalar_lea.vmem [#allocation3], 24
    %2774 = vst [vmem:[%s2773] sm:$0xff] %v2772
    %v2775 = vld [vmem:[%s1053] sm:$0xff]
    %v2776 = vld [vmem:[%s1053 + $0x8] sm:$0xff]
    %v2777 = vld [vmem:[%s1053 + $0x10] sm:$0xff]
    %v2778 = vpack.c.bf16 %v2772, %v2772
    %2779 = vmatprep.subr.bf16.mxu0 %v2291
    %2780 = vmatpush1.bf16.msra.mxu0 %v2290
    %2781 = vmatprep.subr.bf16.mxu0 %v2294
    %2782 = vmatpush1.bf16.msra.mxu0 %v2293
    %2783 = vmatprep.subr.bf16.mxu0 %v2297
    %2784 = vmatpush1.bf16.msra.mxu0 %v2296
    %2785 = vmatprep.subr.bf16.mxu0 %v2300
    %2786 = vmatpush1.bf16.msra.mxu0 %v2299
    %2787 = vmatprep.subr.bf16.mxu0 %v2303
    %2788 = vmatpush1.bf16.msra.mxu0 %v2302
    %2789 = vmatprep.subr.bf16.mxu0 %v2306
    %2790 = vmatpush1.bf16.msra.mxu0 %v2305
    %2791 = vmatprep.subr.bf16.mxu0 %v2309
    %2792 = vmatpush1.bf16.msra.mxu0 %v2308
    %2793 = vmatprep.subr.bf16.mxu0 %v2312
    %2794 = vmatpush1.bf16.msra.mxu0 %v2311
    %2795 = vmatprep.subr.bf16.mxu0 0
    %2796 = vmatpush1.bf16.msra.mxu0 0
    %2797 = vmatprep.subr.bf16.mxu0 0
    %2798 = vmatpush1.bf16.msra.mxu0 0
    %2799 = vmatprep.subr.bf16.mxu0 0
    %2800 = vmatpush1.bf16.msra.mxu0 0
    %2801 = vmatprep.subr.bf16.mxu0 0
    %2802 = vmatpush1.bf16.msra.mxu0 0
    %2803 = vmatprep.subr.bf16.mxu0 0
    %2804 = vmatpush1.bf16.msra.mxu0 0
    %2805 = vmatprep.subr.bf16.mxu0 0
    %2806 = vmatpush1.bf16.msra.mxu0 0
    %2807 = vmatprep.subr.bf16.mxu0 0
    %2808 = vmatpush1.bf16.msra.mxu0 0
    %2809 = vmatprep.subr.bf16.mxu0 0
    %2810 = vmatpush1.bf16.msra.mxu0 0
    %2811 = vmatprep.mubr.bf16.mxu0 0
    %2812 = vmatmul.mubr.bf16.gmra.mrb[0].mxu0 %v2778
    %v2813 = vpop.f32.mrb[0].mxu0
    %v2814 = vadd.f32 0.0, %v2813
    %v2815 = vpop.f32.mrb[0].mxu0
    %v2816 = vadd.f32 0.0, %v2815
    %v2817 = vpop.f32.mrb[0].mxu0
    %v2818 = vpop.f32.mrb[0].mxu0
    %2819 = vdwg.mxu0
    %2820 = vmatprep.subr.bf16.mxu0 0
    %2821 = vmatpush1.bf16.msra.mxu0 %v2292
    %2822 = vmatprep.subr.bf16.mxu0 0
    %2823 = vmatpush1.bf16.msra.mxu0 %v2295
    %2824 = vmatprep.subr.bf16.mxu0 0
    %2825 = vmatpush1.bf16.msra.mxu0 %v2298
    %2826 = vmatprep.subr.bf16.mxu0 0
    %2827 = vmatpush1.bf16.msra.mxu0 %v2301
    %2828 = vmatprep.subr.bf16.mxu0 0
    %2829 = vmatpush1.bf16.msra.mxu0 %v2304
    %2830 = vmatprep.subr.bf16.mxu0 0
    %2831 = vmatpush1.bf16.msra.mxu0 %v2307
    %2832 = vmatprep.subr.bf16.mxu0 0
    %2833 = vmatpush1.bf16.msra.mxu0 %v2310
    %2834 = vmatprep.subr.bf16.mxu0 0
    %2835 = vmatpush1.bf16.msra.mxu0 %v2313
    %2836 = vmatprep.subr.bf16.mxu0 0
    %2837 = vmatpush1.bf16.msra.mxu0 0
    %2838 = vmatprep.subr.bf16.mxu0 0
    %2839 = vmatpush1.bf16.msra.mxu0 0
    %2840 = vmatprep.subr.bf16.mxu0 0
    %2841 = vmatpush1.bf16.msra.mxu0 0
    %2842 = vmatprep.subr.bf16.mxu0 0
    %2843 = vmatpush1.bf16.msra.mxu0 0
    %2844 = vmatprep.subr.bf16.mxu0 0
    %2845 = vmatpush1.bf16.msra.mxu0 0
    %2846 = vmatprep.subr.bf16.mxu0 0
    %2847 = vmatpush1.bf16.msra.mxu0 0
    %2848 = vmatprep.subr.bf16.mxu0 0
    %2849 = vmatpush1.bf16.msra.mxu0 0
    %2850 = vmatprep.subr.bf16.mxu0 0
    %2851 = vmatpush1.bf16.msra.mxu0 0
    %2852 = vmatprep.mubr.bf16.mxu0 0
    %2853 = vmatmul.mubr.bf16.gmra.mrb[0].mxu0 %v2778
    %v2854 = vpop.f32.mrb[0].mxu0
    %v2855 = vadd.f32 0.0, %v2854
    %v2856 = vpop.f32.mrb[0].mxu0
    %v2857 = vpop.f32.mrb[0].mxu0
    %v2858 = vpop.f32.mrb[0].mxu0
    %2859 = vdwg.mxu0
    %v2860 = vadd.f32 %v2775, %v2814
    %v2861 = vxor.u32 %v2860, 2147483648
    %v2862 = vmul.f32 %v2861, 1.442695
    %v2863 = vpow.pop %v2862
    %v2864 = vadd.f32 %v2863, 1.0
    %v2865 = vrcp.pop %v2864
    %v2866 = vmul.f32 1.0, %v2865
    %v2867 = vadd.f32 %v2776, %v2816
    %v2868 = vxor.u32 %v2867, 2147483648
    %v2869 = vmul.f32 %v2868, 1.442695
    %v2870 = vpow.pop %v2869
    %v2871 = vadd.f32 %v2870, 1.0
    %v2872 = vrcp.pop %v2871
    %v2873 = vmul.f32 1.0, %v2872
    %v2874 = vadd.f32 %v2855, %v2437
    %v2875 = vmul.f32 %v2866, %v2874
    %v2876 = vadd.f32 %v2777, %v2875
    %v2877 = vtanh.pop %v2876
    %v2878 = vsub.f32 1.0, %v2873
    %v2879 = vmul.f32 %v2878, %v2877
    %v2880 = vmul.f32 %v2873, %v2772
    %v2881 = vadd.f32 %v2879, %v2880
    %s2882 = scalar_lea.vmem [#allocation3], 32
    %2883 = vst [vmem:[%s2882] sm:$0xff] %v2881
    %v2884 = vld [vmem:[%s1161] sm:$0xff]
    %v2885 = vld [vmem:[%s1161 + $0x8] sm:$0xff]
    %v2886 = vld [vmem:[%s1161 + $0x10] sm:$0xff]
    %v2887 = vpack.c.bf16 %v2881, %v2881
    %2888 = vmatprep.subr.bf16.mxu0 %v2291
    %2889 = vmatpush1.bf16.msra.mxu0 %v2290
    %2890 = vmatprep.subr.bf16.mxu0 %v2294
    %2891 = vmatpush1.bf16.msra.mxu0 %v2293
    %2892 = vmatprep.subr.bf16.mxu0 %v2297
    %2893 = vmatpush1.bf16.msra.mxu0 %v2296
    %2894 = vmatprep.subr.bf16.mxu0 %v2300
    %2895 = vmatpush1.bf16.msra.mxu0 %v2299
    %2896 = vmatprep.subr.bf16.mxu0 %v2303
    %2897 = vmatpush1.bf16.msra.mxu0 %v2302
    %2898 = vmatprep.subr.bf16.mxu0 %v2306
    %2899 = vmatpush1.bf16.msra.mxu0 %v2305
    %2900 = vmatprep.subr.bf16.mxu0 %v2309
    %2901 = vmatpush1.bf16.msra.mxu0 %v2308
    %2902 = vmatprep.subr.bf16.mxu0 %v2312
    %2903 = vmatpush1.bf16.msra.mxu0 %v2311
    %2904 = vmatprep.subr.bf16.mxu0 0
    %2905 = vmatpush1.bf16.msra.mxu0 0
    %2906 = vmatprep.subr.bf16.mxu0 0
    %2907 = vmatpush1.bf16.msra.mxu0 0
    %2908 = vmatprep.subr.bf16.mxu0 0
    %2909 = vmatpush1.bf16.msra.mxu0 0
    %2910 = vmatprep.subr.bf16.mxu0 0
    %2911 = vmatpush1.bf16.msra.mxu0 0
    %2912 = vmatprep.subr.bf16.mxu0 0
    %2913 = vmatpush1.bf16.msra.mxu0 0
    %2914 = vmatprep.subr.bf16.mxu0 0
    %2915 = vmatpush1.bf16.msra.mxu0 0
    %2916 = vmatprep.subr.bf16.mxu0 0
    %2917 = vmatpush1.bf16.msra.mxu0 0
    %2918 = vmatprep.subr.bf16.mxu0 0
    %2919 = vmatpush1.bf16.msra.mxu0 0
    %2920 = vmatprep.mubr.bf16.mxu0 0
    %2921 = vmatmul.mubr.bf16.gmra.mrb[0].mxu0 %v2887
    %v2922 = vpop.f32.mrb[0].mxu0
    %v2923 = vadd.f32 0.0, %v2922
    %v2924 = vpop.f32.mrb[0].mxu0
    %v2925 = vadd.f32 0.0, %v2924
    %v2926 = vpop.f32.mrb[0].mxu0
    %v2927 = vpop.f32.mrb[0].mxu0
    %2928 = vdwg.mxu0
    %2929 = vmatprep.subr.bf16.mxu0 0
    %2930 = vmatpush1.bf16.msra.mxu0 %v2292
    %2931 = vmatprep.subr.bf16.mxu0 0
    %2932 = vmatpush1.bf16.msra.mxu0 %v2295
    %2933 = vmatprep.subr.bf16.mxu0 0
    %2934 = vmatpush1.bf16.msra.mxu0 %v2298
    %2935 = vmatprep.subr.bf16.mxu0 0
    %2936 = vmatpush1.bf16.msra.mxu0 %v2301
    %2937 = vmatprep.subr.bf16.mxu0 0
    %2938 = vmatpush1.bf16.msra.mxu0 %v2304
    %2939 = vmatprep.subr.bf16.mxu0 0
    %2940 = vmatpush1.bf16.msra.mxu0 %v2307
    %2941 = vmatprep.subr.bf16.mxu0 0
    %2942 = vmatpush1.bf16.msra.mxu0 %v2310
    %2943 = vmatprep.subr.bf16.mxu0 0
    %2944 = vmatpush1.bf16.msra.mxu0 %v2313
    %2945 = vmatprep.subr.bf16.mxu0 0
    %2946 = vmatpush1.bf16.msra.mxu0 0
    %2947 = vmatprep.subr.bf16.mxu0 0
    %2948 = vmatpush1.bf16.msra.mxu0 0
    %2949 = vmatprep.subr.bf16.mxu0 0
    %2950 = vmatpush1.bf16.msra.mxu0 0
    %2951 = vmatprep.subr.bf16.mxu0 0
    %2952 = vmatpush1.bf16.msra.mxu0 0
    %2953 = vmatprep.subr.bf16.mxu0 0
    %2954 = vmatpush1.bf16.msra.mxu0 0
    %2955 = vmatprep.subr.bf16.mxu0 0
    %2956 = vmatpush1.bf16.msra.mxu0 0
    %2957 = vmatprep.subr.bf16.mxu0 0
    %2958 = vmatpush1.bf16.msra.mxu0 0
    %2959 = vmatprep.subr.bf16.mxu0 0
    %2960 = vmatpush1.bf16.msra.mxu0 0
    %2961 = vmatprep.mubr.bf16.mxu0 0
    %2962 = vmatmul.mubr.bf16.gmra.mrb[0].mxu0 %v2887
    %v2963 = vpop.f32.mrb[0].mxu0
    %v2964 = vadd.f32 0.0, %v2963
    %v2965 = vpop.f32.mrb[0].mxu0
    %v2966 = vpop.f32.mrb[0].mxu0
    %v2967 = vpop.f32.mrb[0].mxu0
    %2968 = vdwg.mxu0
    %v2969 = vadd.f32 %v2884, %v2923
    %v2970 = vxor.u32 %v2969, 2147483648
    %v2971 = vmul.f32 %v2970, 1.442695
    %v2972 = vpow.pop %v2971
    %v2973 = vadd.f32 %v2972, 1.0
    %v2974 = vrcp.pop %v2973
    %v2975 = vmul.f32 1.0, %v2974
    %v2976 = vadd.f32 %v2885, %v2925
    %v2977 = vxor.u32 %v2976, 2147483648
    %v2978 = vmul.f32 %v2977, 1.442695
    %v2979 = vpow.pop %v2978
    %v2980 = vadd.f32 %v2979, 1.0
    %v2981 = vrcp.pop %v2980
    %v2982 = vmul.f32 1.0, %v2981
    %v2983 = vadd.f32 %v2964, %v2437
    %v2984 = vmul.f32 %v2975, %v2983
    %v2985 = vadd.f32 %v2886, %v2984
    %v2986 = vtanh.pop %v2985
    %v2987 = vsub.f32 1.0, %v2982
    %v2988 = vmul.f32 %v2987, %v2986
    %v2989 = vmul.f32 %v2982, %v2881
    %v2990 = vadd.f32 %v2988, %v2989
    %s2991 = scalar_lea.vmem [#allocation3], 40
    %2992 = vst [vmem:[%s2991] sm:$0xff] %v2990
    %v2993 = vld [vmem:[%s1269] sm:$0xff]
    %v2994 = vld [vmem:[%s1269 + $0x8] sm:$0xff]
    %v2995 = vld [vmem:[%s1269 + $0x10] sm:$0xff]
    %v2996 = vpack.c.bf16 %v2990, %v2990
    %2997 = vmatprep.subr.bf16.mxu0 %v2291
    %2998 = vmatpush1.bf16.msra.mxu0 %v2290
    %2999 = vmatprep.subr.bf16.mxu0 %v2294
    %3000 = vmatpush1.bf16.msra.mxu0 %v2293
    %3001 = vmatprep.subr.bf16.mxu0 %v2297
    %3002 = vmatpush1.bf16.msra.mxu0 %v2296
    %3003 = vmatprep.subr.bf16.mxu0 %v2300
    %3004 = vmatpush1.bf16.msra.mxu0 %v2299
    %3005 = vmatprep.subr.bf16.mxu0 %v2303
    %3006 = vmatpush1.bf16.msra.mxu0 %v2302
    %3007 = vmatprep.subr.bf16.mxu0 %v2306
    %3008 = vmatpush1.bf16.msra.mxu0 %v2305
    %3009 = vmatprep.subr.bf16.mxu0 %v2309
    %3010 = vmatpush1.bf16.msra.mxu0 %v2308
    %3011 = vmatprep.subr.bf16.mxu0 %v2312
    %3012 = vmatpush1.bf16.msra.mxu0 %v2311
    %3013 = vmatprep.subr.bf16.mxu0 0
    %3014 = vmatpush1.bf16.msra.mxu0 0
    %3015 = vmatprep.subr.bf16.mxu0 0
    %3016 = vmatpush1.bf16.msra.mxu0 0
    %3017 = vmatprep.subr.bf16.mxu0 0
    %3018 = vmatpush1.bf16.msra.mxu0 0
    %3019 = vmatprep.subr.bf16.mxu0 0
    %3020 = vmatpush1.bf16.msra.mxu0 0
    %3021 = vmatprep.subr.bf16.mxu0 0
    %3022 = vmatpush1.bf16.msra.mxu0 0
    %3023 = vmatprep.subr.bf16.mxu0 0
    %3024 = vmatpush1.bf16.msra.mxu0 0
    %3025 = vmatprep.subr.bf16.mxu0 0
    %3026 = vmatpush1.bf16.msra.mxu0 0
    %3027 = vmatprep.subr.bf16.mxu0 0
    %3028 = vmatpush1.bf16.msra.mxu0 0
    %3029 = vmatprep.mubr.bf16.mxu0 0
    %3030 = vmatmul.mubr.bf16.gmra.mrb[0].mxu0 %v2996
    %v3031 = vpop.f32.mrb[0].mxu0
    %v3032 = vadd.f32 0.0, %v3031
    %v3033 = vpop.f32.mrb[0].mxu0
    %v3034 = vadd.f32 0.0, %v3033
    %v3035 = vpop.f32.mrb[0].mxu0
    %v3036 = vpop.f32.mrb[0].mxu0
    %3037 = vdwg.mxu0
    %3038 = vmatprep.subr.bf16.mxu0 0
    %3039 = vmatpush1.bf16.msra.mxu0 %v2292
    %3040 = vmatprep.subr.bf16.mxu0 0
    %3041 = vmatpush1.bf16.msra.mxu0 %v2295
    %3042 = vmatprep.subr.bf16.mxu0 0
    %3043 = vmatpush1.bf16.msra.mxu0 %v2298
    %3044 = vmatprep.subr.bf16.mxu0 0
    %3045 = vmatpush1.bf16.msra.mxu0 %v2301
    %3046 = vmatprep.subr.bf16.mxu0 0
    %3047 = vmatpush1.bf16.msra.mxu0 %v2304
    %3048 = vmatprep.subr.bf16.mxu0 0
    %3049 = vmatpush1.bf16.msra.mxu0 %v2307
    %3050 = vmatprep.subr.bf16.mxu0 0
    %3051 = vmatpush1.bf16.msra.mxu0 %v2310
    %3052 = vmatprep.subr.bf16.mxu0 0
    %3053 = vmatpush1.bf16.msra.mxu0 %v2313
    %3054 = vmatprep.subr.bf16.mxu0 0
    %3055 = vmatpush1.bf16.msra.mxu0 0
    %3056 = vmatprep.subr.bf16.mxu0 0
    %3057 = vmatpush1.bf16.msra.mxu0 0
    %3058 = vmatprep.subr.bf16.mxu0 0
    %3059 = vmatpush1.bf16.msra.mxu0 0
    %3060 = vmatprep.subr.bf16.mxu0 0
    %3061 = vmatpush1.bf16.msra.mxu0 0
    %3062 = vmatprep.subr.bf16.mxu0 0
    %3063 = vmatpush1.bf16.msra.mxu0 0
    %3064 = vmatprep.subr.bf16.mxu0 0
    %3065 = vmatpush1.bf16.msra.mxu0 0
    %3066 = vmatprep.subr.bf16.mxu0 0
    %3067 = vmatpush1.bf16.msra.mxu0 0
    %3068 = vmatprep.subr.bf16.mxu0 0
    %3069 = vmatpush1.bf16.msra.mxu0 0
    %3070 = vmatprep.mubr.bf16.mxu0 0
    %3071 = vmatmul.mubr.bf16.gmra.mrb[0].mxu0 %v2996
    %v3072 = vpop.f32.mrb[0].mxu0
    %v3073 = vadd.f32 0.0, %v3072
    %v3074 = vpop.f32.mrb[0].mxu0
    %v3075 = vpop.f32.mrb[0].mxu0
    %v3076 = vpop.f32.mrb[0].mxu0
    %3077 = vdwg.mxu0
    %v3078 = vadd.f32 %v2993, %v3032
    %v3079 = vxor.u32 %v3078, 2147483648
    %v3080 = vmul.f32 %v3079, 1.442695
    %v3081 = vpow.pop %v3080
    %v3082 = vadd.f32 %v3081, 1.0
    %v3083 = vrcp.pop %v3082
    %v3084 = vmul.f32 1.0, %v3083
    %v3085 = vadd.f32 %v2994, %v3034
    %v3086 = vxor.u32 %v3085, 2147483648
    %v3087 = vmul.f32 %v3086, 1.442695
    %v3088 = vpow.pop %v3087
    %v3089 = vadd.f32 %v3088, 1.0
    %v3090 = vrcp.pop %v3089
    %v3091 = vmul.f32 1.0, %v3090
    %v3092 = vadd.f32 %v3073, %v2437
    %v3093 = vmul.f32 %v3084, %v3092
    %v3094 = vadd.f32 %v2995, %v3093
    %v3095 = vtanh.pop %v3094
    %v3096 = vsub.f32 1.0, %v3091
    %v3097 = vmul.f32 %v3096, %v3095
    %v3098 = vmul.f32 %v3091, %v2990
    %v3099 = vadd.f32 %v3097, %v3098
    %s3100 = scalar_lea.vmem [#allocation3], 48
    %3101 = vst [vmem:[%s3100] sm:$0xff] %v3099
    %v3102 = vld [vmem:[%s1377] sm:$0xff]
    %v3103 = vld [vmem:[%s1377 + $0x8] sm:$0xff]
    %v3104 = vld [vmem:[%s1377 + $0x10] sm:$0xff]
    %v3105 = vpack.c.bf16 %v3099, %v3099
    %3106 = vmatprep.subr.bf16.mxu0 %v2291
    %3107 = vmatpush1.bf16.msra.mxu0 %v2290
    %3108 = vmatprep.subr.bf16.mxu0 %v2294
    %3109 = vmatpush1.bf16.msra.mxu0 %v2293
    %3110 = vmatprep.subr.bf16.mxu0 %v2297
    %3111 = vmatpush1.bf16.msra.mxu0 %v2296
    %3112 = vmatprep.subr.bf16.mxu0 %v2300
    %3113 = vmatpush1.bf16.msra.mxu0 %v2299
    %3114 = vmatprep.subr.bf16.mxu0 %v2303
    %3115 = vmatpush1.bf16.msra.mxu0 %v2302
    %3116 = vmatprep.subr.bf16.mxu0 %v2306
    %3117 = vmatpush1.bf16.msra.mxu0 %v2305
    %3118 = vmatprep.subr.bf16.mxu0 %v2309
    %3119 = vmatpush1.bf16.msra.mxu0 %v2308
    %3120 = vmatprep.subr.bf16.mxu0 %v2312
    %3121 = vmatpush1.bf16.msra.mxu0 %v2311
    %3122 = vmatprep.subr.bf16.mxu0 0
    %3123 = vmatpush1.bf16.msra.mxu0 0
    %3124 = vmatprep.subr.bf16.mxu0 0
    %3125 = vmatpush1.bf16.msra.mxu0 0
    %3126 = vmatprep.subr.bf16.mxu0 0
    %3127 = vmatpush1.bf16.msra.mxu0 0
    %3128 = vmatprep.subr.bf16.mxu0 0
    %3129 = vmatpush1.bf16.msra.mxu0 0
    %3130 = vmatprep.subr.bf16.mxu0 0
    %3131 = vmatpush1.bf16.msra.mxu0 0
    %3132 = vmatprep.subr.bf16.mxu0 0
    %3133 = vmatpush1.bf16.msra.mxu0 0
    %3134 = vmatprep.subr.bf16.mxu0 0
    %3135 = vmatpush1.bf16.msra.mxu0 0
    %3136 = vmatprep.subr.bf16.mxu0 0
    %3137 = vmatpush1.bf16.msra.mxu0 0
    %3138 = vmatprep.mubr.bf16.mxu0 0
    %3139 = vmatmul.mubr.bf16.gmra.mrb[0].mxu0 %v3105
    %v3140 = vpop.f32.mrb[0].mxu0
    %v3141 = vadd.f32 0.0, %v3140
    %v3142 = vpop.f32.mrb[0].mxu0
    %v3143 = vadd.f32 0.0, %v3142
    %v3144 = vpop.f32.mrb[0].mxu0
    %v3145 = vpop.f32.mrb[0].mxu0
    %3146 = vdwg.mxu0
    %3147 = vmatprep.subr.bf16.mxu0 0
    %3148 = vmatpush1.bf16.msra.mxu0 %v2292
    %3149 = vmatprep.subr.bf16.mxu0 0
    %3150 = vmatpush1.bf16.msra.mxu0 %v2295
    %3151 = vmatprep.subr.bf16.mxu0 0
    %3152 = vmatpush1.bf16.msra.mxu0 %v2298
    %3153 = vmatprep.subr.bf16.mxu0 0
    %3154 = vmatpush1.bf16.msra.mxu0 %v2301
    %3155 = vmatprep.subr.bf16.mxu0 0
    %3156 = vmatpush1.bf16.msra.mxu0 %v2304
    %3157 = vmatprep.subr.bf16.mxu0 0
    %3158 = vmatpush1.bf16.msra.mxu0 %v2307
    %3159 = vmatprep.subr.bf16.mxu0 0
    %3160 = vmatpush1.bf16.msra.mxu0 %v2310
    %3161 = vmatprep.subr.bf16.mxu0 0
    %3162 = vmatpush1.bf16.msra.mxu0 %v2313
    %3163 = vmatprep.subr.bf16.mxu0 0
    %3164 = vmatpush1.bf16.msra.mxu0 0
    %3165 = vmatprep.subr.bf16.mxu0 0
    %3166 = vmatpush1.bf16.msra.mxu0 0
    %3167 = vmatprep.subr.bf16.mxu0 0
    %3168 = vmatpush1.bf16.msra.mxu0 0
    %3169 = vmatprep.subr.bf16.mxu0 0
    %3170 = vmatpush1.bf16.msra.mxu0 0
    %3171 = vmatprep.subr.bf16.mxu0 0
    %3172 = vmatpush1.bf16.msra.mxu0 0
    %3173 = vmatprep.subr.bf16.mxu0 0
    %3174 = vmatpush1.bf16.msra.mxu0 0
    %3175 = vmatprep.subr.bf16.mxu0 0
    %3176 = vmatpush1.bf16.msra.mxu0 0
    %3177 = vmatprep.subr.bf16.mxu0 0
    %3178 = vmatpush1.bf16.msra.mxu0 0
    %3179 = vmatprep.mubr.bf16.mxu0 0
    %3180 = vmatmul.mubr.bf16.gmra.mrb[0].mxu0 %v3105
    %v3181 = vpop.f32.mrb[0].mxu0
    %v3182 = vadd.f32 0.0, %v3181
    %v3183 = vpop.f32.mrb[0].mxu0
    %v3184 = vpop.f32.mrb[0].mxu0
    %v3185 = vpop.f32.mrb[0].mxu0
    %3186 = vdwg.mxu0
    %v3187 = vadd.f32 %v3102, %v3141
    %v3188 = vxor.u32 %v3187, 2147483648
    %v3189 = vmul.f32 %v3188, 1.442695
    %v3190 = vpow.pop %v3189
    %v3191 = vadd.f32 %v3190, 1.0
    %v3192 = vrcp.pop %v3191
    %v3193 = vmul.f32 1.0, %v3192
    %v3194 = vadd.f32 %v3103, %v3143
    %v3195 = vxor.u32 %v3194, 2147483648
    %v3196 = vmul.f32 %v3195, 1.442695
    %v3197 = vpow.pop %v3196
    %v3198 = vadd.f32 %v3197, 1.0
    %v3199 = vrcp.pop %v3198
    %v3200 = vmul.f32 1.0, %v3199
    %v3201 = vadd.f32 %v3182, %v2437
    %v3202 = vmul.f32 %v3193, %v3201
    %v3203 = vadd.f32 %v3104, %v3202
    %v3204 = vtanh.pop %v3203
    %v3205 = vsub.f32 1.0, %v3200
    %v3206 = vmul.f32 %v3205, %v3204
    %v3207 = vmul.f32 %v3200, %v3099
    %v3208 = vadd.f32 %v3206, %v3207
    %s3209 = scalar_lea.vmem [#allocation3], 56
    %3210 = vst [vmem:[%s3209] sm:$0xff] %v3208
    %3211 = vst [vmem:[#allocation6] sm:$0xff] %v3208
    %v3212 = vld [vmem:[#allocation3] sm:$0xff]
    %v3213 = vld [vmem:[#allocation3 + $0x8] sm:$0xff]
    %v3214 = vld [vmem:[#allocation3 + $0x10] sm:$0xff]
    %v3215 = vld [vmem:[#allocation3 + $0x18] sm:$0xff]
    %v3216 = vld [vmem:[#allocation3 + $0x20] sm:$0xff]
    %v3217 = vld [vmem:[#allocation3 + $0x28] sm:$0xff]
    %v3218 = vld [vmem:[#allocation3 + $0x30] sm:$0xff]
    %v3219 = vld [vmem:[#allocation3 + $0x38] sm:$0xff]
    %v3220 = vcombine.low %v3212, %v3214
    %v3221 = vcombine.high %v3212, %v3214
    %v3223 = vunpack.c.l.s4 1983009808
    %v3224 = vunpack.c.0.s8 %v3223
    %v3225 = vlaneseq
    %v3226 = vshrl.u32 %v3225, 7
    %v3227 = vsub.s32 %v3224, %v3226
    %v3228 = vrot.slane %v3220, %v3227
    %v3230 = vunpack.c.l.s4 1983009808
    %v3231 = vunpack.c.0.s8 %v3230
    %v3232 = vlaneseq
    %v3233 = vshrl.u32 %v3232, 7
    %v3234 = vsub.s32 %v3231, %v3233
    %v3235 = vrot.slane %v3221, %v3234
    %v3236 = vcombine.low %v3213, %v3215
    %v3237 = vcombine.high %v3213, %v3215
    %v3239 = vunpack.c.l.s4 1983009808
    %v3240 = vunpack.c.0.s8 %v3239
    %v3241 = vlaneseq
    %v3242 = vshrl.u32 %v3241, 7
    %v3243 = vsub.s32 %v3240, %v3242
    %v3244 = vrot.slane %v3236, %v3243
    %v3246 = vunpack.c.l.s4 1983009808
    %v3247 = vunpack.c.0.s8 %v3246
    %v3248 = vlaneseq
    %v3249 = vshrl.u32 %v3248, 7
    %v3250 = vsub.s32 %v3247, %v3249
    %v3251 = vrot.slane %v3237, %v3250
    %v3252 = vcombine.low %v3216, %v3218
    %v3253 = vcombine.high %v3216, %v3218
    %v3255 = vunpack.c.l.s4 1983009808
    %v3256 = vunpack.c.0.s8 %v3255
    %v3257 = vlaneseq
    %v3258 = vshrl.u32 %v3257, 7
    %v3259 = vsub.s32 %v3256, %v3258
    %v3260 = vrot.slane %v3252, %v3259
    %v3262 = vunpack.c.l.s4 1983009808
    %v3263 = vunpack.c.0.s8 %v3262
    %v3264 = vlaneseq
    %v3265 = vshrl.u32 %v3264, 7
    %v3266 = vsub.s32 %v3263, %v3265
    %v3267 = vrot.slane %v3253, %v3266
    %v3268 = vcombine.low %v3217, %v3219
    %v3269 = vcombine.high %v3217, %v3219
    %v3271 = vunpack.c.l.s4 1983009808
    %v3272 = vunpack.c.0.s8 %v3271
    %v3273 = vlaneseq
    %v3274 = vshrl.u32 %v3273, 7
    %v3275 = vsub.s32 %v3272, %v3274
    %v3276 = vrot.slane %v3268, %v3275
    %v3278 = vunpack.c.l.s4 1983009808
    %v3279 = vunpack.c.0.s8 %v3278
    %v3280 = vlaneseq
    %v3281 = vshrl.u32 %v3280, 7
    %v3282 = vsub.s32 %v3279, %v3281
    %v3283 = vrot.slane %v3269, %v3282
    %v3284 = vcombine.low %v3228, %v3244
    %v3285 = vcombine.high %v3228, %v3244
    %v3287 = vunpack.c.l.s4 1934713408
    %v3288 = vunpack.c.0.s8 %v3287
    %v3289 = vlaneseq
    %v3290 = vshrl.u32 %v3289, 7
    %v3291 = vsub.s32 %v3288, %v3290
    %v3292 = vrot.slane %v3284, %v3291
    %v3294 = vunpack.c.l.s4 1934713408
    %v3295 = vunpack.c.0.s8 %v3294
    %v3296 = vlaneseq
    %v3297 = vshrl.u32 %v3296, 7
    %v3298 = vsub.s32 %v3295, %v3297
    %v3299 = vrot.slane %v3285, %v3298
    %v3300 = vcombine.low %v3235, %v3251
    %v3301 = vcombine.high %v3235, %v3251
    %v3303 = vunpack.c.l.s4 1934713408
    %v3304 = vunpack.c.0.s8 %v3303
    %v3305 = vlaneseq
    %v3306 = vshrl.u32 %v3305, 7
    %v3307 = vsub.s32 %v3304, %v3306
    %v3308 = vrot.slane %v3300, %v3307
    %v3310 = vunpack.c.l.s4 1934713408
    %v3311 = vunpack.c.0.s8 %v3310
    %v3312 = vlaneseq
    %v3313 = vshrl.u32 %v3312, 7
    %v3314 = vsub.s32 %v3311, %v3313
    %v3315 = vrot.slane %v3301, %v3314
    %v3316 = vcombine.low %v3260, %v3276
    %v3317 = vcombine.high %v3260, %v3276
    %v3319 = vunpack.c.l.s4 1934713408
    %v3320 = vunpack.c.0.s8 %v3319
    %v3321 = vlaneseq
    %v3322 = vshrl.u32 %v3321, 7
    %v3323 = vsub.s32 %v3320, %v3322
    %v3324 = vrot.slane %v3316, %v3323
    %v3326 = vunpack.c.l.s4 1934713408
    %v3327 = vunpack.c.0.s8 %v3326
    %v3328 = vlaneseq
    %v3329 = vshrl.u32 %v3328, 7
    %v3330 = vsub.s32 %v3327, %v3329
    %v3331 = vrot.slane %v3317, %v3330
    %v3332 = vcombine.low %v3267, %v3283
    %v3333 = vcombine.high %v3267, %v3283
    %v3335 = vunpack.c.l.s4 1934713408
    %v3336 = vunpack.c.0.s8 %v3335
    %v3337 = vlaneseq
    %v3338 = vshrl.u32 %v3337, 7
    %v3339 = vsub.s32 %v3336, %v3338
    %v3340 = vrot.slane %v3332, %v3339
    %v3342 = vunpack.c.l.s4 1934713408
    %v3343 = vunpack.c.0.s8 %v3342
    %v3344 = vlaneseq
    %v3345 = vshrl.u32 %v3344, 7
    %v3346 = vsub.s32 %v3343, %v3345
    %v3347 = vrot.slane %v3333, %v3346
    %v3348 = vcombine.low %v3292, %v3324
    %v3349 = vcombine.high %v3292, %v3324
    %v3350 = vcombine.low %v3299, %v3331
    %v3351 = vcombine.high %v3299, %v3331
    %v3352 = vcombine.low %v3308, %v3340
    %v3353 = vcombine.high %v3308, %v3340
    %v3354 = vcombine.low %v3315, %v3347
    %v3355 = vcombine.high %v3315, %v3347
    %v3356 = vpack.c.bf16 %v3349, %v3348
    %v3357 = vpack.c.bf16 %v3351, %v3350
    %v3358 = vpack.c.bf16 %v3353, %v3352
    %v3359 = vpack.c.bf16 %v3355, %v3354
    %v3360 = vld [vmem:[%s11] sm:$0xf]
    %v3361 = vld [vmem:[%s11 + $0x4] sm:$0xf]
    %v3362 = vld [vmem:[%s11 + $0x8] sm:$0xf]
    %v3363 = vld [vmem:[%s11 + $0xc] sm:$0xf]
    %v3364 = vld [vmem:[%s11 + $0x10] sm:$0xf]
    %v3365 = vld [vmem:[%s11 + $0x14] sm:$0xf]
    %v3366 = vld [vmem:[%s11 + $0x18] sm:$0xf]
    %v3367 = vld [vmem:[%s11 + $0x1c] sm:$0xf]
    %v3368 = vld [vmem:[%s11 + $0x20] sm:$0xf]
    %v3369 = vld [vmem:[%s11 + $0x24] sm:$0xf]
    %v3370 = vld [vmem:[%s11 + $0x28] sm:$0xf]
    %v3371 = vld [vmem:[%s11 + $0x2c] sm:$0xf]
    %v3372 = vld [vmem:[%s11 + $0x30] sm:$0xf]
    %v3373 = vld [vmem:[%s11 + $0x34] sm:$0xf]
    %v3374 = vld [vmem:[%s11 + $0x38] sm:$0xf]
    %v3375 = vld [vmem:[%s11 + $0x3c] sm:$0xf]
    %v3376 = vld [vmem:[%s12] sm:$0x1]
    %v3378 = vlaneseq
    %v3379 = vshrl.u32 %v3378, 7
    %v3380 = vsub.s32 0, %v3379
    %v3381 = vrot.slane %v3376, %v3380
    %v3399 = vunpack.c.l.b16 %v3360
    %v3400 = vunpack.c.l.b16 %v3361
    %v3401 = vunpack.c.l.b16 %v3362
    %v3402 = vunpack.c.l.b16 %v3363
    %v3403 = vunpack.c.l.b16 %v3364
    %v3404 = vunpack.c.l.b16 %v3365
    %v3405 = vunpack.c.l.b16 %v3366
    %v3406 = vunpack.c.l.b16 %v3367
    %v3407 = vunpack.c.l.b16 %v3368
    %v3408 = vunpack.c.l.b16 %v3369
    %v3409 = vunpack.c.l.b16 %v3370
    %v3410 = vunpack.c.l.b16 %v3371
    %v3411 = vunpack.c.l.b16 %v3372
    %v3412 = vunpack.c.l.b16 %v3373
    %v3413 = vunpack.c.l.b16 %v3374
    %v3414 = vunpack.c.l.b16 %v3375
    %v3415 = vpack.c.b16 %v3400, %v3399
    %v3416 = vpack.c.b16 %v3402, %v3401
    %v3417 = vpack.c.b16 %v3404, %v3403
    %v3418 = vpack.c.b16 %v3406, %v3405
    %v3419 = vpack.c.b16 %v3408, %v3407
    %v3420 = vpack.c.b16 %v3410, %v3409
    %v3421 = vpack.c.b16 %v3412, %v3411
    %v3422 = vpack.c.b16 %v3414, %v3413
    %3431 = vmatprep.subr.bf16.mxu0 0
    %3432 = vmatpush1.bf16.msra.mxu0 %v3415
    %3433 = vmatprep.subr.bf16.mxu0 0
    %3434 = vmatpush1.bf16.msra.mxu0 %v3416
    %3435 = vmatprep.subr.bf16.mxu0 0
    %3436 = vmatpush1.bf16.msra.mxu0 %v3417
    %3437 = vmatprep.subr.bf16.mxu0 0
    %3438 = vmatpush1.bf16.msra.mxu0 %v3418
    %3439 = vmatprep.subr.bf16.mxu0 0
    %3440 = vmatpush1.bf16.msra.mxu0 %v3419
    %3441 = vmatprep.subr.bf16.mxu0 0
    %3442 = vmatpush1.bf16.msra.mxu0 %v3420
    %3443 = vmatprep.subr.bf16.mxu0 0
    %3444 = vmatpush1.bf16.msra.mxu0 %v3421
    %3445 = vmatprep.subr.bf16.mxu0 0
    %3446 = vmatpush1.bf16.msra.mxu0 %v3422
    %3447 = vmatprep.subr.bf16.mxu0 0
    %3448 = vmatpush1.bf16.msra.mxu0 0
    %3449 = vmatprep.subr.bf16.mxu0 0
    %3450 = vmatpush1.bf16.msra.mxu0 0
    %3451 = vmatprep.subr.bf16.mxu0 0
    %3452 = vmatpush1.bf16.msra.mxu0 0
    %3453 = vmatprep.subr.bf16.mxu0 0
    %3454 = vmatpush1.bf16.msra.mxu0 0
    %3455 = vmatprep.subr.bf16.mxu0 0
    %3456 = vmatpush1.bf16.msra.mxu0 0
    %3457 = vmatprep.subr.bf16.mxu0 0
    %3458 = vmatpush1.bf16.msra.mxu0 0
    %3459 = vmatprep.subr.bf16.mxu0 0
    %3460 = vmatpush1.bf16.msra.mxu0 0
    %3461 = vmatprep.subr.bf16.mxu0 0
    %3462 = vmatpush1.bf16.msra.mxu0 0
    %3463 = vmatprep.mubr.bf16.mxu0 0
    %3464 = vmatmul.mubr.bf16.gmra.mrb[0].mxu0 %v3356
    %v3465 = vpop.f32.mrb[0].mxu0
    %v3466 = vadd.f32 %v3381, %v3465
    %v3467 = vpop.f32.mrb[0].mxu0
    %v3468 = vpop.f32.mrb[0].mxu0
    %v3469 = vadd.f32 %v3381, %v3468
    %v3470 = vpop.f32.mrb[0].mxu0
    %3471 = vmatprep.mubr.bf16.mxu0 0
    %3472 = vmatmul.mubr.bf16.gmra.mrb[0].mxu0 %v3357
    %v3473 = vpop.f32.mrb[0].mxu0
    %v3474 = vadd.f32 %v3381, %v3473
    %v3475 = vpop.f32.mrb[0].mxu0
    %v3476 = vpop.f32.mrb[0].mxu0
    %v3477 = vadd.f32 %v3381, %v3476
    %v3478 = vpop.f32.mrb[0].mxu0
    %3479 = vmatprep.mubr.bf16.mxu0 0
    %3480 = vmatmul.mubr.bf16.gmra.mrb[0].mxu0 %v3358
    %v3481 = vpop.f32.mrb[0].mxu0
    %v3482 = vadd.f32 %v3381, %v3481
    %v3483 = vpop.f32.mrb[0].mxu0
    %v3484 = vpop.f32.mrb[0].mxu0
    %v3485 = vadd.f32 %v3381, %v3484
    %v3486 = vpop.f32.mrb[0].mxu0
    %3487 = vmatprep.mubr.bf16.mxu0 0
    %3488 = vmatmul.mubr.bf16.gmra.mrb[0].mxu0 %v3359
    %v3489 = vpop.f32.mrb[0].mxu0
    %v3490 = vadd.f32 %v3381, %v3489
    %v3491 = vpop.f32.mrb[0].mxu0
    %v3492 = vpop.f32.mrb[0].mxu0
    %v3493 = vadd.f32 %v3381, %v3492
    %v3494 = vpop.f32.mrb[0].mxu0
    %3495 = vdwg.mxu0
    %3496 = vst [vmem:[#allocation4] sm:$0xff] %v3466
    %3497 = vst [vmem:[#allocation4 + $0x8] sm:$0xff] %v3469
    %3498 = vst [vmem:[#allocation4 + $0x10] sm:$0xff] %v3474
    %3499 = vst [vmem:[#allocation4 + $0x18] sm:$0xff] %v3477
    %3500 = vst [vmem:[#allocation4 + $0x20] sm:$0xff] %v3482
    %3501 = vst [vmem:[#allocation4 + $0x28] sm:$0xff] %v3485
    %3502 = vst [vmem:[#allocation4 + $0x30] sm:$0xff] %v3490
    %3503 = vst [vmem:[#allocation4 + $0x38] sm:$0xff] %v3493
    // Predicated region
    $region54: #{encoder_decoder_forward.1} parent=1 // pred_check
      _
    $region55: #{encoder_decoder_forward.1} parent=1 // pred_check_branch
      %3505 = sbr.rel (0) target = $region57
    $region56: #{encoder_decoder_forward.1} parent=1 // pred_region
      %s3507 = ssub.s32 1024, 1024
      %3508 = vsyncadd [#allocation5], %s3507
      %s3509 = sshll.u32 [#allocation4], 4
      %s3510 = int_to_ptr.vmem [resolvable:$true] %s3509
      %3515 = dma.vmem_to_hbm [thread:$0]  %s3510, 1024, %s13, [#allocation5], 128, 128, 8
    $region57: #{encoder_decoder_forward.1} parent=1 // pred_fallthru
      _
    // Predicated region
    $region58: #{encoder_decoder_forward.1} parent=1 // pred_check
      _
    $region59: #{encoder_decoder_forward.1} parent=1 // pred_check_branch
      %3517 = sbr.rel (0) target = $region61
    $region60: #{encoder_decoder_forward.1} parent=1 // pred_region
      %s3519 = ssub.s32 128, 128
      %3520 = vsyncadd [#allocation7], %s3519
      %s3522 = sshll.u32 [#allocation6], 4
      %s3523 = int_to_ptr.vmem [resolvable:$true] %s3522
      %3525 = dma.vmem_to_hbm [thread:$0]  %s3523, 128, %s14, [#allocation7]
    $region61: #{encoder_decoder_forward.1} parent=1 // pred_fallthru
      _
    // Predicated region
    $region62: #{encoder_decoder_forward.1} parent=1 // pred_check
      _
    $region63: #{encoder_decoder_forward.1} parent=1 // pred_check_branch
      %3527 = sbr.rel (0) target = $region65
    $region64: #{encoder_decoder_forward.1} parent=1 // pred_region
      %3528 = dma.done [#allocation5], 1024
    $region65: #{encoder_decoder_forward.1} parent=1 // pred_fallthru
      _
    // Predicated region
    $region66: #{encoder_decoder_forward.1} parent=1 // pred_check
      _
    $region67: #{encoder_decoder_forward.1} parent=1 // pred_check_branch
      %3530 = sbr.rel (0) target = $region69
    $region68: #{encoder_decoder_forward.1} parent=1 // pred_region
      %3531 = dma.done [#allocation7], 128
    $region69: #{encoder_decoder_forward.1} parent=1 // pred_fallthru
      _
    %3532 = vsyncpa [#allocation5], 1
    %3533 = vsyncpa [#allocation7], 1

</llo_original>
